<compile_context>
chip_gen: v7x
topology: tpu7x:2x2x1
jax: 0.10.0
libtpu: 0.0.40
codegen_flags: <defaults>
</compile_context>

<pallas_src>
import jax
import jax.numpy as jnp
from jax.experimental import pallas as pl
from jax.experimental.pallas import tpu as pltpu

# ----- small config consistent with the module structure -----
PATCH = 16
IMG = 32                        # 32x32 image, patch 16 -> 2x2 = 4 patches
HIDDEN = 32                     # hidden_dim
HEADS = 4
HEAD_DIM = HIDDEN // HEADS
MLP_DIM = 64
LAYERS = 2
N_SZ = 16                       # n_sz from the module
N_CLASSES = 5
LN_EPS = 1e-6                   # torchvision ViT LayerNorm eps
NP = (IMG // PATCH) ** 2        # number of patches
SEQ = NP + 1                    # patches + class token
SEQ_PAD = 8                     # sublane-padded sequence length
CPP = 3 * PATCH * PATCH         # flattened patch length
HEAD_PAD = 128                  # lane-dense padded head output width


def _gelu(x):
    # TODO(synk): torch nn.GELU default is exact erf; tanh approximation used (EUP-friendly).
    return jax.nn.gelu(x, approximate=True)


def _ln(v, g, b):
    mu = jnp.mean(v, axis=-1, keepdims=True)
    c = v - mu
    var = jnp.mean(c * c, axis=-1, keepdims=True)
    return c * jax.lax.rsqrt(var + LN_EPS) * g + b


def _softmax_last(s):
    m = jnp.max(s, axis=-1, keepdims=True)
    e = jnp.exp(s - m)
    return e / jnp.sum(e, axis=-1, keepdims=True)


# ---------------- fused Pallas kernel (one grid step == block_b samples) ----------------
def vit_fused_kernel(xp_ref, sz_ref,
                     pw_ref, emb_ref, lnp_ref, bias_ref,
                     qkvw_ref, outw_ref, fc1w_ref, fc2w_ref,
                     szp_ref, head_ref,
                     o_ref, hbuf_ref):
    f32 = jnp.float32
    Bblk = o_ref.shape[0]                    # static block batch size
    BT = Bblk * SEQ_PAD
    scale = 1.0 / (HEAD_DIM ** 0.5)
    H2 = N_SZ // 2

    # ---- patch embedding: conv_proj (kernel==stride==patch) == one flattened matmul ----
    tok = jnp.dot(xp_ref[...], pw_ref[...], preferred_element_type=f32)   # (Bblk*NP, HIDDEN)

    # ---- assemble padded token buffer per sample:
    #      row 0 = cls + pos[0]; rows 1..NP = tok + (conv_b + pos[1:]); rows SEQ..7 = 0
    emb = emb_ref[...]                                                    # (SEQ_PAD, HIDDEN)
    for s in range(Bblk):
        base = s * SEQ_PAD
        hbuf_ref[base:base + SEQ_PAD, :] = emb                            # aligned full-tile store
    for s in range(Bblk):
        r0 = s * SEQ_PAD + 1
        hbuf_ref[r0:r0 + NP, :] = hbuf_ref[r0:r0 + NP, :] + tok[s * NP:(s + 1) * NP, :]
    h = hbuf_ref[...]                                                     # (BT, HIDDEN)

    # ---- key-padding mask (padded key columns -> -1e30), hoisted out of the layer loop ----
    kmask = jnp.where(
        jax.lax.broadcasted_iota(jnp.int32, (Bblk, SEQ_PAD, SEQ_PAD), 2) < SEQ,
        0.0, -1e30).astype(f32)

    # ---- encoder layers (statically unrolled, weights VMEM-resident) ----
    for l in range(LAYERS):
        g1 = lnp_ref[4 * l + 0:4 * l + 1, :]
        b1 = lnp_ref[4 * l + 1:4 * l + 2, :]
        g2 = lnp_ref[4 * l + 2:4 * l + 3, :]
        b2 = lnp_ref[4 * l + 3:4 * l + 4, :]
        qkv_b = bias_ref[l, 0:1, :3 * HIDDEN]
        out_b = bias_ref[l, 1:2, :HIDDEN]
        fc1_b = bias_ref[l, 2:3, :MLP_DIM]
        fc2_b = bias_ref[l, 3:4, :HIDDEN]

        # --- self-attention block ---
        y = _ln(h, g1, b1)
        qkv = jnp.dot(y, qkvw_ref[l], preferred_element_type=f32) + qkv_b  # (BT, 3*HIDDEN)

        # per-head attention, batched over samples; context assembled in VMEM scratch
        for hh in range(HEADS):
            lo = hh * HEAD_DIM
            qh = qkv[:, lo:lo + HEAD_DIM].reshape(Bblk, SEQ_PAD, HEAD_DIM)
            kh = qkv[:, HIDDEN + lo:HIDDEN + lo + HEAD_DIM].reshape(Bblk, SEQ_PAD, HEAD_DIM)
            vh = qkv[:, 2 * HIDDEN + lo:2 * HIDDEN + lo + HEAD_DIM].reshape(Bblk, SEQ_PAD, HEAD_DIM)
            s = jnp.einsum('bqd,bkd->bqk', qh, kh,
                           preferred_element_type=f32) * scale             # (Bblk, S, S)
            p = _softmax_last(s + kmask)
            oh = jnp.einsum('bqk,bkd->bqd', p, vh,
                            preferred_element_type=f32)                    # (Bblk, S, Dh)
            hbuf_ref[:, lo:lo + HEAD_DIM] = oh.reshape(BT, HEAD_DIM)       # lane-offset store

        ctx = hbuf_ref[...]                                                # (BT, HIDDEN)
        h = h + jnp.dot(ctx, outw_ref[l], preferred_element_type=f32) + out_b

        # --- MLP block ---
        y2 = _ln(h, g2, b2)
        m2 = _gelu(jnp.dot(y2, fc1w_ref[l], preferred_element_type=f32) + fc1_b)
        h = h + jnp.dot(m2, fc2w_ref[l], preferred_element_type=f32) + fc2_b

    # ---- final encoder LayerNorm, gather class tokens ----
    h = _ln(h, lnp_ref[4 * LAYERS:4 * LAYERS + 1, :], lnp_ref[4 * LAYERS + 1:4 * LAYERS + 2, :])
    hbuf_ref[...] = h
    cls = jnp.concatenate(
        [hbuf_ref[s * SEQ_PAD:s * SEQ_PAD + 1, :] for s in range(Bblk)], axis=0)  # (Bblk, HIDDEN)

    # ---- model_sz branch: Linear -> ReLU -> Linear -> ReLU (batched over samples) ----
    szmat = sz_ref[:, 0, :]                                                # (Bblk, 2)
    s1 = jnp.maximum(jnp.dot(szmat, szp_ref[0:2, 0:H2], preferred_element_type=jnp.float32)
                     + szp_ref[2:3, 0:H2], 0.0)                            # (Bblk, N_SZ//2)
    s2 = jnp.maximum(jnp.dot(s1, szp_ref[3:3 + H2, :], preferred_element_type=jnp.float32)
                     + szp_ref[3 + H2:4 + H2, :], 0.0)                     # (Bblk, N_SZ)

    # ---- combined head (concat avoided by splitting the padded, lane-dense head weight) ----
    logits = (jnp.dot(cls, head_ref[0:HIDDEN, :], preferred_element_type=jnp.float32)
              + jnp.dot(s2, head_ref[HIDDEN:HIDDEN + N_SZ, :], preferred_element_type=jnp.float32)
              + head_ref[HIDDEN + N_SZ:HIDDEN + N_SZ + 1, :])              # (Bblk, HEAD_PAD)
    o_ref[:, 0, :] = logits.astype(o_ref.dtype)


# ---------------- wrapper ----------------
def forward(kp, x, sz, block_b=None):
    """x: (B, 3, IMG, IMG) NCHW, sz: (B, 2). Returns (B, N_CLASSES).

    block_b: samples per grid step.  Default = whole batch (grid=1; best on
    single-TC v5e/v6e).  On v7x pass block_b=ceil(B/2) so the "parallel" grid
    axis splits the batch over both TensorCores.
    """
    B = x.shape[0]
    if block_b is None:
        block_b = B
    assert B % block_b == 0
    nblk = B // block_b

    gh = IMG // PATCH
    # patch extraction (plain-JAX glue, one tiny relayout outside the kernel)
    xp = x.reshape(B, 3, gh, PATCH, gh, PATCH).transpose(0, 2, 4, 1, 3, 5)
    xp = xp.reshape(B * NP, CPP)
    sz3 = sz.reshape(B, 1, 2)

    w_order = ("patch_w", "emb", "ln_p", "bias_p", "qkv_w", "out_w",
               "fc1_w", "fc2_w", "szp", "headp")
    weights = tuple(kp[name] for name in w_order)

    def whole(a):
        nd = a.ndim
        return pl.BlockSpec(a.shape, lambda b, _nd=nd: (0,) * _nd)

    in_specs = [pl.BlockSpec((block_b * NP, CPP), lambda b: (b, 0)),
                pl.BlockSpec((block_b, 1, 2), lambda b: (b, 0, 0))]
    in_specs += [whole(w) for w in weights]

    out = pl.pallas_call(
        vit_fused_kernel,
        grid=(nblk,),
        out_shape=jax.ShapeDtypeStruct((B, 1, HEAD_PAD), jnp.float32),
        in_specs=in_specs,
        out_specs=pl.BlockSpec((block_b, 1, HEAD_PAD), lambda b: (b, 0, 0)),
        scratch_shapes=[pltpu.VMEM((block_b * SEQ_PAD, HIDDEN), jnp.float32)],
        compiler_params=pltpu.CompilerParams(
            dimension_semantics=("parallel",)),   # lets v7x shard batch blocks over 2 TCs
    )(xp, sz3, *weights)
    return out[:, 0, :N_CLASSES]


# ---------------- parameters (deterministic, synthetic, PyTorch layout) ----------------
def init_params(key):
    keys = iter(jax.random.split(key, 32))

    def nrm(shape):
        return 0.02 * jax.random.normal(next(keys), shape, dtype=jnp.float32)

    p = {
        "conv_w": nrm((HIDDEN, 3, PATCH, PATCH)),   # conv_proj.weight (D,C,P,P)
        "conv_b": nrm((HIDDEN,)),
        "cls": nrm((1, 1, HIDDEN)),                 # class_token
        "pos": nrm((1, SEQ, HIDDEN)),               # encoder.pos_embedding
        "layers": [],
        "lnf_g": jnp.ones((HIDDEN,), jnp.float32),  # encoder.ln
        "lnf_b": jnp.zeros((HIDDEN,), jnp.float32),
    }
    for _ in range(LAYERS):
        p["layers"].append({
            "ln1_g": jnp.ones((HIDDEN,), jnp.float32),
            "ln1_b": jnp.zeros((HIDDEN,), jnp.float32),
            "qkv_w": nrm((3 * HIDDEN, HIDDEN)),     # in_proj_weight
            "qkv_b": nrm((3 * HIDDEN,)),
            "out_w": nrm((HIDDEN, HIDDEN)),         # out_proj.weight
            "out_b": nrm((HIDDEN,)),
            "ln2_g": jnp.ones((HIDDEN,), jnp.float32),
            "ln2_b": jnp.zeros((HIDDEN,), jnp.float32),
            "fc1_w": nrm((MLP_DIM, HIDDEN)),
            "fc1_b": nrm((MLP_DIM,)),
            "fc2_w": nrm((HIDDEN, MLP_DIM)),
            "fc2_b": nrm((HIDDEN,)),
        })
    # model_sz: Linear(2, n_sz//2) -> ReLU -> Linear(n_sz//2, n_sz) -> ReLU
    p["sz1_w"] = nrm((N_SZ // 2, 2))
    p["sz1_b"] = nrm((N_SZ // 2,))
    p["sz2_w"] = nrm((N_SZ, N_SZ // 2))
    p["sz2_b"] = nrm((N_SZ,))
    # heads[0] = Linear(hidden + n_sz, n_classes)  (combine=True)
    p["head_w"] = nrm((N_CLASSES, HIDDEN + N_SZ))
    p["head_b"] = nrm((N_CLASSES,))
    return p


def prepare_params(p):
    """One-time (outside jit) repack: transpose to (K,N), stack per layer, pack small
    vectors into a few dense slabs, pad head to 128 lanes and seq buffer to 8 rows."""
    f32 = jnp.float32
    H2 = N_SZ // 2

    # class token / positional embedding / conv bias folded into one (SEQ_PAD, HIDDEN) slab
    pos = p["pos"].reshape(SEQ, HIDDEN)
    emb = jnp.zeros((SEQ_PAD, HIDDEN), f32)
    emb = emb.at[0, :].set(p["cls"].reshape(HIDDEN) + pos[0])
    emb = emb.at[1:SEQ, :].set(p["conv_b"].reshape(1, HIDDEN) + pos[1:SEQ])

    # LayerNorm params: rows [4l..4l+3] = ln1_g, ln1_b, ln2_g, ln2_b; last two rows = final LN
    lnp = jnp.zeros((4 * LAYERS + 2, HIDDEN), f32)
    for l, L in enumerate(p["layers"]):
        lnp = lnp.at[4 * l + 0].set(L["ln1_g"])
        lnp = lnp.at[4 * l + 1].set(L["ln1_b"])
        lnp = lnp.at[4 * l + 2].set(L["ln2_g"])
        lnp = lnp.at[4 * l + 3].set(L["ln2_b"])
    lnp = lnp.at[4 * LAYERS + 0].set(p["lnf_g"])
    lnp = lnp.at[4 * LAYERS + 1].set(p["lnf_b"])

    # biases packed per layer: rows = qkv_b, out_b, fc1_b, fc2_b (lane-padded to 3*HIDDEN)
    bias = jnp.zeros((LAYERS, 4, 3 * HIDDEN), f32)
    for l, L in enumerate(p["layers"]):
        bias = bias.at[l, 0, :3 * HIDDEN].set(L["qkv_b"])
        bias = bias.at[l, 1, :HIDDEN].set(L["out_b"])
        bias = bias.at[l, 2, :MLP_DIM].set(L["fc1_b"])
        bias = bias.at[l, 3, :HIDDEN].set(L["fc2_b"])

    # size-MLP packed: rows 0:2 = sz1_w^T, row 2 = sz1_b, rows 3:3+H2 = sz2_w^T, row 3+H2 = sz2_b
    szp = jnp.zeros((H2 + 4, N_SZ), f32)
    szp = szp.at[0:2, :H2].set(p["sz1_w"].T)
    szp = szp.at[2, :H2].set(p["sz1_b"])
    szp = szp.at[3:3 + H2, :N_SZ].set(p["sz2_w"].T)
    szp = szp.at[3 + H2, :N_SZ].set(p["sz2_b"])

    # combined head packed + lane-padded: rows 0:48 = weight^T, row 48 = bias
    headp = jnp.zeros((HIDDEN + N_SZ + 1, HEAD_PAD), f32)
    headp = headp.at[:HIDDEN + N_SZ, :N_CLASSES].set(p["head_w"].T)
    headp = headp.at[HIDDEN + N_SZ, :N_CLASSES].set(p["head_b"])

    return {
        "patch_w": p["conv_w"].reshape(HIDDEN, -1).T,               # (CPP, HIDDEN)
        "emb": emb,                                                 # (SEQ_PAD, HIDDEN)
        "ln_p": lnp,                                                # (4L+2, HIDDEN)
        "bias_p": bias,                                             # (L, 4, 3*HIDDEN)
        "qkv_w": jnp.stack([L["qkv_w"].T for L in p["layers"]]),    # (L, HIDDEN, 3H)
        "out_w": jnp.stack([L["out_w"].T for L in p["layers"]]),    # (L, HIDDEN, HIDDEN)
        "fc1_w": jnp.stack([L["fc1_w"].T for L in p["layers"]]),    # (L, HIDDEN, MLP)
        "fc2_w": jnp.stack([L["fc2_w"].T for L in p["layers"]]),    # (L, MLP, HIDDEN)
        "szp": szp,                                                 # (N_SZ//2+4, N_SZ)
        "headp": headp,                                             # (HIDDEN+N_SZ+1, 128)
    }


# ---------------- pure-JAX reference (same math, PyTorch-layout params) ----------------
def ref_forward(params, x, sz):
    B = x.shape[0]
    gh = IMG // PATCH
    xp = x.reshape(B, 3, gh, PATCH, gh, PATCH).transpose(0, 2, 4, 1, 3, 5)
    xp = xp.reshape(B * NP, -1)
    tok = (xp @ params["conv_w"].reshape(HIDDEN, -1).T + params["conv_b"])
    tok = tok.reshape(B, NP, HIDDEN)
    h = jnp.concatenate([jnp.broadcast_to(params["cls"], (B, 1, HIDDEN)), tok], 1) + params["pos"]

    def ln(v, g, b):
        mu = v.mean(-1, keepdims=True)
        var = ((v - mu) ** 2).mean(-1, keepdims=True)
        return (v - mu) / jnp.sqrt(var + LN_EPS) * g + b

    for L in params["layers"]:
        y = ln(h, L["ln1_g"], L["ln1_b"])
        qkv = (y @ L["qkv_w"].T + L["qkv_b"]).reshape(B, SEQ, 3, HEADS, HEAD_DIM)
        q, k, v = (qkv[:, :, j].transpose(0, 2, 1, 3) for j in range(3))
        s = jnp.einsum("bhqd,bhkd->bhqk", q, k) / (HEAD_DIM ** 0.5)
        p = jax.nn.softmax(s, axis=-1)
        ctx = jnp.einsum("bhqk,bhkd->bhqd", p, v).transpose(0, 2, 1, 3).reshape(B, SEQ, HIDDEN)
        h = h + ctx @ L["out_w"].T + L["out_b"]
        y2 = ln(h, L["ln2_g"], L["ln2_b"])
        h = h + _gelu(y2 @ L["fc1_w"].T + L["fc1_b"]) @ L["fc2_w"].T + L["fc2_b"]
    h = ln(h, params["lnf_g"], params["lnf_b"])
    cls_tok = h[:, 0]
    s1 = jnp.maximum(sz @ params["sz1_w"].T + params["sz1_b"], 0.0)
    s2 = jnp.maximum(s1 @ params["sz2_w"].T + params["sz2_b"], 0.0)
    feat = jnp.concatenate([cls_tok, s2], axis=1)
    return feat @ params["head_w"].T + params["head_b"]


if __name__ == "__main__":
    key = jax.random.PRNGKey(0)
    kparam, kx, ks = jax.random.split(key, 3)
    raw_params = init_params(kparam)
    kernel_params = prepare_params(raw_params)       # one-time repack OUTSIDE jit

    x = jax.random.normal(kx, (2, 3, IMG, IMG), dtype=jnp.float32)   # NCHW
    sz = jax.random.normal(ks, (2, 2), dtype=jnp.float32)

    fwd = jax.jit(forward)
    out = jax.block_until_ready(fwd(kernel_params, x, sz))

    ref = ref_forward(raw_params, x, sz)
    assert out.shape == (2, N_CLASSES), out.shape
    assert jnp.allclose(out, ref, atol=2e-4, rtol=1e-3), (out, ref)
    print("KERNEL_OK")
</pallas_src>

<mosaic_0001>
module attributes {stable_mosaic.version = 11 : i64} {
  func.func @vit_fused_kernel(%arg0: i32, %arg1: memref<8x768xf32, #tpu.memory_space<vmem>>, %arg2: memref<2x1x2xf32, #tpu.memory_space<vmem>>, %arg3: memref<768x32xf32, #tpu.memory_space<vmem>>, %arg4: memref<8x32xf32, #tpu.memory_space<vmem>>, %arg5: memref<10x32xf32, #tpu.memory_space<vmem>>, %arg6: memref<2x4x96xf32, #tpu.memory_space<vmem>>, %arg7: memref<2x32x96xf32, #tpu.memory_space<vmem>>, %arg8: memref<2x32x32xf32, #tpu.memory_space<vmem>>, %arg9: memref<2x32x64xf32, #tpu.memory_space<vmem>>, %arg10: memref<2x64x32xf32, #tpu.memory_space<vmem>>, %arg11: memref<12x16xf32, #tpu.memory_space<vmem>>, %arg12: memref<49x128xf32, #tpu.memory_space<vmem>>, %arg13: memref<2x1x128xf32, #tpu.memory_space<vmem>>, %arg14: memref<16x32xf32, #tpu.memory_space<vmem>>) attributes {dimension_semantics = [#tpu.dimension_semantics<parallel>], iteration_bounds = array<i64: 1>, scalar_prefetch = 0 : i64, scratch_operands = 1 : i64, tpu.core_type = #tpu.core_type<tc>, window_params = [{transform_indices = @transform_0, window_bounds = array<i64: 8, 768>}, {transform_indices = @transform_1, window_bounds = array<i64: 2, 1, 2>}, {pipeline_mode = #tpu.pipeline_mode<synchronous>, transform_indices = @transform_2, window_bounds = array<i64: 768, 32>}, {pipeline_mode = #tpu.pipeline_mode<synchronous>, transform_indices = @transform_3, window_bounds = array<i64: 8, 32>}, {pipeline_mode = #tpu.pipeline_mode<synchronous>, transform_indices = @transform_4, window_bounds = array<i64: 10, 32>}, {pipeline_mode = #tpu.pipeline_mode<synchronous>, transform_indices = @transform_5, window_bounds = array<i64: 2, 4, 96>}, {pipeline_mode = #tpu.pipeline_mode<synchronous>, transform_indices = @transform_6, window_bounds = array<i64: 2, 32, 96>}, {pipeline_mode = #tpu.pipeline_mode<synchronous>, transform_indices = @transform_7, window_bounds = array<i64: 2, 32, 32>}, {pipeline_mode = #tpu.pipeline_mode<synchronous>, transform_indices = @transform_8, window_bounds = array<i64: 2, 32, 64>}, {pipeline_mode = #tpu.pipeline_mode<synchronous>, transform_indices = @transform_9, window_bounds = array<i64: 2, 64, 32>}, {pipeline_mode = #tpu.pipeline_mode<synchronous>, transform_indices = @transform_10, window_bounds = array<i64: 12, 16>}, {pipeline_mode = #tpu.pipeline_mode<synchronous>, transform_indices = @transform_11, window_bounds = array<i64: 49, 128>}, {transform_indices = @transform_12, window_bounds = array<i64: 2, 1, 128>}]} {
    %c0 = arith.constant 0 : index
    %c0_0 = arith.constant 0 : index
    %0 = vector.load %arg1[%c0, %c0_0] : memref<8x768xf32, #tpu.memory_space<vmem>>, vector<8x768xf32>
    %c0_1 = arith.constant 0 : index
    %c0_2 = arith.constant 0 : index
    %1 = vector.load %arg3[%c0_1, %c0_2] : memref<768x32xf32, #tpu.memory_space<vmem>>, vector<768x32xf32>
    %cst = arith.constant dense<0.000000e+00> : vector<8x32xf32>
    %2 = tpu.matmul %0, %1, %cst {dimension_numbers = #tpu.dot_dimension_numbers<[1], [0], [0], [1], [0, 0, 1, 1], [], []>} : vector<8x768xf32>, vector<768x32xf32>, vector<8x32xf32> -> vector<8x32xf32>
    %c0_3 = arith.constant 0 : index
    %c0_4 = arith.constant 0 : index
    %3 = vector.load %arg4[%c0_3, %c0_4] : memref<8x32xf32, #tpu.memory_space<vmem>>, vector<8x32xf32>
    %c0_5 = arith.constant 0 : index
    %c0_6 = arith.constant 0 : index
    %4 = vector.load %arg14[%c0_5, %c0_6] : memref<16x32xf32, #tpu.memory_space<vmem>>, vector<8x32xf32>
    tpu.vector_store %arg14[%c0_5, %c0_6], %3 {strides = array<i32>} : memref<16x32xf32, #tpu.memory_space<vmem>>, vector<8x32xf32>,
    %c8 = arith.constant 8 : index
    %c0_7 = arith.constant 0 : index
    %5 = vector.load %arg14[%c8, %c0_7] : memref<16x32xf32, #tpu.memory_space<vmem>>, vector<8x32xf32>
    tpu.vector_store %arg14[%c8, %c0_7], %3 {strides = array<i32>} : memref<16x32xf32, #tpu.memory_space<vmem>>, vector<8x32xf32>,
    %c1 = arith.constant 1 : index
    %c0_8 = arith.constant 0 : index
    %6 = vector.load %arg14[%c1, %c0_8] : memref<16x32xf32, #tpu.memory_space<vmem>>, vector<4x32xf32>
    %7 = vector.extract_strided_slice %2 {offsets = [0, 0], sizes = [4, 32], strides = [1, 1]} : vector<8x32xf32> to vector<4x32xf32>
    %8 = arith.addf %6, %7 : vector<4x32xf32>
    %c1_9 = arith.constant 1 : index
    %c0_10 = arith.constant 0 : index
    %9 = vector.load %arg14[%c1_9, %c0_10] : memref<16x32xf32, #tpu.memory_space<vmem>>, vector<4x32xf32>
    tpu.vector_store %arg14[%c1_9, %c0_10], %8 {strides = array<i32>} : memref<16x32xf32, #tpu.memory_space<vmem>>, vector<4x32xf32>,
    %c9 = arith.constant 9 : index
    %c0_11 = arith.constant 0 : index
    %10 = vector.load %arg14[%c9, %c0_11] : memref<16x32xf32, #tpu.memory_space<vmem>>, vector<4x32xf32>
    %11 = vector.extract_strided_slice %2 {offsets = [4, 0], sizes = [4, 32], strides = [1, 1]} : vector<8x32xf32> to vector<4x32xf32>
    %12 = arith.addf %10, %11 : vector<4x32xf32>
    %c9_12 = arith.constant 9 : index
    %c0_13 = arith.constant 0 : index
    %13 = vector.load %arg14[%c9_12, %c0_13] : memref<16x32xf32, #tpu.memory_space<vmem>>, vector<4x32xf32>
    tpu.vector_store %arg14[%c9_12, %c0_13], %12 {strides = array<i32>} : memref<16x32xf32, #tpu.memory_space<vmem>>, vector<4x32xf32>,
    %c0_14 = arith.constant 0 : index
    %c0_15 = arith.constant 0 : index
    %14 = vector.load %arg14[%c0_14, %c0_15] : memref<16x32xf32, #tpu.memory_space<vmem>>, vector<16x32xf32>
    %15 = tpu.iota {dimensions = array<i32: 2>} : vector<2x8x8xi32>
    %c5_i32 = arith.constant 5 : i32
    %16 = vector.broadcast %c5_i32 : i32 to vector<2x8x8xi32>
    %17 = arith.cmpi slt, %15, %16 : vector<2x8x8xi32>
    %cst_16 = arith.constant 0.000000e+00 : f32
    %cst_17 = arith.constant -1.000000e+30 : f32
    %18 = vector.broadcast %cst_16 : f32 to vector<2x8x8xf32>
    %19 = vector.broadcast %cst_17 : f32 to vector<2x8x8xf32>
    %20 = arith.select %17, %18, %19 : vector<2x8x8xi1>, vector<2x8x8xf32>
    %c0_18 = arith.constant 0 : index
    %c0_19 = arith.constant 0 : index
    %21 = vector.load %arg5[%c0_18, %c0_19] : memref<10x32xf32, #tpu.memory_space<vmem>>, vector<1x32xf32>
    %c1_20 = arith.constant 1 : index
    %c0_21 = arith.constant 0 : index
    %22 = vector.load %arg5[%c1_20, %c0_21] : memref<10x32xf32, #tpu.memory_space<vmem>>, vector<1x32xf32>
    %c2 = arith.constant 2 : index
    %c0_22 = arith.constant 0 : index
    %23 = vector.load %arg5[%c2, %c0_22] : memref<10x32xf32, #tpu.memory_space<vmem>>, vector<1x32xf32>
    %c3 = arith.constant 3 : index
    %c0_23 = arith.constant 0 : index
    %24 = vector.load %arg5[%c3, %c0_23] : memref<10x32xf32, #tpu.memory_space<vmem>>, vector<1x32xf32>
    %c0_24 = arith.constant 0 : index
    %c0_25 = arith.constant 0 : index
    %c0_26 = arith.constant 0 : index
    %25 = vector.load %arg6[%c0_24, %c0_25, %c0_26] : memref<2x4x96xf32, #tpu.memory_space<vmem>>, vector<1x1x96xf32>
    %26 = vector.shape_cast %25 : vector<1x1x96xf32> to vector<1x96xf32>
    %c0_27 = arith.constant 0 : index
    %c1_28 = arith.constant 1 : index
    %c0_29 = arith.constant 0 : index
    %27 = vector.load %arg6[%c0_27, %c1_28, %c0_29] : memref<2x4x96xf32, #tpu.memory_space<vmem>>, vector<1x1x32xf32>
    %28 = vector.shape_cast %27 : vector<1x1x32xf32> to vector<1x32xf32>
    %c0_30 = arith.constant 0 : index
    %c2_31 = arith.constant 2 : index
    %c0_32 = arith.constant 0 : index
    %29 = vector.load %arg6[%c0_30, %c2_31, %c0_32] : memref<2x4x96xf32, #tpu.memory_space<vmem>>, vector<1x1x64xf32>
    %30 = vector.shape_cast %29 : vector<1x1x64xf32> to vector<1x64xf32>
    %c0_33 = arith.constant 0 : index
    %c3_34 = arith.constant 3 : index
    %c0_35 = arith.constant 0 : index
    %31 = vector.load %arg6[%c0_33, %c3_34, %c0_35] : memref<2x4x96xf32, #tpu.memory_space<vmem>>, vector<1x1x32xf32>
    %32 = vector.shape_cast %31 : vector<1x1x32xf32> to vector<1x32xf32>
    %cst_36 = arith.constant dense<0.000000e+00> : vector<16xf32>
    %33 = vector.multi_reduction <add>, %14, %cst_36 [1] : vector<16x32xf32> to vector<16xf32>
    %34 = vector.shape_cast %33 : vector<16xf32> to vector<16x1xf32>
    %cst_37 = arith.constant 3.200000e+01 : f32
    %35 = vector.broadcast %cst_37 : f32 to vector<16x1xf32>
    %36 = arith.divf %34, %35 : vector<16x1xf32>
    %37 = vector.broadcast %36 : vector<16x1xf32> to vector<16x32xf32>
    %38 = arith.subf %14, %37 : vector<16x32xf32>
    %39 = arith.mulf %38, %38 : vector<16x32xf32>
    %cst_38 = arith.constant dense<0.000000e+00> : vector<16xf32>
    %40 = vector.multi_reduction <add>, %39, %cst_38 [1] : vector<16x32xf32> to vector<16xf32>
    %41 = vector.shape_cast %40 : vector<16xf32> to vector<16x1xf32>
    %cst_39 = arith.constant 3.200000e+01 : f32
    %42 = vector.broadcast %cst_39 : f32 to vector<16x1xf32>
    %43 = arith.divf %41, %42 : vector<16x1xf32>
    %cst_40 = arith.constant 9.99999997E-7 : f32
    %44 = vector.broadcast %cst_40 : f32 to vector<16x1xf32>
    %45 = arith.addf %43, %44 : vector<16x1xf32>
    %46 = math.rsqrt %45 : vector<16x1xf32>
    %47 = vector.broadcast %46 : vector<16x1xf32> to vector<16x32xf32>
    %48 = arith.mulf %38, %47 : vector<16x32xf32>
    %49 = vector.broadcast %21 : vector<1x32xf32> to vector<16x32xf32>
    %50 = arith.mulf %48, %49 : vector<16x32xf32>
    %51 = vector.broadcast %22 : vector<1x32xf32> to vector<16x32xf32>
    %52 = arith.addf %50, %51 : vector<16x32xf32>
    %c0_41 = arith.constant 0 : index
    %c0_42 = arith.constant 0 : index
    %c0_43 = arith.constant 0 : index
    %53 = vector.load %arg7[%c0_41, %c0_42, %c0_43] : memref<2x32x96xf32, #tpu.memory_space<vmem>>, vector<1x32x96xf32>
    %54 = vector.shape_cast %53 : vector<1x32x96xf32> to vector<32x96xf32>
    %cst_44 = arith.constant dense<0.000000e+00> : vector<16x96xf32>
    %55 = tpu.matmul %52, %54, %cst_44 {dimension_numbers = #tpu.dot_dimension_numbers<[1], [0], [0], [1], [0, 0, 1, 1], [], []>} : vector<16x32xf32>, vector<32x96xf32>, vector<16x96xf32> -> vector<16x96xf32>
    %56 = vector.broadcast %26 : vector<1x96xf32> to vector<16x96xf32>
    %57 = arith.addf %55, %56 : vector<16x96xf32>
    %58 = vector.extract_strided_slice %57 {offsets = [0, 0], sizes = [16, 8], strides = [1, 1]} : vector<16x96xf32> to vector<16x8xf32>
    %59 = vector.shape_cast %58 : vector<16x8xf32> to vector<2x8x8xf32>
    %60 = vector.extract_strided_slice %57 {offsets = [0, 32], sizes = [16, 8], strides = [1, 1]} : vector<16x96xf32> to vector<16x8xf32>
    %61 = vector.shape_cast %60 : vector<16x8xf32> to vector<2x8x8xf32>
    %62 = vector.extract_strided_slice %57 {offsets = [0, 64], sizes = [16, 8], strides = [1, 1]} : vector<16x96xf32> to vector<16x8xf32>
    %63 = vector.shape_cast %62 : vector<16x8xf32> to vector<2x8x8xf32>
    "tpu.trace_start"() <{level = 10 : i32, message = "bqd,bkd->bqk"}> : () -> ()
    %cst_45 = arith.constant dense<0.000000e+00> : vector<2x8x8xf32>
    %64 = tpu.matmul %59, %61, %cst_45 {dimension_numbers = #tpu.dot_dimension_numbers<[2], [2], [1], [1], [0, 0, 0, 1, 1, 1], [0], [0]>} : vector<2x8x8xf32>, vector<2x8x8xf32>, vector<2x8x8xf32> -> vector<2x8x8xf32>
    "tpu.trace_stop"() : () -> ()
    %cst_46 = arith.constant 0.353553385 : f32
    %65 = vector.broadcast %cst_46 : f32 to vector<2x8x8xf32>
    %66 = arith.mulf %64, %65 : vector<2x8x8xf32>
    %67 = arith.addf %66, %20 : vector<2x8x8xf32>
    %cst_47 = arith.constant dense<0xFF800000> : vector<2x8xf32>
    %68 = vector.multi_reduction <maximumf>, %67, %cst_47 [2] : vector<2x8x8xf32> to vector<2x8xf32>
    %69 = vector.shape_cast %68 : vector<2x8xf32> to vector<2x8x1xf32>
    %70 = vector.broadcast %69 : vector<2x8x1xf32> to vector<2x8x8xf32>
    %71 = arith.subf %67, %70 : vector<2x8x8xf32>
    %72 = math.exp %71 : vector<2x8x8xf32>
    %cst_48 = arith.constant dense<0.000000e+00> : vector<2x8xf32>
    %73 = vector.multi_reduction <add>, %72, %cst_48 [2] : vector<2x8x8xf32> to vector<2x8xf32>
    %74 = vector.shape_cast %73 : vector<2x8xf32> to vector<2x8x1xf32>
    %75 = vector.broadcast %74 : vector<2x8x1xf32> to vector<2x8x8xf32>
    %76 = arith.divf %72, %75 : vector<2x8x8xf32>
    "tpu.trace_start"() <{level = 10 : i32, message = "bqk,bkd->bqd"}> : () -> ()
    %cst_49 = arith.constant dense<0.000000e+00> : vector<2x8x8xf32>
    %77 = tpu.matmul %76, %63, %cst_49 {dimension_numbers = #tpu.dot_dimension_numbers<[2], [1], [1], [2], [0, 0, 0, 1, 1, 2], [0], [0]>} : vector<2x8x8xf32>, vector<2x8x8xf32>, vector<2x8x8xf32> -> vector<2x8x8xf32>
    "tpu.trace_stop"() : () -> ()
    %78 = vector.shape_cast %77 : vector<2x8x8xf32> to vector<16x8xf32>
    %c0_50 = arith.constant 0 : index
    %c0_51 = arith.constant 0 : index
    %79 = vector.load %arg14[%c0_50, %c0_51] : memref<16x32xf32, #tpu.memory_space<vmem>>, vector<16x8xf32>
    tpu.vector_store %arg14[%c0_50, %c0_51], %78 {strides = array<i32>} : memref<16x32xf32, #tpu.memory_space<vmem>>, vector<16x8xf32>,
    %80 = vector.extract_strided_slice %57 {offsets = [0, 8], sizes = [16, 8], strides = [1, 1]} : vector<16x96xf32> to vector<16x8xf32>
    %81 = vector.shape_cast %80 : vector<16x8xf32> to vector<2x8x8xf32>
    %82 = vector.extract_strided_slice %57 {offsets = [0, 40], sizes = [16, 8], strides = [1, 1]} : vector<16x96xf32> to vector<16x8xf32>
    %83 = vector.shape_cast %82 : vector<16x8xf32> to vector<2x8x8xf32>
    %84 = vector.extract_strided_slice %57 {offsets = [0, 72], sizes = [16, 8], strides = [1, 1]} : vector<16x96xf32> to vector<16x8xf32>
    %85 = vector.shape_cast %84 : vector<16x8xf32> to vector<2x8x8xf32>
    "tpu.trace_start"() <{level = 10 : i32, message = "bqd,bkd->bqk"}> : () -> ()
    %cst_52 = arith.constant dense<0.000000e+00> : vector<2x8x8xf32>
    %86 = tpu.matmul %81, %83, %cst_52 {dimension_numbers = #tpu.dot_dimension_numbers<[2], [2], [1], [1], [0, 0, 0, 1, 1, 1], [0], [0]>} : vector<2x8x8xf32>, vector<2x8x8xf32>, vector<2x8x8xf32> -> vector<2x8x8xf32>
    "tpu.trace_stop"() : () -> ()
    %cst_53 = arith.constant 0.353553385 : f32
    %87 = vector.broadcast %cst_53 : f32 to vector<2x8x8xf32>
    %88 = arith.mulf %86, %87 : vector<2x8x8xf32>
    %89 = arith.addf %88, %20 : vector<2x8x8xf32>
    %cst_54 = arith.constant dense<0xFF800000> : vector<2x8xf32>
    %90 = vector.multi_reduction <maximumf>, %89, %cst_54 [2] : vector<2x8x8xf32> to vector<2x8xf32>
    %91 = vector.shape_cast %90 : vector<2x8xf32> to vector<2x8x1xf32>
    %92 = vector.broadcast %91 : vector<2x8x1xf32> to vector<2x8x8xf32>
    %93 = arith.subf %89, %92 : vector<2x8x8xf32>
    %94 = math.exp %93 : vector<2x8x8xf32>
    %cst_55 = arith.constant dense<0.000000e+00> : vector<2x8xf32>
    %95 = vector.multi_reduction <add>, %94, %cst_55 [2] : vector<2x8x8xf32> to vector<2x8xf32>
    %96 = vector.shape_cast %95 : vector<2x8xf32> to vector<2x8x1xf32>
    %97 = vector.broadcast %96 : vector<2x8x1xf32> to vector<2x8x8xf32>
    %98 = arith.divf %94, %97 : vector<2x8x8xf32>
    "tpu.trace_start"() <{level = 10 : i32, message = "bqk,bkd->bqd"}> : () -> ()
    %cst_56 = arith.constant dense<0.000000e+00> : vector<2x8x8xf32>
    %99 = tpu.matmul %98, %85, %cst_56 {dimension_numbers = #tpu.dot_dimension_numbers<[2], [1], [1], [2], [0, 0, 0, 1, 1, 2], [0], [0]>} : vector<2x8x8xf32>, vector<2x8x8xf32>, vector<2x8x8xf32> -> vector<2x8x8xf32>
    "tpu.trace_stop"() : () -> ()
    %100 = vector.shape_cast %99 : vector<2x8x8xf32> to vector<16x8xf32>
    %c0_57 = arith.constant 0 : index
    %c8_58 = arith.constant 8 : index
    %101 = vector.load %arg14[%c0_57, %c8_58] : memref<16x32xf32, #tpu.memory_space<vmem>>, vector<16x8xf32>
    tpu.vector_store %arg14[%c0_57, %c8_58], %100 {strides = array<i32>} : memref<16x32xf32, #tpu.memory_space<vmem>>, vector<16x8xf32>,
    %102 = vector.extract_strided_slice %57 {offsets = [0, 16], sizes = [16, 8], strides = [1, 1]} : vector<16x96xf32> to vector<16x8xf32>
    %103 = vector.shape_cast %102 : vector<16x8xf32> to vector<2x8x8xf32>
    %104 = vector.extract_strided_slice %57 {offsets = [0, 48], sizes = [16, 8], strides = [1, 1]} : vector<16x96xf32> to vector<16x8xf32>
    %105 = vector.shape_cast %104 : vector<16x8xf32> to vector<2x8x8xf32>
    %106 = vector.extract_strided_slice %57 {offsets = [0, 80], sizes = [16, 8], strides = [1, 1]} : vector<16x96xf32> to vector<16x8xf32>
    %107 = vector.shape_cast %106 : vector<16x8xf32> to vector<2x8x8xf32>
    "tpu.trace_start"() <{level = 10 : i32, message = "bqd,bkd->bqk"}> : () -> ()
    %cst_59 = arith.constant dense<0.000000e+00> : vector<2x8x8xf32>
    %108 = tpu.matmul %103, %105, %cst_59 {dimension_numbers = #tpu.dot_dimension_numbers<[2], [2], [1], [1], [0, 0, 0, 1, 1, 1], [0], [0]>} : vector<2x8x8xf32>, vector<2x8x8xf32>, vector<2x8x8xf32> -> vector<2x8x8xf32>
    "tpu.trace_stop"() : () -> ()
    %cst_60 = arith.constant 0.353553385 : f32
    %109 = vector.broadcast %cst_60 : f32 to vector<2x8x8xf32>
    %110 = arith.mulf %108, %109 : vector<2x8x8xf32>
    %111 = arith.addf %110, %20 : vector<2x8x8xf32>
    %cst_61 = arith.constant dense<0xFF800000> : vector<2x8xf32>
    %112 = vector.multi_reduction <maximumf>, %111, %cst_61 [2] : vector<2x8x8xf32> to vector<2x8xf32>
    %113 = vector.shape_cast %112 : vector<2x8xf32> to vector<2x8x1xf32>
    %114 = vector.broadcast %113 : vector<2x8x1xf32> to vector<2x8x8xf32>
    %115 = arith.subf %111, %114 : vector<2x8x8xf32>
    %116 = math.exp %115 : vector<2x8x8xf32>
    %cst_62 = arith.constant dense<0.000000e+00> : vector<2x8xf32>
    %117 = vector.multi_reduction <add>, %116, %cst_62 [2] : vector<2x8x8xf32> to vector<2x8xf32>
    %118 = vector.shape_cast %117 : vector<2x8xf32> to vector<2x8x1xf32>
    %119 = vector.broadcast %118 : vector<2x8x1xf32> to vector<2x8x8xf32>
    %120 = arith.divf %116, %119 : vector<2x8x8xf32>
    "tpu.trace_start"() <{level = 10 : i32, message = "bqk,bkd->bqd"}> : () -> ()
    %cst_63 = arith.constant dense<0.000000e+00> : vector<2x8x8xf32>
    %121 = tpu.matmul %120, %107, %cst_63 {dimension_numbers = #tpu.dot_dimension_numbers<[2], [1], [1], [2], [0, 0, 0, 1, 1, 2], [0], [0]>} : vector<2x8x8xf32>, vector<2x8x8xf32>, vector<2x8x8xf32> -> vector<2x8x8xf32>
    "tpu.trace_stop"() : () -> ()
    %122 = vector.shape_cast %121 : vector<2x8x8xf32> to vector<16x8xf32>
    %c0_64 = arith.constant 0 : index
    %c16 = arith.constant 16 : index
    %123 = vector.load %arg14[%c0_64, %c16] : memref<16x32xf32, #tpu.memory_space<vmem>>, vector<16x8xf32>
    tpu.vector_store %arg14[%c0_64, %c16], %122 {strides = array<i32>} : memref<16x32xf32, #tpu.memory_space<vmem>>, vector<16x8xf32>,
    %124 = vector.extract_strided_slice %57 {offsets = [0, 24], sizes = [16, 8], strides = [1, 1]} : vector<16x96xf32> to vector<16x8xf32>
    %125 = vector.shape_cast %124 : vector<16x8xf32> to vector<2x8x8xf32>
    %126 = vector.extract_strided_slice %57 {offsets = [0, 56], sizes = [16, 8], strides = [1, 1]} : vector<16x96xf32> to vector<16x8xf32>
    %127 = vector.shape_cast %126 : vector<16x8xf32> to vector<2x8x8xf32>
    %128 = vector.extract_strided_slice %57 {offsets = [0, 88], sizes = [16, 8], strides = [1, 1]} : vector<16x96xf32> to vector<16x8xf32>
    %129 = vector.shape_cast %128 : vector<16x8xf32> to vector<2x8x8xf32>
    "tpu.trace_start"() <{level = 10 : i32, message = "bqd,bkd->bqk"}> : () -> ()
    %cst_65 = arith.constant dense<0.000000e+00> : vector<2x8x8xf32>
    %130 = tpu.matmul %125, %127, %cst_65 {dimension_numbers = #tpu.dot_dimension_numbers<[2], [2], [1], [1], [0, 0, 0, 1, 1, 1], [0], [0]>} : vector<2x8x8xf32>, vector<2x8x8xf32>, vector<2x8x8xf32> -> vector<2x8x8xf32>
    "tpu.trace_stop"() : () -> ()
    %cst_66 = arith.constant 0.353553385 : f32
    %131 = vector.broadcast %cst_66 : f32 to vector<2x8x8xf32>
    %132 = arith.mulf %130, %131 : vector<2x8x8xf32>
    %133 = arith.addf %132, %20 : vector<2x8x8xf32>
    %cst_67 = arith.constant dense<0xFF800000> : vector<2x8xf32>
    %134 = vector.multi_reduction <maximumf>, %133, %cst_67 [2] : vector<2x8x8xf32> to vector<2x8xf32>
    %135 = vector.shape_cast %134 : vector<2x8xf32> to vector<2x8x1xf32>
    %136 = vector.broadcast %135 : vector<2x8x1xf32> to vector<2x8x8xf32>
    %137 = arith.subf %133, %136 : vector<2x8x8xf32>
    %138 = math.exp %137 : vector<2x8x8xf32>
    %cst_68 = arith.constant dense<0.000000e+00> : vector<2x8xf32>
    %139 = vector.multi_reduction <add>, %138, %cst_68 [2] : vector<2x8x8xf32> to vector<2x8xf32>
    %140 = vector.shape_cast %139 : vector<2x8xf32> to vector<2x8x1xf32>
    %141 = vector.broadcast %140 : vector<2x8x1xf32> to vector<2x8x8xf32>
    %142 = arith.divf %138, %141 : vector<2x8x8xf32>
    "tpu.trace_start"() <{level = 10 : i32, message = "bqk,bkd->bqd"}> : () -> ()
    %cst_69 = arith.constant dense<0.000000e+00> : vector<2x8x8xf32>
    %143 = tpu.matmul %142, %129, %cst_69 {dimension_numbers = #tpu.dot_dimension_numbers<[2], [1], [1], [2], [0, 0, 0, 1, 1, 2], [0], [0]>} : vector<2x8x8xf32>, vector<2x8x8xf32>, vector<2x8x8xf32> -> vector<2x8x8xf32>
    "tpu.trace_stop"() : () -> ()
    %144 = vector.shape_cast %143 : vector<2x8x8xf32> to vector<16x8xf32>
    %c0_70 = arith.constant 0 : index
    %c24 = arith.constant 24 : index
    %145 = vector.load %arg14[%c0_70, %c24] : memref<16x32xf32, #tpu.memory_space<vmem>>, vector<16x8xf32>
    tpu.vector_store %arg14[%c0_70, %c24], %144 {strides = array<i32>} : memref<16x32xf32, #tpu.memory_space<vmem>>, vector<16x8xf32>,
    %c0_71 = arith.constant 0 : index
    %c0_72 = arith.constant 0 : index
    %146 = vector.load %arg14[%c0_71, %c0_72] : memref<16x32xf32, #tpu.memory_space<vmem>>, vector<16x32xf32>
    %c0_73 = arith.constant 0 : index
    %c0_74 = arith.constant 0 : index
    %c0_75 = arith.constant 0 : index
    %147 = vector.load %arg8[%c0_73, %c0_74, %c0_75] : memref<2x32x32xf32, #tpu.memory_space<vmem>>, vector<1x32x32xf32>
    %148 = vector.shape_cast %147 : vector<1x32x32xf32> to vector<32x32xf32>
    %cst_76 = arith.constant dense<0.000000e+00> : vector<16x32xf32>
    %149 = tpu.matmul %146, %148, %cst_76 {dimension_numbers = #tpu.dot_dimension_numbers<[1], [0], [0], [1], [0, 0, 1, 1], [], []>} : vector<16x32xf32>, vector<32x32xf32>, vector<16x32xf32> -> vector<16x32xf32>
    %150 = arith.addf %14, %149 : vector<16x32xf32>
    %151 = vector.broadcast %28 : vector<1x32xf32> to vector<16x32xf32>
    %152 = arith.addf %150, %151 : vector<16x32xf32>
    %cst_77 = arith.constant dense<0.000000e+00> : vector<16xf32>
    %153 = vector.multi_reduction <add>, %152, %cst_77 [1] : vector<16x32xf32> to vector<16xf32>
    %154 = vector.shape_cast %153 : vector<16xf32> to vector<16x1xf32>
    %cst_78 = arith.constant 3.200000e+01 : f32
    %155 = vector.broadcast %cst_78 : f32 to vector<16x1xf32>
    %156 = arith.divf %154, %155 : vector<16x1xf32>
    %157 = vector.broadcast %156 : vector<16x1xf32> to vector<16x32xf32>
    %158 = arith.subf %152, %157 : vector<16x32xf32>
    %159 = arith.mulf %158, %158 : vector<16x32xf32>
    %cst_79 = arith.constant dense<0.000000e+00> : vector<16xf32>
    %160 = vector.multi_reduction <add>, %159, %cst_79 [1] : vector<16x32xf32> to vector<16xf32>
    %161 = vector.shape_cast %160 : vector<16xf32> to vector<16x1xf32>
    %cst_80 = arith.constant 3.200000e+01 : f32
    %162 = vector.broadcast %cst_80 : f32 to vector<16x1xf32>
    %163 = arith.divf %161, %162 : vector<16x1xf32>
    %cst_81 = arith.constant 9.99999997E-7 : f32
    %164 = vector.broadcast %cst_81 : f32 to vector<16x1xf32>
    %165 = arith.addf %163, %164 : vector<16x1xf32>
    %166 = math.rsqrt %165 : vector<16x1xf32>
    %167 = vector.broadcast %166 : vector<16x1xf32> to vector<16x32xf32>
    %168 = arith.mulf %158, %167 : vector<16x32xf32>
    %169 = vector.broadcast %23 : vector<1x32xf32> to vector<16x32xf32>
    %170 = arith.mulf %168, %169 : vector<16x32xf32>
    %171 = vector.broadcast %24 : vector<1x32xf32> to vector<16x32xf32>
    %172 = arith.addf %170, %171 : vector<16x32xf32>
    %c0_82 = arith.constant 0 : index
    %c0_83 = arith.constant 0 : index
    %c0_84 = arith.constant 0 : index
    %173 = vector.load %arg9[%c0_82, %c0_83, %c0_84] : memref<2x32x64xf32, #tpu.memory_space<vmem>>, vector<1x32x64xf32>
    %174 = vector.shape_cast %173 : vector<1x32x64xf32> to vector<32x64xf32>
    %cst_85 = arith.constant dense<0.000000e+00> : vector<16x64xf32>
    %175 = tpu.matmul %172, %174, %cst_85 {dimension_numbers = #tpu.dot_dimension_numbers<[1], [0], [0], [1], [0, 0, 1, 1], [], []>} : vector<16x32xf32>, vector<32x64xf32>, vector<16x64xf32> -> vector<16x64xf32>
    %176 = vector.broadcast %30 : vector<1x64xf32> to vector<16x64xf32>
    %177 = arith.addf %175, %176 : vector<16x64xf32>
    %178 = arith.mulf %177, %177 : vector<16x64xf32>
    %179 = arith.mulf %177, %178 : vector<16x64xf32>
    %cst_86 = arith.constant 4.471500e-02 : f32
    %180 = vector.broadcast %cst_86 : f32 to vector<16x64xf32>
    %181 = arith.mulf %180, %179 : vector<16x64xf32>
    %182 = arith.addf %177, %181 : vector<16x64xf32>
    %cst_87 = arith.constant 0.797884583 : f32
    %183 = vector.broadcast %cst_87 : f32 to vector<16x64xf32>
    %184 = arith.mulf %183, %182 : vector<16x64xf32>
    %185 = math.tanh %184 : vector<16x64xf32>
    %cst_88 = arith.constant 1.000000e+00 : f32
    %186 = vector.broadcast %cst_88 : f32 to vector<16x64xf32>
    %187 = arith.addf %186, %185 : vector<16x64xf32>
    %cst_89 = arith.constant 5.000000e-01 : f32
    %188 = vector.broadcast %cst_89 : f32 to vector<16x64xf32>
    %189 = arith.mulf %188, %187 : vector<16x64xf32>
    %190 = arith.mulf %177, %189 : vector<16x64xf32>
    %c0_90 = arith.constant 0 : index
    %c0_91 = arith.constant 0 : index
    %c0_92 = arith.constant 0 : index
    %191 = vector.load %arg10[%c0_90, %c0_91, %c0_92] : memref<2x64x32xf32, #tpu.memory_space<vmem>>, vector<1x64x32xf32>
    %192 = vector.shape_cast %191 : vector<1x64x32xf32> to vector<64x32xf32>
    %cst_93 = arith.constant dense<0.000000e+00> : vector<16x32xf32>
    %193 = tpu.matmul %190, %192, %cst_93 {dimension_numbers = #tpu.dot_dimension_numbers<[1], [0], [0], [1], [0, 0, 1, 1], [], []>} : vector<16x64xf32>, vector<64x32xf32>, vector<16x32xf32> -> vector<16x32xf32>
    %194 = arith.addf %152, %193 : vector<16x32xf32>
    %195 = vector.broadcast %32 : vector<1x32xf32> to vector<16x32xf32>
    %196 = arith.addf %194, %195 : vector<16x32xf32>
    %c4 = arith.constant 4 : index
    %c0_94 = arith.constant 0 : index
    %197 = vector.load %arg5[%c4, %c0_94] : memref<10x32xf32, #tpu.memory_space<vmem>>, vector<1x32xf32>
    %c5 = arith.constant 5 : index
    %c0_95 = arith.constant 0 : index
    %198 = vector.load %arg5[%c5, %c0_95] : memref<10x32xf32, #tpu.memory_space<vmem>>, vector<1x32xf32>
    %c6 = arith.constant 6 : index
    %c0_96 = arith.constant 0 : index
    %199 = vector.load %arg5[%c6, %c0_96] : memref<10x32xf32, #tpu.memory_space<vmem>>, vector<1x32xf32>
    %c7 = arith.constant 7 : index
    %c0_97 = arith.constant 0 : index
    %200 = vector.load %arg5[%c7, %c0_97] : memref<10x32xf32, #tpu.memory_space<vmem>>, vector<1x32xf32>
    %c1_98 = arith.constant 1 : index
    %c0_99 = arith.constant 0 : index
    %c0_100 = arith.constant 0 : index
    %201 = vector.load %arg6[%c1_98, %c0_99, %c0_100] : memref<2x4x96xf32, #tpu.memory_space<vmem>>, vector<1x1x96xf32>
    %202 = vector.shape_cast %201 : vector<1x1x96xf32> to vector<1x96xf32>
    %c1_101 = arith.constant 1 : index
    %c1_102 = arith.constant 1 : index
    %c0_103 = arith.constant 0 : index
    %203 = vector.load %arg6[%c1_101, %c1_102, %c0_103] : memref<2x4x96xf32, #tpu.memory_space<vmem>>, vector<1x1x32xf32>
    %204 = vector.shape_cast %203 : vector<1x1x32xf32> to vector<1x32xf32>
    %c1_104 = arith.constant 1 : index
    %c2_105 = arith.constant 2 : index
    %c0_106 = arith.constant 0 : index
    %205 = vector.load %arg6[%c1_104, %c2_105, %c0_106] : memref<2x4x96xf32, #tpu.memory_space<vmem>>, vector<1x1x64xf32>
    %206 = vector.shape_cast %205 : vector<1x1x64xf32> to vector<1x64xf32>
    %c1_107 = arith.constant 1 : index
    %c3_108 = arith.constant 3 : index
    %c0_109 = arith.constant 0 : index
    %207 = vector.load %arg6[%c1_107, %c3_108, %c0_109] : memref<2x4x96xf32, #tpu.memory_space<vmem>>, vector<1x1x32xf32>
    %208 = vector.shape_cast %207 : vector<1x1x32xf32> to vector<1x32xf32>
    %cst_110 = arith.constant dense<0.000000e+00> : vector<16xf32>
    %209 = vector.multi_reduction <add>, %196, %cst_110 [1] : vector<16x32xf32> to vector<16xf32>
    %210 = vector.shape_cast %209 : vector<16xf32> to vector<16x1xf32>
    %cst_111 = arith.constant 3.200000e+01 : f32
    %211 = vector.broadcast %cst_111 : f32 to vector<16x1xf32>
    %212 = arith.divf %210, %211 : vector<16x1xf32>
    %213 = vector.broadcast %212 : vector<16x1xf32> to vector<16x32xf32>
    %214 = arith.subf %196, %213 : vector<16x32xf32>
    %215 = arith.mulf %214, %214 : vector<16x32xf32>
    %cst_112 = arith.constant dense<0.000000e+00> : vector<16xf32>
    %216 = vector.multi_reduction <add>, %215, %cst_112 [1] : vector<16x32xf32> to vector<16xf32>
    %217 = vector.shape_cast %216 : vector<16xf32> to vector<16x1xf32>
    %cst_113 = arith.constant 3.200000e+01 : f32
    %218 = vector.broadcast %cst_113 : f32 to vector<16x1xf32>
    %219 = arith.divf %217, %218 : vector<16x1xf32>
    %cst_114 = arith.constant 9.99999997E-7 : f32
    %220 = vector.broadcast %cst_114 : f32 to vector<16x1xf32>
    %221 = arith.addf %219, %220 : vector<16x1xf32>
    %222 = math.rsqrt %221 : vector<16x1xf32>
    %223 = vector.broadcast %222 : vector<16x1xf32> to vector<16x32xf32>
    %224 = arith.mulf %214, %223 : vector<16x32xf32>
    %225 = vector.broadcast %197 : vector<1x32xf32> to vector<16x32xf32>
    %226 = arith.mulf %224, %225 : vector<16x32xf32>
    %227 = vector.broadcast %198 : vector<1x32xf32> to vector<16x32xf32>
    %228 = arith.addf %226, %227 : vector<16x32xf32>
    %c1_115 = arith.constant 1 : index
    %c0_116 = arith.constant 0 : index
    %c0_117 = arith.constant 0 : index
    %229 = vector.load %arg7[%c1_115, %c0_116, %c0_117] : memref<2x32x96xf32, #tpu.memory_space<vmem>>, vector<1x32x96xf32>
    %230 = vector.shape_cast %229 : vector<1x32x96xf32> to vector<32x96xf32>
    %cst_118 = arith.constant dense<0.000000e+00> : vector<16x96xf32>
    %231 = tpu.matmul %228, %230, %cst_118 {dimension_numbers = #tpu.dot_dimension_numbers<[1], [0], [0], [1], [0, 0, 1, 1], [], []>} : vector<16x32xf32>, vector<32x96xf32>, vector<16x96xf32> -> vector<16x96xf32>
    %232 = vector.broadcast %202 : vector<1x96xf32> to vector<16x96xf32>
    %233 = arith.addf %231, %232 : vector<16x96xf32>
    %234 = vector.extract_strided_slice %233 {offsets = [0, 0], sizes = [16, 8], strides = [1, 1]} : vector<16x96xf32> to vector<16x8xf32>
    %235 = vector.shape_cast %234 : vector<16x8xf32> to vector<2x8x8xf32>
    %236 = vector.extract_strided_slice %233 {offsets = [0, 32], sizes = [16, 8], strides = [1, 1]} : vector<16x96xf32> to vector<16x8xf32>
    %237 = vector.shape_cast %236 : vector<16x8xf32> to vector<2x8x8xf32>
    %238 = vector.extract_strided_slice %233 {offsets = [0, 64], sizes = [16, 8], strides = [1, 1]} : vector<16x96xf32> to vector<16x8xf32>
    %239 = vector.shape_cast %238 : vector<16x8xf32> to vector<2x8x8xf32>
    "tpu.trace_start"() <{level = 10 : i32, message = "bqd,bkd->bqk"}> : () -> ()
    %cst_119 = arith.constant dense<0.000000e+00> : vector<2x8x8xf32>
    %240 = tpu.matmul %235, %237, %cst_119 {dimension_numbers = #tpu.dot_dimension_numbers<[2], [2], [1], [1], [0, 0, 0, 1, 1, 1], [0], [0]>} : vector<2x8x8xf32>, vector<2x8x8xf32>, vector<2x8x8xf32> -> vector<2x8x8xf32>
    "tpu.trace_stop"() : () -> ()
    %cst_120 = arith.constant 0.353553385 : f32
    %241 = vector.broadcast %cst_120 : f32 to vector<2x8x8xf32>
    %242 = arith.mulf %240, %241 : vector<2x8x8xf32>
    %243 = arith.addf %242, %20 : vector<2x8x8xf32>
    %cst_121 = arith.constant dense<0xFF800000> : vector<2x8xf32>
    %244 = vector.multi_reduction <maximumf>, %243, %cst_121 [2] : vector<2x8x8xf32> to vector<2x8xf32>
    %245 = vector.shape_cast %244 : vector<2x8xf32> to vector<2x8x1xf32>
    %246 = vector.broadcast %245 : vector<2x8x1xf32> to vector<2x8x8xf32>
    %247 = arith.subf %243, %246 : vector<2x8x8xf32>
    %248 = math.exp %247 : vector<2x8x8xf32>
    %cst_122 = arith.constant dense<0.000000e+00> : vector<2x8xf32>
    %249 = vector.multi_reduction <add>, %248, %cst_122 [2] : vector<2x8x8xf32> to vector<2x8xf32>
    %250 = vector.shape_cast %249 : vector<2x8xf32> to vector<2x8x1xf32>
    %251 = vector.broadcast %250 : vector<2x8x1xf32> to vector<2x8x8xf32>
    %252 = arith.divf %248, %251 : vector<2x8x8xf32>
    "tpu.trace_start"() <{level = 10 : i32, message = "bqk,bkd->bqd"}> : () -> ()
    %cst_123 = arith.constant dense<0.000000e+00> : vector<2x8x8xf32>
    %253 = tpu.matmul %252, %239, %cst_123 {dimension_numbers = #tpu.dot_dimension_numbers<[2], [1], [1], [2], [0, 0, 0, 1, 1, 2], [0], [0]>} : vector<2x8x8xf32>, vector<2x8x8xf32>, vector<2x8x8xf32> -> vector<2x8x8xf32>
    "tpu.trace_stop"() : () -> ()
    %254 = vector.shape_cast %253 : vector<2x8x8xf32> to vector<16x8xf32>
    %c0_124 = arith.constant 0 : index
    %c0_125 = arith.constant 0 : index
    %255 = vector.load %arg14[%c0_124, %c0_125] : memref<16x32xf32, #tpu.memory_space<vmem>>, vector<16x8xf32>
    tpu.vector_store %arg14[%c0_124, %c0_125], %254 {strides = array<i32>} : memref<16x32xf32, #tpu.memory_space<vmem>>, vector<16x8xf32>,
    %256 = vector.extract_strided_slice %233 {offsets = [0, 8], sizes = [16, 8], strides = [1, 1]} : vector<16x96xf32> to vector<16x8xf32>
    %257 = vector.shape_cast %256 : vector<16x8xf32> to vector<2x8x8xf32>
    %258 = vector.extract_strided_slice %233 {offsets = [0, 40], sizes = [16, 8], strides = [1, 1]} : vector<16x96xf32> to vector<16x8xf32>
    %259 = vector.shape_cast %258 : vector<16x8xf32> to vector<2x8x8xf32>
    %260 = vector.extract_strided_slice %233 {offsets = [0, 72], sizes = [16, 8], strides = [1, 1]} : vector<16x96xf32> to vector<16x8xf32>
    %261 = vector.shape_cast %260 : vector<16x8xf32> to vector<2x8x8xf32>
    "tpu.trace_start"() <{level = 10 : i32, message = "bqd,bkd->bqk"}> : () -> ()
    %cst_126 = arith.constant dense<0.000000e+00> : vector<2x8x8xf32>
    %262 = tpu.matmul %257, %259, %cst_126 {dimension_numbers = #tpu.dot_dimension_numbers<[2], [2], [1], [1], [0, 0, 0, 1, 1, 1], [0], [0]>} : vector<2x8x8xf32>, vector<2x8x8xf32>, vector<2x8x8xf32> -> vector<2x8x8xf32>
    "tpu.trace_stop"() : () -> ()
    %cst_127 = arith.constant 0.353553385 : f32
    %263 = vector.broadcast %cst_127 : f32 to vector<2x8x8xf32>
    %264 = arith.mulf %262, %263 : vector<2x8x8xf32>
    %265 = arith.addf %264, %20 : vector<2x8x8xf32>
    %cst_128 = arith.constant dense<0xFF800000> : vector<2x8xf32>
    %266 = vector.multi_reduction <maximumf>, %265, %cst_128 [2] : vector<2x8x8xf32> to vector<2x8xf32>
    %267 = vector.shape_cast %266 : vector<2x8xf32> to vector<2x8x1xf32>
    %268 = vector.broadcast %267 : vector<2x8x1xf32> to vector<2x8x8xf32>
    %269 = arith.subf %265, %268 : vector<2x8x8xf32>
    %270 = math.exp %269 : vector<2x8x8xf32>
    %cst_129 = arith.constant dense<0.000000e+00> : vector<2x8xf32>
    %271 = vector.multi_reduction <add>, %270, %cst_129 [2] : vector<2x8x8xf32> to vector<2x8xf32>
    %272 = vector.shape_cast %271 : vector<2x8xf32> to vector<2x8x1xf32>
    %273 = vector.broadcast %272 : vector<2x8x1xf32> to vector<2x8x8xf32>
    %274 = arith.divf %270, %273 : vector<2x8x8xf32>
    "tpu.trace_start"() <{level = 10 : i32, message = "bqk,bkd->bqd"}> : () -> ()
    %cst_130 = arith.constant dense<0.000000e+00> : vector<2x8x8xf32>
    %275 = tpu.matmul %274, %261, %cst_130 {dimension_numbers = #tpu.dot_dimension_numbers<[2], [1], [1], [2], [0, 0, 0, 1, 1, 2], [0], [0]>} : vector<2x8x8xf32>, vector<2x8x8xf32>, vector<2x8x8xf32> -> vector<2x8x8xf32>
    "tpu.trace_stop"() : () -> ()
    %276 = vector.shape_cast %275 : vector<2x8x8xf32> to vector<16x8xf32>
    %c0_131 = arith.constant 0 : index
    %c8_132 = arith.constant 8 : index
    %277 = vector.load %arg14[%c0_131, %c8_132] : memref<16x32xf32, #tpu.memory_space<vmem>>, vector<16x8xf32>
    tpu.vector_store %arg14[%c0_131, %c8_132], %276 {strides = array<i32>} : memref<16x32xf32, #tpu.memory_space<vmem>>, vector<16x8xf32>,
    %278 = vector.extract_strided_slice %233 {offsets = [0, 16], sizes = [16, 8], strides = [1, 1]} : vector<16x96xf32> to vector<16x8xf32>
    %279 = vector.shape_cast %278 : vector<16x8xf32> to vector<2x8x8xf32>
    %280 = vector.extract_strided_slice %233 {offsets = [0, 48], sizes = [16, 8], strides = [1, 1]} : vector<16x96xf32> to vector<16x8xf32>
    %281 = vector.shape_cast %280 : vector<16x8xf32> to vector<2x8x8xf32>
    %282 = vector.extract_strided_slice %233 {offsets = [0, 80], sizes = [16, 8], strides = [1, 1]} : vector<16x96xf32> to vector<16x8xf32>
    %283 = vector.shape_cast %282 : vector<16x8xf32> to vector<2x8x8xf32>
    "tpu.trace_start"() <{level = 10 : i32, message = "bqd,bkd->bqk"}> : () -> ()
    %cst_133 = arith.constant dense<0.000000e+00> : vector<2x8x8xf32>
    %284 = tpu.matmul %279, %281, %cst_133 {dimension_numbers = #tpu.dot_dimension_numbers<[2], [2], [1], [1], [0, 0, 0, 1, 1, 1], [0], [0]>} : vector<2x8x8xf32>, vector<2x8x8xf32>, vector<2x8x8xf32> -> vector<2x8x8xf32>
    "tpu.trace_stop"() : () -> ()
    %cst_134 = arith.constant 0.353553385 : f32
    %285 = vector.broadcast %cst_134 : f32 to vector<2x8x8xf32>
    %286 = arith.mulf %284, %285 : vector<2x8x8xf32>
    %287 = arith.addf %286, %20 : vector<2x8x8xf32>
    %cst_135 = arith.constant dense<0xFF800000> : vector<2x8xf32>
    %288 = vector.multi_reduction <maximumf>, %287, %cst_135 [2] : vector<2x8x8xf32> to vector<2x8xf32>
    %289 = vector.shape_cast %288 : vector<2x8xf32> to vector<2x8x1xf32>
    %290 = vector.broadcast %289 : vector<2x8x1xf32> to vector<2x8x8xf32>
    %291 = arith.subf %287, %290 : vector<2x8x8xf32>
    %292 = math.exp %291 : vector<2x8x8xf32>
    %cst_136 = arith.constant dense<0.000000e+00> : vector<2x8xf32>
    %293 = vector.multi_reduction <add>, %292, %cst_136 [2] : vector<2x8x8xf32> to vector<2x8xf32>
    %294 = vector.shape_cast %293 : vector<2x8xf32> to vector<2x8x1xf32>
    %295 = vector.broadcast %294 : vector<2x8x1xf32> to vector<2x8x8xf32>
    %296 = arith.divf %292, %295 : vector<2x8x8xf32>
    "tpu.trace_start"() <{level = 10 : i32, message = "bqk,bkd->bqd"}> : () -> ()
    %cst_137 = arith.constant dense<0.000000e+00> : vector<2x8x8xf32>
    %297 = tpu.matmul %296, %283, %cst_137 {dimension_numbers = #tpu.dot_dimension_numbers<[2], [1], [1], [2], [0, 0, 0, 1, 1, 2], [0], [0]>} : vector<2x8x8xf32>, vector<2x8x8xf32>, vector<2x8x8xf32> -> vector<2x8x8xf32>
    "tpu.trace_stop"() : () -> ()
    %298 = vector.shape_cast %297 : vector<2x8x8xf32> to vector<16x8xf32>
    %c0_138 = arith.constant 0 : index
    %c16_139 = arith.constant 16 : index
    %299 = vector.load %arg14[%c0_138, %c16_139] : memref<16x32xf32, #tpu.memory_space<vmem>>, vector<16x8xf32>
    tpu.vector_store %arg14[%c0_138, %c16_139], %298 {strides = array<i32>} : memref<16x32xf32, #tpu.memory_space<vmem>>, vector<16x8xf32>,
    %300 = vector.extract_strided_slice %233 {offsets = [0, 24], sizes = [16, 8], strides = [1, 1]} : vector<16x96xf32> to vector<16x8xf32>
    %301 = vector.shape_cast %300 : vector<16x8xf32> to vector<2x8x8xf32>
    %302 = vector.extract_strided_slice %233 {offsets = [0, 56], sizes = [16, 8], strides = [1, 1]} : vector<16x96xf32> to vector<16x8xf32>
    %303 = vector.shape_cast %302 : vector<16x8xf32> to vector<2x8x8xf32>
    %304 = vector.extract_strided_slice %233 {offsets = [0, 88], sizes = [16, 8], strides = [1, 1]} : vector<16x96xf32> to vector<16x8xf32>
    %305 = vector.shape_cast %304 : vector<16x8xf32> to vector<2x8x8xf32>
    "tpu.trace_start"() <{level = 10 : i32, message = "bqd,bkd->bqk"}> : () -> ()
    %cst_140 = arith.constant dense<0.000000e+00> : vector<2x8x8xf32>
    %306 = tpu.matmul %301, %303, %cst_140 {dimension_numbers = #tpu.dot_dimension_numbers<[2], [2], [1], [1], [0, 0, 0, 1, 1, 1], [0], [0]>} : vector<2x8x8xf32>, vector<2x8x8xf32>, vector<2x8x8xf32> -> vector<2x8x8xf32>
    "tpu.trace_stop"() : () -> ()
    %cst_141 = arith.constant 0.353553385 : f32
    %307 = vector.broadcast %cst_141 : f32 to vector<2x8x8xf32>
    %308 = arith.mulf %306, %307 : vector<2x8x8xf32>
    %309 = arith.addf %308, %20 : vector<2x8x8xf32>
    %cst_142 = arith.constant dense<0xFF800000> : vector<2x8xf32>
    %310 = vector.multi_reduction <maximumf>, %309, %cst_142 [2] : vector<2x8x8xf32> to vector<2x8xf32>
    %311 = vector.shape_cast %310 : vector<2x8xf32> to vector<2x8x1xf32>
    %312 = vector.broadcast %311 : vector<2x8x1xf32> to vector<2x8x8xf32>
    %313 = arith.subf %309, %312 : vector<2x8x8xf32>
    %314 = math.exp %313 : vector<2x8x8xf32>
    %cst_143 = arith.constant dense<0.000000e+00> : vector<2x8xf32>
    %315 = vector.multi_reduction <add>, %314, %cst_143 [2] : vector<2x8x8xf32> to vector<2x8xf32>
    %316 = vector.shape_cast %315 : vector<2x8xf32> to vector<2x8x1xf32>
    %317 = vector.broadcast %316 : vector<2x8x1xf32> to vector<2x8x8xf32>
    %318 = arith.divf %314, %317 : vector<2x8x8xf32>
    "tpu.trace_start"() <{level = 10 : i32, message = "bqk,bkd->bqd"}> : () -> ()
    %cst_144 = arith.constant dense<0.000000e+00> : vector<2x8x8xf32>
    %319 = tpu.matmul %318, %305, %cst_144 {dimension_numbers = #tpu.dot_dimension_numbers<[2], [1], [1], [2], [0, 0, 0, 1, 1, 2], [0], [0]>} : vector<2x8x8xf32>, vector<2x8x8xf32>, vector<2x8x8xf32> -> vector<2x8x8xf32>
    "tpu.trace_stop"() : () -> ()
    %320 = vector.shape_cast %319 : vector<2x8x8xf32> to vector<16x8xf32>
    %c0_145 = arith.constant 0 : index
    %c24_146 = arith.constant 24 : index
    %321 = vector.load %arg14[%c0_145, %c24_146] : memref<16x32xf32, #tpu.memory_space<vmem>>, vector<16x8xf32>
    tpu.vector_store %arg14[%c0_145, %c24_146], %320 {strides = array<i32>} : memref<16x32xf32, #tpu.memory_space<vmem>>, vector<16x8xf32>,
    %c0_147 = arith.constant 0 : index
    %c0_148 = arith.constant 0 : index
    %322 = vector.load %arg14[%c0_147, %c0_148] : memref<16x32xf32, #tpu.memory_space<vmem>>, vector<16x32xf32>
    %c1_149 = arith.constant 1 : index
    %c0_150 = arith.constant 0 : index
    %c0_151 = arith.constant 0 : index
    %323 = vector.load %arg8[%c1_149, %c0_150, %c0_151] : memref<2x32x32xf32, #tpu.memory_space<vmem>>, vector<1x32x32xf32>
    %324 = vector.shape_cast %323 : vector<1x32x32xf32> to vector<32x32xf32>
    %cst_152 = arith.constant dense<0.000000e+00> : vector<16x32xf32>
    %325 = tpu.matmul %322, %324, %cst_152 {dimension_numbers = #tpu.dot_dimension_numbers<[1], [0], [0], [1], [0, 0, 1, 1], [], []>} : vector<16x32xf32>, vector<32x32xf32>, vector<16x32xf32> -> vector<16x32xf32>
    %326 = arith.addf %196, %325 : vector<16x32xf32>
    %327 = vector.broadcast %204 : vector<1x32xf32> to vector<16x32xf32>
    %328 = arith.addf %326, %327 : vector<16x32xf32>
    %cst_153 = arith.constant dense<0.000000e+00> : vector<16xf32>
    %329 = vector.multi_reduction <add>, %328, %cst_153 [1] : vector<16x32xf32> to vector<16xf32>
    %330 = vector.shape_cast %329 : vector<16xf32> to vector<16x1xf32>
    %cst_154 = arith.constant 3.200000e+01 : f32
    %331 = vector.broadcast %cst_154 : f32 to vector<16x1xf32>
    %332 = arith.divf %330, %331 : vector<16x1xf32>
    %333 = vector.broadcast %332 : vector<16x1xf32> to vector<16x32xf32>
    %334 = arith.subf %328, %333 : vector<16x32xf32>
    %335 = arith.mulf %334, %334 : vector<16x32xf32>
    %cst_155 = arith.constant dense<0.000000e+00> : vector<16xf32>
    %336 = vector.multi_reduction <add>, %335, %cst_155 [1] : vector<16x32xf32> to vector<16xf32>
    %337 = vector.shape_cast %336 : vector<16xf32> to vector<16x1xf32>
    %cst_156 = arith.constant 3.200000e+01 : f32
    %338 = vector.broadcast %cst_156 : f32 to vector<16x1xf32>
    %339 = arith.divf %337, %338 : vector<16x1xf32>
    %cst_157 = arith.constant 9.99999997E-7 : f32
    %340 = vector.broadcast %cst_157 : f32 to vector<16x1xf32>
    %341 = arith.addf %339, %340 : vector<16x1xf32>
    %342 = math.rsqrt %341 : vector<16x1xf32>
    %343 = vector.broadcast %342 : vector<16x1xf32> to vector<16x32xf32>
    %344 = arith.mulf %334, %343 : vector<16x32xf32>
    %345 = vector.broadcast %199 : vector<1x32xf32> to vector<16x32xf32>
    %346 = arith.mulf %344, %345 : vector<16x32xf32>
    %347 = vector.broadcast %200 : vector<1x32xf32> to vector<16x32xf32>
    %348 = arith.addf %346, %347 : vector<16x32xf32>
    %c1_158 = arith.constant 1 : index
    %c0_159 = arith.constant 0 : index
    %c0_160 = arith.constant 0 : index
    %349 = vector.load %arg9[%c1_158, %c0_159, %c0_160] : memref<2x32x64xf32, #tpu.memory_space<vmem>>, vector<1x32x64xf32>
    %350 = vector.shape_cast %349 : vector<1x32x64xf32> to vector<32x64xf32>
    %cst_161 = arith.constant dense<0.000000e+00> : vector<16x64xf32>
    %351 = tpu.matmul %348, %350, %cst_161 {dimension_numbers = #tpu.dot_dimension_numbers<[1], [0], [0], [1], [0, 0, 1, 1], [], []>} : vector<16x32xf32>, vector<32x64xf32>, vector<16x64xf32> -> vector<16x64xf32>
    %352 = vector.broadcast %206 : vector<1x64xf32> to vector<16x64xf32>
    %353 = arith.addf %351, %352 : vector<16x64xf32>
    %354 = arith.mulf %353, %353 : vector<16x64xf32>
    %355 = arith.mulf %353, %354 : vector<16x64xf32>
    %cst_162 = arith.constant 4.471500e-02 : f32
    %356 = vector.broadcast %cst_162 : f32 to vector<16x64xf32>
    %357 = arith.mulf %356, %355 : vector<16x64xf32>
    %358 = arith.addf %353, %357 : vector<16x64xf32>
    %cst_163 = arith.constant 0.797884583 : f32
    %359 = vector.broadcast %cst_163 : f32 to vector<16x64xf32>
    %360 = arith.mulf %359, %358 : vector<16x64xf32>
    %361 = math.tanh %360 : vector<16x64xf32>
    %cst_164 = arith.constant 1.000000e+00 : f32
    %362 = vector.broadcast %cst_164 : f32 to vector<16x64xf32>
    %363 = arith.addf %362, %361 : vector<16x64xf32>
    %cst_165 = arith.constant 5.000000e-01 : f32
    %364 = vector.broadcast %cst_165 : f32 to vector<16x64xf32>
    %365 = arith.mulf %364, %363 : vector<16x64xf32>
    %366 = arith.mulf %353, %365 : vector<16x64xf32>
    %c1_166 = arith.constant 1 : index
    %c0_167 = arith.constant 0 : index
    %c0_168 = arith.constant 0 : index
    %367 = vector.load %arg10[%c1_166, %c0_167, %c0_168] : memref<2x64x32xf32, #tpu.memory_space<vmem>>, vector<1x64x32xf32>
    %368 = vector.shape_cast %367 : vector<1x64x32xf32> to vector<64x32xf32>
    %cst_169 = arith.constant dense<0.000000e+00> : vector<16x32xf32>
    %369 = tpu.matmul %366, %368, %cst_169 {dimension_numbers = #tpu.dot_dimension_numbers<[1], [0], [0], [1], [0, 0, 1, 1], [], []>} : vector<16x64xf32>, vector<64x32xf32>, vector<16x32xf32> -> vector<16x32xf32>
    %370 = arith.addf %328, %369 : vector<16x32xf32>
    %371 = vector.broadcast %208 : vector<1x32xf32> to vector<16x32xf32>
    %372 = arith.addf %370, %371 : vector<16x32xf32>
    %c8_170 = arith.constant 8 : index
    %c0_171 = arith.constant 0 : index
    %373 = vector.load %arg5[%c8_170, %c0_171] : memref<10x32xf32, #tpu.memory_space<vmem>>, vector<1x32xf32>
    %c9_172 = arith.constant 9 : index
    %c0_173 = arith.constant 0 : index
    %374 = vector.load %arg5[%c9_172, %c0_173] : memref<10x32xf32, #tpu.memory_space<vmem>>, vector<1x32xf32>
    %cst_174 = arith.constant dense<0.000000e+00> : vector<16xf32>
    %375 = vector.multi_reduction <add>, %372, %cst_174 [1] : vector<16x32xf32> to vector<16xf32>
    %376 = vector.shape_cast %375 : vector<16xf32> to vector<16x1xf32>
    %cst_175 = arith.constant 3.200000e+01 : f32
    %377 = vector.broadcast %cst_175 : f32 to vector<16x1xf32>
    %378 = arith.divf %376, %377 : vector<16x1xf32>
    %379 = vector.broadcast %378 : vector<16x1xf32> to vector<16x32xf32>
    %380 = arith.subf %372, %379 : vector<16x32xf32>
    %381 = arith.mulf %380, %380 : vector<16x32xf32>
    %cst_176 = arith.constant dense<0.000000e+00> : vector<16xf32>
    %382 = vector.multi_reduction <add>, %381, %cst_176 [1] : vector<16x32xf32> to vector<16xf32>
    %383 = vector.shape_cast %382 : vector<16xf32> to vector<16x1xf32>
    %cst_177 = arith.constant 3.200000e+01 : f32
    %384 = vector.broadcast %cst_177 : f32 to vector<16x1xf32>
    %385 = arith.divf %383, %384 : vector<16x1xf32>
    %cst_178 = arith.constant 9.99999997E-7 : f32
    %386 = vector.broadcast %cst_178 : f32 to vector<16x1xf32>
    %387 = arith.addf %385, %386 : vector<16x1xf32>
    %388 = math.rsqrt %387 : vector<16x1xf32>
    %389 = vector.broadcast %388 : vector<16x1xf32> to vector<16x32xf32>
    %390 = arith.mulf %380, %389 : vector<16x32xf32>
    %391 = vector.broadcast %373 : vector<1x32xf32> to vector<16x32xf32>
    %392 = arith.mulf %390, %391 : vector<16x32xf32>
    %393 = vector.broadcast %374 : vector<1x32xf32> to vector<16x32xf32>
    %394 = arith.addf %392, %393 : vector<16x32xf32>
    %c0_179 = arith.constant 0 : index
    %c0_180 = arith.constant 0 : index
    %395 = vector.load %arg14[%c0_179, %c0_180] : memref<16x32xf32, #tpu.memory_space<vmem>>, vector<16x32xf32>
    tpu.vector_store %arg14[%c0_179, %c0_180], %394 {strides = array<i32>} : memref<16x32xf32, #tpu.memory_space<vmem>>, vector<16x32xf32>,
    %c0_181 = arith.constant 0 : index
    %c0_182 = arith.constant 0 : index
    %396 = vector.load %arg14[%c0_181, %c0_182] : memref<16x32xf32, #tpu.memory_space<vmem>>, vector<1x32xf32>
    %c8_183 = arith.constant 8 : index
    %c0_184 = arith.constant 0 : index
    %397 = vector.load %arg14[%c8_183, %c0_184] : memref<16x32xf32, #tpu.memory_space<vmem>>, vector<1x32xf32>
    %398 = tpu.concatenate %396, %397 in 0 : vector<1x32xf32>, vector<1x32xf32> -> vector<2x32xf32>
    %c0_185 = arith.constant 0 : index
    %c0_186 = arith.constant 0 : index
    %c0_187 = arith.constant 0 : index
    %399 = vector.load %arg2[%c0_185, %c0_186, %c0_187] : memref<2x1x2xf32, #tpu.memory_space<vmem>>, vector<2x1x2xf32>
    %400 = vector.shape_cast %399 : vector<2x1x2xf32> to vector<2x2xf32>
    %c0_188 = arith.constant 0 : index
    %c0_189 = arith.constant 0 : index
    %401 = vector.load %arg11[%c0_188, %c0_189] : memref<12x16xf32, #tpu.memory_space<vmem>>, vector<2x8xf32>
    %cst_190 = arith.constant dense<0.000000e+00> : vector<2x8xf32>
    %402 = tpu.matmul %400, %401, %cst_190 {dimension_numbers = #tpu.dot_dimension_numbers<[1], [0], [0], [1], [0, 0, 1, 1], [], []>} : vector<2x2xf32>, vector<2x8xf32>, vector<2x8xf32> -> vector<2x8xf32>
    %c2_191 = arith.constant 2 : index
    %c0_192 = arith.constant 0 : index
    %403 = vector.load %arg11[%c2_191, %c0_192] : memref<12x16xf32, #tpu.memory_space<vmem>>, vector<1x8xf32>
    %404 = vector.broadcast %403 : vector<1x8xf32> to vector<2x8xf32>
    %405 = arith.addf %402, %404 : vector<2x8xf32>
    %cst_193 = arith.constant 0.000000e+00 : f32
    %406 = vector.broadcast %cst_193 : f32 to vector<2x8xf32>
    %407 = arith.maximumf %405, %406 : vector<2x8xf32>
    %c3_194 = arith.constant 3 : index
    %c0_195 = arith.constant 0 : index
    %408 = vector.load %arg11[%c3_194, %c0_195] : memref<12x16xf32, #tpu.memory_space<vmem>>, vector<8x16xf32>
    %cst_196 = arith.constant dense<0.000000e+00> : vector<2x16xf32>
    %409 = tpu.matmul %407, %408, %cst_196 {dimension_numbers = #tpu.dot_dimension_numbers<[1], [0], [0], [1], [0, 0, 1, 1], [], []>} : vector<2x8xf32>, vector<8x16xf32>, vector<2x16xf32> -> vector<2x16xf32>
    %c11 = arith.constant 11 : index
    %c0_197 = arith.constant 0 : index
    %410 = vector.load %arg11[%c11, %c0_197] : memref<12x16xf32, #tpu.memory_space<vmem>>, vector<1x16xf32>
    %411 = vector.broadcast %410 : vector<1x16xf32> to vector<2x16xf32>
    %412 = arith.addf %409, %411 : vector<2x16xf32>
    %cst_198 = arith.constant 0.000000e+00 : f32
    %413 = vector.broadcast %cst_198 : f32 to vector<2x16xf32>
    %414 = arith.maximumf %412, %413 : vector<2x16xf32>
    %c0_199 = arith.constant 0 : index
    %c0_200 = arith.constant 0 : index
    %415 = vector.load %arg12[%c0_199, %c0_200] : memref<49x128xf32, #tpu.memory_space<vmem>>, vector<32x128xf32>
    %cst_201 = arith.constant dense<0.000000e+00> : vector<2x128xf32>
    %416 = tpu.matmul %398, %415, %cst_201 {dimension_numbers = #tpu.dot_dimension_numbers<[1], [0], [0], [1], [0, 0, 1, 1], [], []>} : vector<2x32xf32>, vector<32x128xf32>, vector<2x128xf32> -> vector<2x128xf32>
    %c32 = arith.constant 32 : index
    %c0_202 = arith.constant 0 : index
    %417 = vector.load %arg12[%c32, %c0_202] : memref<49x128xf32, #tpu.memory_space<vmem>>, vector<16x128xf32>
    %cst_203 = arith.constant dense<0.000000e+00> : vector<2x128xf32>
    %418 = tpu.matmul %414, %417, %cst_203 {dimension_numbers = #tpu.dot_dimension_numbers<[1], [0], [0], [1], [0, 0, 1, 1], [], []>} : vector<2x16xf32>, vector<16x128xf32>, vector<2x128xf32> -> vector<2x128xf32>
    %419 = arith.addf %416, %418 : vector<2x128xf32>
    %c48 = arith.constant 48 : index
    %c0_204 = arith.constant 0 : index
    %420 = vector.load %arg12[%c48, %c0_204] : memref<49x128xf32, #tpu.memory_space<vmem>>, vector<1x128xf32>
    %421 = vector.broadcast %420 : vector<1x128xf32> to vector<2x128xf32>
    %422 = arith.addf %419, %421 : vector<2x128xf32>
    %c0_205 = arith.constant 0 : index
    %c0_206 = arith.constant 0 : index
    %c0_207 = arith.constant 0 : index
    %423 = vector.load %arg13[%c0_205, %c0_206, %c0_207] : memref<2x1x128xf32, #tpu.memory_space<vmem>>, vector<2x1x128xf32>
    %424 = vector.shape_cast %423 : vector<2x1x128xf32> to vector<2x128xf32>
    %425 = vector.shape_cast %422 : vector<2x128xf32> to vector<2x1x128xf32>
    tpu.vector_store %arg13[%c0_205, %c0_206, %c0_207], %425 {strides = array<i32>} : memref<2x1x128xf32, #tpu.memory_space<vmem>>, vector<2x1x128xf32>,
    return
  }
  func.func @transform_0(%arg0: i32) -> (i32, i32) {
    %c0_i32 = arith.constant 0 : i32
    %c0_i32_0 = arith.constant 0 : i32
    return %arg0, %c0_i32 : i32, i32
  }
  func.func @transform_1(%arg0: i32) -> (i32, i32, i32) {
    %c0_i32 = arith.constant 0 : i32
    %c0_i32_0 = arith.constant 0 : i32
    %c0_i32_1 = arith.constant 0 : i32
    return %arg0, %c0_i32, %c0_i32_0 : i32, i32, i32
  }
  func.func @transform_2(%arg0: i32) -> (i32, i32) {
    %c0_i32 = arith.constant 0 : i32
    %c0_i32_0 = arith.constant 0 : i32
    %c0_i32_1 = arith.constant 0 : i32
    return %c0_i32, %c0_i32_0 : i32, i32
  }
  func.func @transform_3(%arg0: i32) -> (i32, i32) {
    %c0_i32 = arith.constant 0 : i32
    %c0_i32_0 = arith.constant 0 : i32
    %c0_i32_1 = arith.constant 0 : i32
    return %c0_i32, %c0_i32_0 : i32, i32
  }
  func.func @transform_4(%arg0: i32) -> (i32, i32) {
    %c0_i32 = arith.constant 0 : i32
    %c0_i32_0 = arith.constant 0 : i32
    %c0_i32_1 = arith.constant 0 : i32
    return %c0_i32, %c0_i32_0 : i32, i32
  }
  func.func @transform_5(%arg0: i32) -> (i32, i32, i32) {
    %c0_i32 = arith.constant 0 : i32
    %c0_i32_0 = arith.constant 0 : i32
    %c0_i32_1 = arith.constant 0 : i32
    %c0_i32_2 = arith.constant 0 : i32
    return %c0_i32, %c0_i32_0, %c0_i32_1 : i32, i32, i32
  }
  func.func @transform_6(%arg0: i32) -> (i32, i32, i32) {
    %c0_i32 = arith.constant 0 : i32
    %c0_i32_0 = arith.constant 0 : i32
    %c0_i32_1 = arith.constant 0 : i32
    %c0_i32_2 = arith.constant 0 : i32
    return %c0_i32, %c0_i32_0, %c0_i32_1 : i32, i32, i32
  }
  func.func @transform_7(%arg0: i32) -> (i32, i32, i32) {
    %c0_i32 = arith.constant 0 : i32
    %c0_i32_0 = arith.constant 0 : i32
    %c0_i32_1 = arith.constant 0 : i32
    %c0_i32_2 = arith.constant 0 : i32
    return %c0_i32, %c0_i32_0, %c0_i32_1 : i32, i32, i32
  }
  func.func @transform_8(%arg0: i32) -> (i32, i32, i32) {
    %c0_i32 = arith.constant 0 : i32
    %c0_i32_0 = arith.constant 0 : i32
    %c0_i32_1 = arith.constant 0 : i32
    %c0_i32_2 = arith.constant 0 : i32
    return %c0_i32, %c0_i32_0, %c0_i32_1 : i32, i32, i32
  }
  func.func @transform_9(%arg0: i32) -> (i32, i32, i32) {
    %c0_i32 = arith.constant 0 : i32
    %c0_i32_0 = arith.constant 0 : i32
    %c0_i32_1 = arith.constant 0 : i32
    %c0_i32_2 = arith.constant 0 : i32
    return %c0_i32, %c0_i32_0, %c0_i32_1 : i32, i32, i32
  }
  func.func @transform_10(%arg0: i32) -> (i32, i32) {
    %c0_i32 = arith.constant 0 : i32
    %c0_i32_0 = arith.constant 0 : i32
    %c0_i32_1 = arith.constant 0 : i32
    return %c0_i32, %c0_i32_0 : i32, i32
  }
  func.func @transform_11(%arg0: i32) -> (i32, i32) {
    %c0_i32 = arith.constant 0 : i32
    %c0_i32_0 = arith.constant 0 : i32
    %c0_i32_1 = arith.constant 0 : i32
    return %c0_i32, %c0_i32_0 : i32, i32
  }
  func.func @transform_12(%arg0: i32) -> (i32, i32, i32) {
    %c0_i32 = arith.constant 0 : i32
    %c0_i32_0 = arith.constant 0 : i32
    %c0_i32_1 = arith.constant 0 : i32
    return %arg0, %c0_i32, %c0_i32_0 : i32, i32, i32
  }
}

</mosaic_0001>

<llo_original>
// kernel: forward.1
$region0: #{forward.1}
  #allocation0 [shape = 'u32[]', space=smem, size = 0x4, offset = 0x4, fixed_abs, tag = 'smem constant byte address 0x4 - core index']
  #allocation1 [shape = 'u32[144,128]{1,0:T(1,128)}', space=vmem, size = 0x12000, scoped, tag = 'internal scratch']
  #allocation2 [shape = 'f32[16,32]{1,0:T(8,128)}', space=vmem, size = 0x2000, scoped, tag = 'scratch operand']
  %s0 = inlined_call_operand.vmem [shape: f32[8,768], index: 0, kind: input, shape index: {}]
  %s1 = inlined_call_operand.vmem [shape: f32[2,1,2], index: 1, kind: input, shape index: {}]
  %s2 = inlined_call_operand.vmem [shape: f32[768,32], index: 2, kind: input, shape index: {}]
  %s3 = inlined_call_operand.vmem [shape: f32[8,32], index: 3, kind: input, shape index: {}]
  %s4 = inlined_call_operand.vmem [shape: f32[10,32], index: 4, kind: input, shape index: {}]
  %s5 = inlined_call_operand.vmem [shape: f32[2,4,96], index: 5, kind: input, shape index: {}]
  %s6 = inlined_call_operand.vmem [shape: f32[2,32,96], index: 6, kind: input, shape index: {}]
  %s7 = inlined_call_operand.vmem [shape: f32[2,32,32], index: 7, kind: input, shape index: {}]
  %s8 = inlined_call_operand.vmem [shape: f32[2,32,64], index: 8, kind: input, shape index: {}]
  %s9 = inlined_call_operand.vmem [shape: f32[2,64,32], index: 9, kind: input, shape index: {}]
  %s10 = inlined_call_operand.vmem [shape: f32[12,16], index: 10, kind: input, shape index: {}]
  %s11 = inlined_call_operand.vmem [shape: f32[49,128], index: 11, kind: input, shape index: {}]
  %s12 = inlined_call_operand.hbm [shape: f32[2,1,128], index: 12, kind: output, shape index: {}]
  %s13 = sld [smem:[#allocation0]]
  $region58: #{forward.1} parent=0
    _
  %s15 = ssub.s32 1, %s13
  %s16 = scalar_select 0, %s15, %s13
  $region1: #{forward.1} parent=0
    #allocation3 [shape = 'u8[1024]{0}', space=vmem, size = 0x400, scoped, tag = 'output window, operand 0, single buffered']
    #allocation4 [shape = 's32[1]{0}', space=sflag, size = 0x4, scoped, tag = 'scoped memory for forward.1']
    %17 = vsyncpa [#allocation4], 0
    // Predicated region
    $region2: #{forward.1} parent=1 // pred_check
      _
    $region3: #{forward.1} parent=1 // pred_check_branch
      %19 = sbr.rel (0) target = $region5
    $region4: #{forward.1} parent=1 // pred_region
      _
    $region5: #{forward.1} parent=1 // pred_fallthru
      _
    // Predicated region
    $region6: #{forward.1} parent=1 // pred_check
      _
    $region7: #{forward.1} parent=1 // pred_check_branch
      %21 = sbr.rel (0) target = $region9
    $region8: #{forward.1} parent=1 // pred_region
      _
    $region9: #{forward.1} parent=1 // pred_fallthru
      _
    // Predicated region
    $region10: #{forward.1} parent=1 // pred_check
      _
    $region11: #{forward.1} parent=1 // pred_check_branch
      %23 = sbr.rel (0) target = $region13
    $region12: #{forward.1} parent=1 // pred_region
      _
    $region13: #{forward.1} parent=1 // pred_fallthru
      _
    // Predicated region
    $region14: #{forward.1} parent=1 // pred_check
      _
    $region15: #{forward.1} parent=1 // pred_check_branch
      %25 = sbr.rel (0) target = $region17
    $region16: #{forward.1} parent=1 // pred_region
      _
    $region17: #{forward.1} parent=1 // pred_fallthru
      _
    // Predicated region
    $region18: #{forward.1} parent=1 // pred_check
      _
    $region19: #{forward.1} parent=1 // pred_check_branch
      %27 = sbr.rel (0) target = $region21
    $region20: #{forward.1} parent=1 // pred_region
      _
    $region21: #{forward.1} parent=1 // pred_fallthru
      _
    // Predicated region
    $region22: #{forward.1} parent=1 // pred_check
      _
    $region23: #{forward.1} parent=1 // pred_check_branch
      %29 = sbr.rel (0) target = $region25
    $region24: #{forward.1} parent=1 // pred_region
      _
    $region25: #{forward.1} parent=1 // pred_fallthru
      _
    // Predicated region
    $region26: #{forward.1} parent=1 // pred_check
      _
    $region27: #{forward.1} parent=1 // pred_check_branch
      %31 = sbr.rel (0) target = $region29
    $region28: #{forward.1} parent=1 // pred_region
      _
    $region29: #{forward.1} parent=1 // pred_fallthru
      _
    // Predicated region
    $region30: #{forward.1} parent=1 // pred_check
      _
    $region31: #{forward.1} parent=1 // pred_check_branch
      %33 = sbr.rel (0) target = $region33
    $region32: #{forward.1} parent=1 // pred_region
      _
    $region33: #{forward.1} parent=1 // pred_fallthru
      _
    // Predicated region
    $region34: #{forward.1} parent=1 // pred_check
      _
    $region35: #{forward.1} parent=1 // pred_check_branch
      %35 = sbr.rel (0) target = $region37
    $region36: #{forward.1} parent=1 // pred_region
      _
    $region37: #{forward.1} parent=1 // pred_fallthru
      _
    // Predicated region
    $region38: #{forward.1} parent=1 // pred_check
      _
    $region39: #{forward.1} parent=1 // pred_check_branch
      %37 = sbr.rel (0) target = $region41
    $region40: #{forward.1} parent=1 // pred_region
      _
    $region41: #{forward.1} parent=1 // pred_fallthru
      _
    // Predicated region
    $region42: #{forward.1} parent=1 // pred_check
      _
    $region43: #{forward.1} parent=1 // pred_check_branch
      %39 = sbr.rel (0) target = $region45
    $region44: #{forward.1} parent=1 // pred_region
      _
    $region45: #{forward.1} parent=1 // pred_fallthru
      _
    // Predicated region
    $region46: #{forward.1} parent=1 // pred_check
      _
    $region47: #{forward.1} parent=1 // pred_check_branch
      %41 = sbr.rel (0) target = $region49
    $region48: #{forward.1} parent=1 // pred_region
      _
    $region49: #{forward.1} parent=1 // pred_fallthru
      _
    %v42 = vld [vmem:[%s0] sm:$0xff]
    %v43 = vld [vmem:[%s0 + $0x8] sm:$0xff]
    %v44 = vld [vmem:[%s0 + $0x10] sm:$0xff]
    %v45 = vld [vmem:[%s0 + $0x18] sm:$0xff]
    %v46 = vld [vmem:[%s0 + $0x20] sm:$0xff]
    %v47 = vld [vmem:[%s0 + $0x28] sm:$0xff]
    %v48 = vld [vmem:[%s2] sm:$0xff]
    %v49 = vld [vmem:[%s2 + $0x8] sm:$0xff]
    %v50 = vld [vmem:[%s2 + $0x10] sm:$0xff]
    %v51 = vld [vmem:[%s2 + $0x18] sm:$0xff]
    %v52 = vld [vmem:[%s2 + $0x20] sm:$0xff]
    %v53 = vld [vmem:[%s2 + $0x28] sm:$0xff]
    %v54 = vld [vmem:[%s2 + $0x30] sm:$0xff]
    %v55 = vld [vmem:[%s2 + $0x38] sm:$0xff]
    %v56 = vld [vmem:[%s2 + $0x40] sm:$0xff]
    %v57 = vld [vmem:[%s2 + $0x48] sm:$0xff]
    %v58 = vld [vmem:[%s2 + $0x50] sm:$0xff]
    %v59 = vld [vmem:[%s2 + $0x58] sm:$0xff]
    %v60 = vld [vmem:[%s2 + $0x60] sm:$0xff]
    %v61 = vld [vmem:[%s2 + $0x68] sm:$0xff]
    %v62 = vld [vmem:[%s2 + $0x70] sm:$0xff]
    %v63 = vld [vmem:[%s2 + $0x78] sm:$0xff]
    %v64 = vld [vmem:[%s2 + $0x80] sm:$0xff]
    %v65 = vld [vmem:[%s2 + $0x88] sm:$0xff]
    %v66 = vld [vmem:[%s2 + $0x90] sm:$0xff]
    %v67 = vld [vmem:[%s2 + $0x98] sm:$0xff]
    %v68 = vld [vmem:[%s2 + $0xa0] sm:$0xff]
    %v69 = vld [vmem:[%s2 + $0xa8] sm:$0xff]
    %v70 = vld [vmem:[%s2 + $0xb0] sm:$0xff]
    %v71 = vld [vmem:[%s2 + $0xb8] sm:$0xff]
    %v72 = vld [vmem:[%s2 + $0xc0] sm:$0xff]
    %v73 = vld [vmem:[%s2 + $0xc8] sm:$0xff]
    %v74 = vld [vmem:[%s2 + $0xd0] sm:$0xff]
    %v75 = vld [vmem:[%s2 + $0xd8] sm:$0xff]
    %v76 = vld [vmem:[%s2 + $0xe0] sm:$0xff]
    %v77 = vld [vmem:[%s2 + $0xe8] sm:$0xff]
    %v78 = vld [vmem:[%s2 + $0xf0] sm:$0xff]
    %v79 = vld [vmem:[%s2 + $0xf8] sm:$0xff]
    %v80 = vld [vmem:[%s2 + $0x100] sm:$0xff]
    %v81 = vld [vmem:[%s2 + $0x108] sm:$0xff]
    %v82 = vld [vmem:[%s2 + $0x110] sm:$0xff]
    %v83 = vld [vmem:[%s2 + $0x118] sm:$0xff]
    %v84 = vld [vmem:[%s2 + $0x120] sm:$0xff]
    %v85 = vld [vmem:[%s2 + $0x128] sm:$0xff]
    %v86 = vld [vmem:[%s2 + $0x130] sm:$0xff]
    %v87 = vld [vmem:[%s2 + $0x138] sm:$0xff]
    %v88 = vld [vmem:[%s2 + $0x140] sm:$0xff]
    %v89 = vld [vmem:[%s2 + $0x148] sm:$0xff]
    %v90 = vld [vmem:[%s2 + $0x150] sm:$0xff]
    %v91 = vld [vmem:[%s2 + $0x158] sm:$0xff]
    %v92 = vld [vmem:[%s2 + $0x160] sm:$0xff]
    %v93 = vld [vmem:[%s2 + $0x168] sm:$0xff]
    %v94 = vld [vmem:[%s2 + $0x170] sm:$0xff]
    %v95 = vld [vmem:[%s2 + $0x178] sm:$0xff]
    %v96 = vld [vmem:[%s2 + $0x180] sm:$0xff]
    %v97 = vld [vmem:[%s2 + $0x188] sm:$0xff]
    %v98 = vld [vmem:[%s2 + $0x190] sm:$0xff]
    %v99 = vld [vmem:[%s2 + $0x198] sm:$0xff]
    %v100 = vld [vmem:[%s2 + $0x1a0] sm:$0xff]
    %v101 = vld [vmem:[%s2 + $0x1a8] sm:$0xff]
    %v102 = vld [vmem:[%s2 + $0x1b0] sm:$0xff]
    %v103 = vld [vmem:[%s2 + $0x1b8] sm:$0xff]
    %v104 = vld [vmem:[%s2 + $0x1c0] sm:$0xff]
    %v105 = vld [vmem:[%s2 + $0x1c8] sm:$0xff]
    %v106 = vld [vmem:[%s2 + $0x1d0] sm:$0xff]
    %v107 = vld [vmem:[%s2 + $0x1d8] sm:$0xff]
    %v108 = vld [vmem:[%s2 + $0x1e0] sm:$0xff]
    %v109 = vld [vmem:[%s2 + $0x1e8] sm:$0xff]
    %v110 = vld [vmem:[%s2 + $0x1f0] sm:$0xff]
    %v111 = vld [vmem:[%s2 + $0x1f8] sm:$0xff]
    %v112 = vld [vmem:[%s2 + $0x200] sm:$0xff]
    %v113 = vld [vmem:[%s2 + $0x208] sm:$0xff]
    %v114 = vld [vmem:[%s2 + $0x210] sm:$0xff]
    %v115 = vld [vmem:[%s2 + $0x218] sm:$0xff]
    %v116 = vld [vmem:[%s2 + $0x220] sm:$0xff]
    %v117 = vld [vmem:[%s2 + $0x228] sm:$0xff]
    %v118 = vld [vmem:[%s2 + $0x230] sm:$0xff]
    %v119 = vld [vmem:[%s2 + $0x238] sm:$0xff]
    %v120 = vld [vmem:[%s2 + $0x240] sm:$0xff]
    %v121 = vld [vmem:[%s2 + $0x248] sm:$0xff]
    %v122 = vld [vmem:[%s2 + $0x250] sm:$0xff]
    %v123 = vld [vmem:[%s2 + $0x258] sm:$0xff]
    %v124 = vld [vmem:[%s2 + $0x260] sm:$0xff]
    %v125 = vld [vmem:[%s2 + $0x268] sm:$0xff]
    %v126 = vld [vmem:[%s2 + $0x270] sm:$0xff]
    %v127 = vld [vmem:[%s2 + $0x278] sm:$0xff]
    %v128 = vld [vmem:[%s2 + $0x280] sm:$0xff]
    %v129 = vld [vmem:[%s2 + $0x288] sm:$0xff]
    %v130 = vld [vmem:[%s2 + $0x290] sm:$0xff]
    %v131 = vld [vmem:[%s2 + $0x298] sm:$0xff]
    %v132 = vld [vmem:[%s2 + $0x2a0] sm:$0xff]
    %v133 = vld [vmem:[%s2 + $0x2a8] sm:$0xff]
    %v134 = vld [vmem:[%s2 + $0x2b0] sm:$0xff]
    %v135 = vld [vmem:[%s2 + $0x2b8] sm:$0xff]
    %v136 = vld [vmem:[%s2 + $0x2c0] sm:$0xff]
    %v137 = vld [vmem:[%s2 + $0x2c8] sm:$0xff]
    %v138 = vld [vmem:[%s2 + $0x2d0] sm:$0xff]
    %v139 = vld [vmem:[%s2 + $0x2d8] sm:$0xff]
    %v140 = vld [vmem:[%s2 + $0x2e0] sm:$0xff]
    %v141 = vld [vmem:[%s2 + $0x2e8] sm:$0xff]
    %v142 = vld [vmem:[%s2 + $0x2f0] sm:$0xff]
    %v143 = vld [vmem:[%s2 + $0x2f8] sm:$0xff]
    %144 = vmatprep.subr.mxu0 0.0
    %145 = vmatpush1.msra.mxu0 %v48
    %146 = vmatprep.subr.mxu0 0.0
    %147 = vmatpush1.msra.mxu0 %v49
    %148 = vmatprep.subr.mxu0 0.0
    %149 = vmatpush1.msra.mxu0 %v50
    %150 = vmatprep.subr.mxu0 0.0
    %151 = vmatpush1.msra.mxu0 %v51
    %152 = vmatprep.subr.mxu0 0.0
    %153 = vmatpush1.msra.mxu0 %v52
    %154 = vmatprep.subr.mxu0 0.0
    %155 = vmatpush1.msra.mxu0 %v53
    %156 = vmatprep.subr.mxu0 0.0
    %157 = vmatpush1.msra.mxu0 %v54
    %158 = vmatprep.subr.mxu0 0.0
    %159 = vmatpush1.msra.mxu0 %v55
    %160 = vmatprep.subr.mxu0 0.0
    %161 = vmatpush1.msra.mxu0 %v56
    %162 = vmatprep.subr.mxu0 0.0
    %163 = vmatpush1.msra.mxu0 %v57
    %164 = vmatprep.subr.mxu0 0.0
    %165 = vmatpush1.msra.mxu0 %v58
    %166 = vmatprep.subr.mxu0 0.0
    %167 = vmatpush1.msra.mxu0 %v59
    %168 = vmatprep.subr.mxu0 0.0
    %169 = vmatpush1.msra.mxu0 %v60
    %170 = vmatprep.subr.mxu0 0.0
    %171 = vmatpush1.msra.mxu0 %v61
    %172 = vmatprep.subr.mxu0 0.0
    %173 = vmatpush1.msra.mxu0 %v62
    %174 = vmatprep.subr.mxu0 0.0
    %175 = vmatpush1.msra.mxu0 %v63
    %176 = vmatprep.subr.mxu0 0.0
    %177 = vmatpush1.msra.mxu0 %v64
    %178 = vmatprep.subr.mxu0 0.0
    %179 = vmatpush1.msra.mxu0 %v65
    %180 = vmatprep.subr.mxu0 0.0
    %181 = vmatpush1.msra.mxu0 %v66
    %182 = vmatprep.subr.mxu0 0.0
    %183 = vmatpush1.msra.mxu0 %v67
    %184 = vmatprep.subr.mxu0 0.0
    %185 = vmatpush1.msra.mxu0 %v68
    %186 = vmatprep.subr.mxu0 0.0
    %187 = vmatpush1.msra.mxu0 %v69
    %188 = vmatprep.subr.mxu0 0.0
    %189 = vmatpush1.msra.mxu0 %v70
    %190 = vmatprep.subr.mxu0 0.0
    %191 = vmatpush1.msra.mxu0 %v71
    %192 = vmatprep.subr.mxu0 0.0
    %193 = vmatpush1.msra.mxu0 %v72
    %194 = vmatprep.subr.mxu0 0.0
    %195 = vmatpush1.msra.mxu0 %v73
    %196 = vmatprep.subr.mxu0 0.0
    %197 = vmatpush1.msra.mxu0 %v74
    %198 = vmatprep.subr.mxu0 0.0
    %199 = vmatpush1.msra.mxu0 %v75
    %200 = vmatprep.subr.mxu0 0.0
    %201 = vmatpush1.msra.mxu0 %v76
    %202 = vmatprep.subr.mxu0 0.0
    %203 = vmatpush1.msra.mxu0 %v77
    %204 = vmatprep.subr.mxu0 0.0
    %205 = vmatpush1.msra.mxu0 %v78
    %206 = vmatprep.subr.mxu0 0.0
    %207 = vmatpush1.msra.mxu0 %v79
    %208 = vmatprep.mubr.f32.mxu0 %v43
    %209 = vmatmul.mubr.f32.gmra.mrb[0].mxu0 %v42
    %v210 = vpop.f32.mrb[0].mxu0
    %v211 = vadd.f32 0.0, %v210
    %v212 = vpop.f32.mrb[0].mxu0
    %213 = vdwg.mxu0
    %214 = vmatprep.subr.mxu0 0.0
    %215 = vmatpush1.msra.mxu0 %v80
    %216 = vmatprep.subr.mxu0 0.0
    %217 = vmatpush1.msra.mxu0 %v81
    %218 = vmatprep.subr.mxu0 0.0
    %219 = vmatpush1.msra.mxu0 %v82
    %220 = vmatprep.subr.mxu0 0.0
    %221 = vmatpush1.msra.mxu0 %v83
    %222 = vmatprep.subr.mxu0 0.0
    %223 = vmatpush1.msra.mxu0 %v84
    %224 = vmatprep.subr.mxu0 0.0
    %225 = vmatpush1.msra.mxu0 %v85
    %226 = vmatprep.subr.mxu0 0.0
    %227 = vmatpush1.msra.mxu0 %v86
    %228 = vmatprep.subr.mxu0 0.0
    %229 = vmatpush1.msra.mxu0 %v87
    %230 = vmatprep.subr.mxu0 0.0
    %231 = vmatpush1.msra.mxu0 %v88
    %232 = vmatprep.subr.mxu0 0.0
    %233 = vmatpush1.msra.mxu0 %v89
    %234 = vmatprep.subr.mxu0 0.0
    %235 = vmatpush1.msra.mxu0 %v90
    %236 = vmatprep.subr.mxu0 0.0
    %237 = vmatpush1.msra.mxu0 %v91
    %238 = vmatprep.subr.mxu0 0.0
    %239 = vmatpush1.msra.mxu0 %v92
    %240 = vmatprep.subr.mxu0 0.0
    %241 = vmatpush1.msra.mxu0 %v93
    %242 = vmatprep.subr.mxu0 0.0
    %243 = vmatpush1.msra.mxu0 %v94
    %244 = vmatprep.subr.mxu0 0.0
    %245 = vmatpush1.msra.mxu0 %v95
    %246 = vmatprep.subr.mxu0 0.0
    %247 = vmatpush1.msra.mxu0 %v96
    %248 = vmatprep.subr.mxu0 0.0
    %249 = vmatpush1.msra.mxu0 %v97
    %250 = vmatprep.subr.mxu0 0.0
    %251 = vmatpush1.msra.mxu0 %v98
    %252 = vmatprep.subr.mxu0 0.0
    %253 = vmatpush1.msra.mxu0 %v99
    %254 = vmatprep.subr.mxu0 0.0
    %255 = vmatpush1.msra.mxu0 %v100
    %256 = vmatprep.subr.mxu0 0.0
    %257 = vmatpush1.msra.mxu0 %v101
    %258 = vmatprep.subr.mxu0 0.0
    %259 = vmatpush1.msra.mxu0 %v102
    %260 = vmatprep.subr.mxu0 0.0
    %261 = vmatpush1.msra.mxu0 %v103
    %262 = vmatprep.subr.mxu0 0.0
    %263 = vmatpush1.msra.mxu0 %v104
    %264 = vmatprep.subr.mxu0 0.0
    %265 = vmatpush1.msra.mxu0 %v105
    %266 = vmatprep.subr.mxu0 0.0
    %267 = vmatpush1.msra.mxu0 %v106
    %268 = vmatprep.subr.mxu0 0.0
    %269 = vmatpush1.msra.mxu0 %v107
    %270 = vmatprep.subr.mxu0 0.0
    %271 = vmatpush1.msra.mxu0 %v108
    %272 = vmatprep.subr.mxu0 0.0
    %273 = vmatpush1.msra.mxu0 %v109
    %274 = vmatprep.subr.mxu0 0.0
    %275 = vmatpush1.msra.mxu0 %v110
    %276 = vmatprep.subr.mxu0 0.0
    %277 = vmatpush1.msra.mxu0 %v111
    %278 = vmatprep.mubr.f32.mxu0 %v45
    %279 = vmatmul.mubr.f32.gmra.mrb[0].mxu0 %v44
    %v280 = vpop.f32.mrb[0].mxu0
    %v281 = vadd.f32 %v211, %v280
    %v282 = vpop.f32.mrb[0].mxu0
    %283 = vdwg.mxu0
    %284 = vmatprep.subr.mxu0 0.0
    %285 = vmatpush1.msra.mxu0 %v112
    %286 = vmatprep.subr.mxu0 0.0
    %287 = vmatpush1.msra.mxu0 %v113
    %288 = vmatprep.subr.mxu0 0.0
    %289 = vmatpush1.msra.mxu0 %v114
    %290 = vmatprep.subr.mxu0 0.0
    %291 = vmatpush1.msra.mxu0 %v115
    %292 = vmatprep.subr.mxu0 0.0
    %293 = vmatpush1.msra.mxu0 %v116
    %294 = vmatprep.subr.mxu0 0.0
    %295 = vmatpush1.msra.mxu0 %v117
    %296 = vmatprep.subr.mxu0 0.0
    %297 = vmatpush1.msra.mxu0 %v118
    %298 = vmatprep.subr.mxu0 0.0
    %299 = vmatpush1.msra.mxu0 %v119
    %300 = vmatprep.subr.mxu0 0.0
    %301 = vmatpush1.msra.mxu0 %v120
    %302 = vmatprep.subr.mxu0 0.0
    %303 = vmatpush1.msra.mxu0 %v121
    %304 = vmatprep.subr.mxu0 0.0
    %305 = vmatpush1.msra.mxu0 %v122
    %306 = vmatprep.subr.mxu0 0.0
    %307 = vmatpush1.msra.mxu0 %v123
    %308 = vmatprep.subr.mxu0 0.0
    %309 = vmatpush1.msra.mxu0 %v124
    %310 = vmatprep.subr.mxu0 0.0
    %311 = vmatpush1.msra.mxu0 %v125
    %312 = vmatprep.subr.mxu0 0.0
    %313 = vmatpush1.msra.mxu0 %v126
    %314 = vmatprep.subr.mxu0 0.0
    %315 = vmatpush1.msra.mxu0 %v127
    %316 = vmatprep.subr.mxu0 0.0
    %317 = vmatpush1.msra.mxu0 %v128
    %318 = vmatprep.subr.mxu0 0.0
    %319 = vmatpush1.msra.mxu0 %v129
    %320 = vmatprep.subr.mxu0 0.0
    %321 = vmatpush1.msra.mxu0 %v130
    %322 = vmatprep.subr.mxu0 0.0
    %323 = vmatpush1.msra.mxu0 %v131
    %324 = vmatprep.subr.mxu0 0.0
    %325 = vmatpush1.msra.mxu0 %v132
    %326 = vmatprep.subr.mxu0 0.0
    %327 = vmatpush1.msra.mxu0 %v133
    %328 = vmatprep.subr.mxu0 0.0
    %329 = vmatpush1.msra.mxu0 %v134
    %330 = vmatprep.subr.mxu0 0.0
    %331 = vmatpush1.msra.mxu0 %v135
    %332 = vmatprep.subr.mxu0 0.0
    %333 = vmatpush1.msra.mxu0 %v136
    %334 = vmatprep.subr.mxu0 0.0
    %335 = vmatpush1.msra.mxu0 %v137
    %336 = vmatprep.subr.mxu0 0.0
    %337 = vmatpush1.msra.mxu0 %v138
    %338 = vmatprep.subr.mxu0 0.0
    %339 = vmatpush1.msra.mxu0 %v139
    %340 = vmatprep.subr.mxu0 0.0
    %341 = vmatpush1.msra.mxu0 %v140
    %342 = vmatprep.subr.mxu0 0.0
    %343 = vmatpush1.msra.mxu0 %v141
    %344 = vmatprep.subr.mxu0 0.0
    %345 = vmatpush1.msra.mxu0 %v142
    %346 = vmatprep.subr.mxu0 0.0
    %347 = vmatpush1.msra.mxu0 %v143
    %348 = vmatprep.mubr.f32.mxu0 %v47
    %349 = vmatmul.mubr.f32.gmra.mrb[0].mxu0 %v46
    %v350 = vpop.f32.mrb[0].mxu0
    %v351 = vadd.f32 %v281, %v350
    %v352 = vpop.f32.mrb[0].mxu0
    %353 = vdwg.mxu0
    %v354 = vld [vmem:[%s3] sm:$0xff]
    %vm355 = vcmask 261120
    %356 = vst.msk [vmem:[#allocation2] sm:$0xff] %vm355, %v354
    %357 = vst.msk [vmem:[#allocation2 + $0x8] sm:$0xff] %vm355, %v354
    %v358 = vld [vmem:[#allocation2 + $0x1] sm:$0xf]
    %v359 = vadd.f32 %v358, %v351
    %vm360 = vcmask 257024
    %361 = vst.msk [vmem:[#allocation2 + $0x1] sm:$0xf] %vm360, %v359
    %v362 = vld [vmem:[#allocation2 + $0x9] sm:$0xf]
    %v364 = vrot.slane %v351, 4
    %v366 = vadd.f32 %v362, %v364
    %367 = vst.msk [vmem:[#allocation2 + $0x9] sm:$0xf] %vm360, %v366
    %v368 = vld [vmem:[#allocation2] sm:$0xff]
    %v369 = vld [vmem:[#allocation2 + $0x8] sm:$0xff]
    %v370 = vlaneseq
    %v371 = vand.u32 %v370, 127
    %vm372 = vcmp.lt.s32.totalorder %v371, 5
    %v373 = vsel %vm372, 0.0, -1e+30
    %v374 = vld [vmem:[%s4] sm:$0x1]
    %v375 = vld [vmem:[%s4 + $0x1] sm:$0x1]
    %v376 = vld [vmem:[%s4 + $0x2] sm:$0x1]
    %v377 = vld [vmem:[%s4 + $0x3] sm:$0x1]
    %v378 = vld [vmem:[%s5] sm:$0x1]
    %v379 = vld [vmem:[%s5 + $0x1] sm:$0x1]
    %v380 = vld [vmem:[%s5 + $0x2] sm:$0x1]
    %v381 = vld [vmem:[%s5 + $0x3] sm:$0x1]
    %v382 = vsel %vm355, %v368, 0.0
    %383 = vadd.xlane.f32.xlu0 %v382
    %v384 = vpop.xlane.xlu0 %383
    %v385 = vsel %vm355, %v369, 0.0
    %386 = vadd.xlane.f32.xlu0 %v385
    %v387 = vpop.xlane.xlu0 %386
    %v388 = vrcp.pop 32.0
    %v389 = vmul.f32 %v384, %v388
    %v390 = vmul.f32 %v387, %v388
    %v391 = vsub.f32 %v368, %v389
    %v392 = vsub.f32 %v369, %v390
    %v393 = vmul.f32 %v391, %v391
    %v394 = vmul.f32 %v392, %v392
    %v395 = vsel %vm355, %v393, 0.0
    %396 = vadd.xlane.f32.xlu0 %v395
    %v397 = vpop.xlane.xlu0 %396
    %v398 = vsel %vm355, %v394, 0.0
    %399 = vadd.xlane.f32.xlu0 %v398
    %v400 = vpop.xlane.xlu0 %399
    %v401 = vmul.f32 %v397, %v388
    %v402 = vmul.f32 %v400, %v388
    %v403 = vadd.f32 %v401, 1e-06
    %v404 = vadd.f32 %v402, 1e-06
    %v405 = vrsqrt.pop %v403
    %v406 = vrsqrt.pop %v404
    %v407 = vmul.f32 %v391, %v405
    %v408 = vmul.f32 %v392, %v406
    %v409 = vlaneseq
    %v410 = vshrl.u32 %v409, 7
    %v411 = vsub.s32 0, %v410
    %v412 = vrot.slane %v374, %v411
    %v413 = vmul.f32 %v407, %v412
    %v414 = vmul.f32 %v408, %v412
    %v415 = vlaneseq
    %v416 = vshrl.u32 %v415, 7
    %v417 = vsub.s32 0, %v416
    %v418 = vrot.slane %v375, %v417
    %v419 = vadd.f32 %v413, %v418
    %v420 = vadd.f32 %v414, %v418
    %v421 = vld [vmem:[%s6] sm:$0xff]
    %v422 = vld [vmem:[%s6 + $0x8] sm:$0xff]
    %v423 = vld [vmem:[%s6 + $0x10] sm:$0xff]
    %v424 = vld [vmem:[%s6 + $0x18] sm:$0xff]
    %v425 = vlaneseq
    %v426 = vshrl.u32 %v425, 7
    %v427 = vsub.s32 0, %v426
    %v428 = vrot.slane %v378, %v427
    %v430 = vsel %vm355, %v419, 0
    %v433 = vsel %vm355, %v420, 0
    %435 = vmatprep.subr.mxu0 0.0
    %436 = vmatpush1.msra.mxu0 %v421
    %437 = vmatprep.subr.mxu0 0.0
    %438 = vmatpush1.msra.mxu0 %v422
    %439 = vmatprep.subr.mxu0 0.0
    %440 = vmatpush1.msra.mxu0 %v423
    %441 = vmatprep.subr.mxu0 0.0
    %442 = vmatpush1.msra.mxu0 %v424
    %443 = vmatprep.subr.mxu0 0.0
    %444 = vmatpush1.msra.mxu0 0.0
    %445 = vmatprep.subr.mxu0 0.0
    %446 = vmatpush1.msra.mxu0 0.0
    %447 = vmatprep.subr.mxu0 0.0
    %448 = vmatpush1.msra.mxu0 0.0
    %449 = vmatprep.subr.mxu0 0.0
    %450 = vmatpush1.msra.mxu0 0.0
    %451 = vmatprep.subr.mxu0 0.0
    %452 = vmatpush1.msra.mxu0 0.0
    %453 = vmatprep.subr.mxu0 0.0
    %454 = vmatpush1.msra.mxu0 0.0
    %455 = vmatprep.subr.mxu0 0.0
    %456 = vmatpush1.msra.mxu0 0.0
    %457 = vmatprep.subr.mxu0 0.0
    %458 = vmatpush1.msra.mxu0 0.0
    %459 = vmatprep.subr.mxu0 0.0
    %460 = vmatpush1.msra.mxu0 0.0
    %461 = vmatprep.subr.mxu0 0.0
    %462 = vmatpush1.msra.mxu0 0.0
    %463 = vmatprep.subr.mxu0 0.0
    %464 = vmatpush1.msra.mxu0 0.0
    %465 = vmatprep.subr.mxu0 0.0
    %466 = vmatpush1.msra.mxu0 0.0
    %467 = vmatprep.subr.mxu0 0.0
    %468 = vmatpush1.msra.mxu0 0.0
    %469 = vmatprep.subr.mxu0 0.0
    %470 = vmatpush1.msra.mxu0 0.0
    %471 = vmatprep.subr.mxu0 0.0
    %472 = vmatpush1.msra.mxu0 0.0
    %473 = vmatprep.subr.mxu0 0.0
    %474 = vmatpush1.msra.mxu0 0.0
    %475 = vmatprep.subr.mxu0 0.0
    %476 = vmatpush1.msra.mxu0 0.0
    %477 = vmatprep.subr.mxu0 0.0
    %478 = vmatpush1.msra.mxu0 0.0
    %479 = vmatprep.subr.mxu0 0.0
    %480 = vmatpush1.msra.mxu0 0.0
    %481 = vmatprep.subr.mxu0 0.0
    %482 = vmatpush1.msra.mxu0 0.0
    %483 = vmatprep.subr.mxu0 0.0
    %484 = vmatpush1.msra.mxu0 0.0
    %485 = vmatprep.subr.mxu0 0.0
    %486 = vmatpush1.msra.mxu0 0.0
    %487 = vmatprep.subr.mxu0 0.0
    %488 = vmatpush1.msra.mxu0 0.0
    %489 = vmatprep.subr.mxu0 0.0
    %490 = vmatpush1.msra.mxu0 0.0
    %491 = vmatprep.subr.mxu0 0.0
    %492 = vmatpush1.msra.mxu0 0.0
    %493 = vmatprep.subr.mxu0 0.0
    %494 = vmatpush1.msra.mxu0 0.0
    %495 = vmatprep.subr.mxu0 0.0
    %496 = vmatpush1.msra.mxu0 0.0
    %497 = vmatprep.subr.mxu0 0.0
    %498 = vmatpush1.msra.mxu0 0.0
    %499 = vmatprep.mubr.f32.mxu0 0.0
    %500 = vmatmul.mubr.f32.gmra.mrb[0].mxu0 %v430
    %v501 = vpop.f32.mrb[0].mxu0
    %v502 = vadd.f32 %v428, %v501
    %v503 = vpop.f32.mrb[0].mxu0
    %504 = vmatprep.mubr.f32.mxu0 0.0
    %505 = vmatmul.mubr.f32.gmra.mrb[0].mxu0 %v433
    %v506 = vpop.f32.mrb[0].mxu0
    %v507 = vadd.f32 %v428, %v506
    %v508 = vpop.f32.mrb[0].mxu0
    %509 = vdwg.mxu0
    %511 = vrot.lane.b32.xlu0 %v502, 96
    %v512 = vpop.permute.xlu0 %511
    %vm513 = vcmask 64512
    %v514 = vsel %vm513, %v502, 0
    %v516 = vsel %vm513, %v512, 0
    %518 = vmatprep.subr.mxu0 0.0
    %519 = vmatpush1.xpose.msra.mxu0 %v516
    %520 = vmatprep.subr.mxu0 0.0
    %521 = vmatpush1.xpose.msra.mxu0 0.0
    %522 = vmatprep.subr.mxu0 0.0
    %523 = vmatpush1.xpose.msra.mxu0 0.0
    %524 = vmatprep.subr.mxu0 0.0
    %525 = vmatpush1.xpose.msra.mxu0 0.0
    %526 = vmatprep.subr.mxu0 0.0
    %527 = vmatpush1.xpose.msra.mxu0 0.0
    %528 = vmatprep.subr.mxu0 0.0
    %529 = vmatpush1.xpose.msra.mxu0 0.0
    %530 = vmatprep.subr.mxu0 0.0
    %531 = vmatpush1.xpose.msra.mxu0 0.0
    %532 = vmatprep.subr.mxu0 0.0
    %533 = vmatpush1.xpose.msra.mxu0 0.0
    %534 = vmatprep.subr.mxu0 0.0
    %535 = vmatpush1.xpose.msra.mxu0 0.0
    %536 = vmatprep.subr.mxu0 0.0
    %537 = vmatpush1.xpose.msra.mxu0 0.0
    %538 = vmatprep.subr.mxu0 0.0
    %539 = vmatpush1.xpose.msra.mxu0 0.0
    %540 = vmatprep.subr.mxu0 0.0
    %541 = vmatpush1.xpose.msra.mxu0 0.0
    %542 = vmatprep.subr.mxu0 0.0
    %543 = vmatpush1.xpose.msra.mxu0 0.0
    %544 = vmatprep.subr.mxu0 0.0
    %545 = vmatpush1.xpose.msra.mxu0 0.0
    %546 = vmatprep.subr.mxu0 0.0
    %547 = vmatpush1.xpose.msra.mxu0 0.0
    %548 = vmatprep.subr.mxu0 0.0
    %549 = vmatpush1.xpose.msra.mxu0 0.0
    %550 = vmatprep.subr.mxu0 0.0
    %551 = vmatpush1.xpose.msra.mxu0 0.0
    %552 = vmatprep.subr.mxu0 0.0
    %553 = vmatpush1.xpose.msra.mxu0 0.0
    %554 = vmatprep.subr.mxu0 0.0
    %555 = vmatpush1.xpose.msra.mxu0 0.0
    %556 = vmatprep.subr.mxu0 0.0
    %557 = vmatpush1.xpose.msra.mxu0 0.0
    %558 = vmatprep.subr.mxu0 0.0
    %559 = vmatpush1.xpose.msra.mxu0 0.0
    %560 = vmatprep.subr.mxu0 0.0
    %561 = vmatpush1.xpose.msra.mxu0 0.0
    %562 = vmatprep.subr.mxu0 0.0
    %563 = vmatpush1.xpose.msra.mxu0 0.0
    %564 = vmatprep.subr.mxu0 0.0
    %565 = vmatpush1.xpose.msra.mxu0 0.0
    %566 = vmatprep.subr.mxu0 0.0
    %567 = vmatpush1.xpose.msra.mxu0 0.0
    %568 = vmatprep.subr.mxu0 0.0
    %569 = vmatpush1.xpose.msra.mxu0 0.0
    %570 = vmatprep.subr.mxu0 0.0
    %571 = vmatpush1.xpose.msra.mxu0 0.0
    %572 = vmatprep.subr.mxu0 0.0
    %573 = vmatpush1.xpose.msra.mxu0 0.0
    %574 = vmatprep.subr.mxu0 0.0
    %575 = vmatpush1.xpose.msra.mxu0 0.0
    %576 = vmatprep.subr.mxu0 0.0
    %577 = vmatpush1.xpose.msra.mxu0 0.0
    %578 = vmatprep.subr.mxu0 0.0
    %579 = vmatpush1.xpose.msra.mxu0 0.0
    %580 = vmatprep.subr.mxu0 0.0
    %581 = vmatpush1.xpose.msra.mxu0 0.0
    %582 = vmatprep.mubr.f32.mxu0 0.0
    %583 = vmatmul.mubr.f32.gmra.mrb[0].mxu0 %v514
    %v584 = vpop.f32.mrb[0].mxu0
    %v585 = vadd.f32 0.0, %v584
    %v586 = vpop.f32.mrb[0].mxu0
    %587 = vdwg.mxu0
    %589 = vrot.lane.b32.xlu0 %v507, 96
    %v590 = vpop.permute.xlu0 %589
    %v591 = vsel %vm513, %v507, 0
    %v593 = vsel %vm513, %v590, 0
    %595 = vmatprep.subr.mxu0 0.0
    %596 = vmatpush1.xpose.msra.mxu0 %v593
    %597 = vmatprep.subr.mxu0 0.0
    %598 = vmatpush1.xpose.msra.mxu0 0.0
    %599 = vmatprep.subr.mxu0 0.0
    %600 = vmatpush1.xpose.msra.mxu0 0.0
    %601 = vmatprep.subr.mxu0 0.0
    %602 = vmatpush1.xpose.msra.mxu0 0.0
    %603 = vmatprep.subr.mxu0 0.0
    %604 = vmatpush1.xpose.msra.mxu0 0.0
    %605 = vmatprep.subr.mxu0 0.0
    %606 = vmatpush1.xpose.msra.mxu0 0.0
    %607 = vmatprep.subr.mxu0 0.0
    %608 = vmatpush1.xpose.msra.mxu0 0.0
    %609 = vmatprep.subr.mxu0 0.0
    %610 = vmatpush1.xpose.msra.mxu0 0.0
    %611 = vmatprep.subr.mxu0 0.0
    %612 = vmatpush1.xpose.msra.mxu0 0.0
    %613 = vmatprep.subr.mxu0 0.0
    %614 = vmatpush1.xpose.msra.mxu0 0.0
    %615 = vmatprep.subr.mxu0 0.0
    %616 = vmatpush1.xpose.msra.mxu0 0.0
    %617 = vmatprep.subr.mxu0 0.0
    %618 = vmatpush1.xpose.msra.mxu0 0.0
    %619 = vmatprep.subr.mxu0 0.0
    %620 = vmatpush1.xpose.msra.mxu0 0.0
    %621 = vmatprep.subr.mxu0 0.0
    %622 = vmatpush1.xpose.msra.mxu0 0.0
    %623 = vmatprep.subr.mxu0 0.0
    %624 = vmatpush1.xpose.msra.mxu0 0.0
    %625 = vmatprep.subr.mxu0 0.0
    %626 = vmatpush1.xpose.msra.mxu0 0.0
    %627 = vmatprep.subr.mxu0 0.0
    %628 = vmatpush1.xpose.msra.mxu0 0.0
    %629 = vmatprep.subr.mxu0 0.0
    %630 = vmatpush1.xpose.msra.mxu0 0.0
    %631 = vmatprep.subr.mxu0 0.0
    %632 = vmatpush1.xpose.msra.mxu0 0.0
    %633 = vmatprep.subr.mxu0 0.0
    %634 = vmatpush1.xpose.msra.mxu0 0.0
    %635 = vmatprep.subr.mxu0 0.0
    %636 = vmatpush1.xpose.msra.mxu0 0.0
    %637 = vmatprep.subr.mxu0 0.0
    %638 = vmatpush1.xpose.msra.mxu0 0.0
    %639 = vmatprep.subr.mxu0 0.0
    %640 = vmatpush1.xpose.msra.mxu0 0.0
    %641 = vmatprep.subr.mxu0 0.0
    %642 = vmatpush1.xpose.msra.mxu0 0.0
    %643 = vmatprep.subr.mxu0 0.0
    %644 = vmatpush1.xpose.msra.mxu0 0.0
    %645 = vmatprep.subr.mxu0 0.0
    %646 = vmatpush1.xpose.msra.mxu0 0.0
    %647 = vmatprep.subr.mxu0 0.0
    %648 = vmatpush1.xpose.msra.mxu0 0.0
    %649 = vmatprep.subr.mxu0 0.0
    %650 = vmatpush1.xpose.msra.mxu0 0.0
    %651 = vmatprep.subr.mxu0 0.0
    %652 = vmatpush1.xpose.msra.mxu0 0.0
    %653 = vmatprep.subr.mxu0 0.0
    %654 = vmatpush1.xpose.msra.mxu0 0.0
    %655 = vmatprep.subr.mxu0 0.0
    %656 = vmatpush1.xpose.msra.mxu0 0.0
    %657 = vmatprep.subr.mxu0 0.0
    %658 = vmatpush1.xpose.msra.mxu0 0.0
    %659 = vmatprep.mubr.f32.mxu0 0.0
    %660 = vmatmul.mubr.f32.gmra.mrb[0].mxu0 %v591
    %v661 = vpop.f32.mrb[0].mxu0
    %v662 = vadd.f32 0.0, %v661
    %v663 = vpop.f32.mrb[0].mxu0
    %664 = vdwg.mxu0
    %v665 = vmul.f32 %v585, 0.35355338
    %v666 = vmul.f32 %v662, 0.35355338
    %v667 = vadd.f32 %v665, %v373
    %v668 = vadd.f32 %v666, %v373
    %v669 = vsel %vm513, %v667, -inf
    %670 = vmax.xlane.f32.xlu0 %v669
    %v671 = vpop.xlane.xlu0 %670
    %v672 = vsel %vm513, %v668, -inf
    %673 = vmax.xlane.f32.xlu0 %v672
    %v674 = vpop.xlane.xlu0 %673
    %v675 = vsub.f32 %v667, %v671
    %v676 = vsub.f32 %v668, %v674
    %v677 = vmul.f32 %v675, 1.442695
    %v678 = vpow.pop %v677
    %v679 = vmul.f32 %v676, 1.442695
    %v680 = vpow.pop %v679
    %v681 = vsel %vm513, %v678, 0.0
    %682 = vadd.xlane.f32.xlu0 %v681
    %v683 = vpop.xlane.xlu0 %682
    %v684 = vsel %vm513, %v680, 0.0
    %685 = vadd.xlane.f32.xlu0 %v684
    %v686 = vpop.xlane.xlu0 %685
    %v687 = vrcp.pop %v683
    %v688 = vmul.f32 %v678, %v687
    %v689 = vrcp.pop %v686
    %v690 = vmul.f32 %v680, %v689
    %691 = vrot.lane.b32.xlu0 %v502, 64
    %v692 = vpop.permute.xlu0 %691
    %v695 = vsel %vm513, %v688, 0
    %697 = vmatprep.subr.mxu0 0.0
    %698 = vmatpush1.msra.mxu0 %v692
    %699 = vmatprep.subr.mxu0 0.0
    %700 = vmatpush1.msra.mxu0 0.0
    %701 = vmatprep.subr.mxu0 0.0
    %702 = vmatpush1.msra.mxu0 0.0
    %703 = vmatprep.subr.mxu0 0.0
    %704 = vmatpush1.msra.mxu0 0.0
    %705 = vmatprep.subr.mxu0 0.0
    %706 = vmatpush1.msra.mxu0 0.0
    %707 = vmatprep.subr.mxu0 0.0
    %708 = vmatpush1.msra.mxu0 0.0
    %709 = vmatprep.subr.mxu0 0.0
    %710 = vmatpush1.msra.mxu0 0.0
    %711 = vmatprep.subr.mxu0 0.0
    %712 = vmatpush1.msra.mxu0 0.0
    %713 = vmatprep.subr.mxu0 0.0
    %714 = vmatpush1.msra.mxu0 0.0
    %715 = vmatprep.subr.mxu0 0.0
    %716 = vmatpush1.msra.mxu0 0.0
    %717 = vmatprep.subr.mxu0 0.0
    %718 = vmatpush1.msra.mxu0 0.0
    %719 = vmatprep.subr.mxu0 0.0
    %720 = vmatpush1.msra.mxu0 0.0
    %721 = vmatprep.subr.mxu0 0.0
    %722 = vmatpush1.msra.mxu0 0.0
    %723 = vmatprep.subr.mxu0 0.0
    %724 = vmatpush1.msra.mxu0 0.0
    %725 = vmatprep.subr.mxu0 0.0
    %726 = vmatpush1.msra.mxu0 0.0
    %727 = vmatprep.subr.mxu0 0.0
    %728 = vmatpush1.msra.mxu0 0.0
    %729 = vmatprep.subr.mxu0 0.0
    %730 = vmatpush1.msra.mxu0 0.0
    %731 = vmatprep.subr.mxu0 0.0
    %732 = vmatpush1.msra.mxu0 0.0
    %733 = vmatprep.subr.mxu0 0.0
    %734 = vmatpush1.msra.mxu0 0.0
    %735 = vmatprep.subr.mxu0 0.0
    %736 = vmatpush1.msra.mxu0 0.0
    %737 = vmatprep.subr.mxu0 0.0
    %738 = vmatpush1.msra.mxu0 0.0
    %739 = vmatprep.subr.mxu0 0.0
    %740 = vmatpush1.msra.mxu0 0.0
    %741 = vmatprep.subr.mxu0 0.0
    %742 = vmatpush1.msra.mxu0 0.0
    %743 = vmatprep.subr.mxu0 0.0
    %744 = vmatpush1.msra.mxu0 0.0
    %745 = vmatprep.subr.mxu0 0.0
    %746 = vmatpush1.msra.mxu0 0.0
    %747 = vmatprep.subr.mxu0 0.0
    %748 = vmatpush1.msra.mxu0 0.0
    %749 = vmatprep.subr.mxu0 0.0
    %750 = vmatpush1.msra.mxu0 0.0
    %751 = vmatprep.subr.mxu0 0.0
    %752 = vmatpush1.msra.mxu0 0.0
    %753 = vmatprep.subr.mxu0 0.0
    %754 = vmatpush1.msra.mxu0 0.0
    %755 = vmatprep.subr.mxu0 0.0
    %756 = vmatpush1.msra.mxu0 0.0
    %757 = vmatprep.subr.mxu0 0.0
    %758 = vmatpush1.msra.mxu0 0.0
    %759 = vmatprep.subr.mxu0 0.0
    %760 = vmatpush1.msra.mxu0 0.0
    %761 = vmatprep.mubr.f32.mxu0 0.0
    %762 = vmatmul.mubr.f32.gmra.mrb[0].mxu0 %v695
    %v763 = vpop.f32.mrb[0].mxu0
    %v764 = vadd.f32 0.0, %v763
    %v765 = vpop.f32.mrb[0].mxu0
    %766 = vdwg.mxu0
    %767 = vrot.lane.b32.xlu0 %v507, 64
    %v768 = vpop.permute.xlu0 %767
    %v771 = vsel %vm513, %v690, 0
    %773 = vmatprep.subr.mxu0 0.0
    %774 = vmatpush1.msra.mxu0 %v768
    %775 = vmatprep.subr.mxu0 0.0
    %776 = vmatpush1.msra.mxu0 0.0
    %777 = vmatprep.subr.mxu0 0.0
    %778 = vmatpush1.msra.mxu0 0.0
    %779 = vmatprep.subr.mxu0 0.0
    %780 = vmatpush1.msra.mxu0 0.0
    %781 = vmatprep.subr.mxu0 0.0
    %782 = vmatpush1.msra.mxu0 0.0
    %783 = vmatprep.subr.mxu0 0.0
    %784 = vmatpush1.msra.mxu0 0.0
    %785 = vmatprep.subr.mxu0 0.0
    %786 = vmatpush1.msra.mxu0 0.0
    %787 = vmatprep.subr.mxu0 0.0
    %788 = vmatpush1.msra.mxu0 0.0
    %789 = vmatprep.subr.mxu0 0.0
    %790 = vmatpush1.msra.mxu0 0.0
    %791 = vmatprep.subr.mxu0 0.0
    %792 = vmatpush1.msra.mxu0 0.0
    %793 = vmatprep.subr.mxu0 0.0
    %794 = vmatpush1.msra.mxu0 0.0
    %795 = vmatprep.subr.mxu0 0.0
    %796 = vmatpush1.msra.mxu0 0.0
    %797 = vmatprep.subr.mxu0 0.0
    %798 = vmatpush1.msra.mxu0 0.0
    %799 = vmatprep.subr.mxu0 0.0
    %800 = vmatpush1.msra.mxu0 0.0
    %801 = vmatprep.subr.mxu0 0.0
    %802 = vmatpush1.msra.mxu0 0.0
    %803 = vmatprep.subr.mxu0 0.0
    %804 = vmatpush1.msra.mxu0 0.0
    %805 = vmatprep.subr.mxu0 0.0
    %806 = vmatpush1.msra.mxu0 0.0
    %807 = vmatprep.subr.mxu0 0.0
    %808 = vmatpush1.msra.mxu0 0.0
    %809 = vmatprep.subr.mxu0 0.0
    %810 = vmatpush1.msra.mxu0 0.0
    %811 = vmatprep.subr.mxu0 0.0
    %812 = vmatpush1.msra.mxu0 0.0
    %813 = vmatprep.subr.mxu0 0.0
    %814 = vmatpush1.msra.mxu0 0.0
    %815 = vmatprep.subr.mxu0 0.0
    %816 = vmatpush1.msra.mxu0 0.0
    %817 = vmatprep.subr.mxu0 0.0
    %818 = vmatpush1.msra.mxu0 0.0
    %819 = vmatprep.subr.mxu0 0.0
    %820 = vmatpush1.msra.mxu0 0.0
    %821 = vmatprep.subr.mxu0 0.0
    %822 = vmatpush1.msra.mxu0 0.0
    %823 = vmatprep.subr.mxu0 0.0
    %824 = vmatpush1.msra.mxu0 0.0
    %825 = vmatprep.subr.mxu0 0.0
    %826 = vmatpush1.msra.mxu0 0.0
    %827 = vmatprep.subr.mxu0 0.0
    %828 = vmatpush1.msra.mxu0 0.0
    %829 = vmatprep.subr.mxu0 0.0
    %830 = vmatpush1.msra.mxu0 0.0
    %831 = vmatprep.subr.mxu0 0.0
    %832 = vmatpush1.msra.mxu0 0.0
    %833 = vmatprep.subr.mxu0 0.0
    %834 = vmatpush1.msra.mxu0 0.0
    %835 = vmatprep.subr.mxu0 0.0
    %836 = vmatpush1.msra.mxu0 0.0
    %837 = vmatprep.mubr.f32.mxu0 0.0
    %838 = vmatmul.mubr.f32.gmra.mrb[0].mxu0 %v771
    %v839 = vpop.f32.mrb[0].mxu0
    %v840 = vadd.f32 0.0, %v839
    %v841 = vpop.f32.mrb[0].mxu0
    %842 = vdwg.mxu0
    %843 = vst.msk [vmem:[#allocation2] sm:$0xff] %vm513, %v764
    %844 = vst.msk [vmem:[#allocation2 + $0x8] sm:$0xff] %vm513, %v840
    %845 = vrot.lane.b32.xlu0 %v502, 120
    %v846 = vpop.permute.xlu0 %845
    %847 = vrot.lane.b32.xlu0 %v502, 88
    %v848 = vpop.permute.xlu0 %847
    %v849 = vsel %vm513, %v846, 0
    %v851 = vsel %vm513, %v848, 0
    %853 = vmatprep.subr.mxu0 0.0
    %854 = vmatpush1.xpose.msra.mxu0 %v851
    %855 = vmatprep.subr.mxu0 0.0
    %856 = vmatpush1.xpose.msra.mxu0 0.0
    %857 = vmatprep.subr.mxu0 0.0
    %858 = vmatpush1.xpose.msra.mxu0 0.0
    %859 = vmatprep.subr.mxu0 0.0
    %860 = vmatpush1.xpose.msra.mxu0 0.0
    %861 = vmatprep.subr.mxu0 0.0
    %862 = vmatpush1.xpose.msra.mxu0 0.0
    %863 = vmatprep.subr.mxu0 0.0
    %864 = vmatpush1.xpose.msra.mxu0 0.0
    %865 = vmatprep.subr.mxu0 0.0
    %866 = vmatpush1.xpose.msra.mxu0 0.0
    %867 = vmatprep.subr.mxu0 0.0
    %868 = vmatpush1.xpose.msra.mxu0 0.0
    %869 = vmatprep.subr.mxu0 0.0
    %870 = vmatpush1.xpose.msra.mxu0 0.0
    %871 = vmatprep.subr.mxu0 0.0
    %872 = vmatpush1.xpose.msra.mxu0 0.0
    %873 = vmatprep.subr.mxu0 0.0
    %874 = vmatpush1.xpose.msra.mxu0 0.0
    %875 = vmatprep.subr.mxu0 0.0
    %876 = vmatpush1.xpose.msra.mxu0 0.0
    %877 = vmatprep.subr.mxu0 0.0
    %878 = vmatpush1.xpose.msra.mxu0 0.0
    %879 = vmatprep.subr.mxu0 0.0
    %880 = vmatpush1.xpose.msra.mxu0 0.0
    %881 = vmatprep.subr.mxu0 0.0
    %882 = vmatpush1.xpose.msra.mxu0 0.0
    %883 = vmatprep.subr.mxu0 0.0
    %884 = vmatpush1.xpose.msra.mxu0 0.0
    %885 = vmatprep.subr.mxu0 0.0
    %886 = vmatpush1.xpose.msra.mxu0 0.0
    %887 = vmatprep.subr.mxu0 0.0
    %888 = vmatpush1.xpose.msra.mxu0 0.0
    %889 = vmatprep.subr.mxu0 0.0
    %890 = vmatpush1.xpose.msra.mxu0 0.0
    %891 = vmatprep.subr.mxu0 0.0
    %892 = vmatpush1.xpose.msra.mxu0 0.0
    %893 = vmatprep.subr.mxu0 0.0
    %894 = vmatpush1.xpose.msra.mxu0 0.0
    %895 = vmatprep.subr.mxu0 0.0
    %896 = vmatpush1.xpose.msra.mxu0 0.0
    %897 = vmatprep.subr.mxu0 0.0
    %898 = vmatpush1.xpose.msra.mxu0 0.0
    %899 = vmatprep.subr.mxu0 0.0
    %900 = vmatpush1.xpose.msra.mxu0 0.0
    %901 = vmatprep.subr.mxu0 0.0
    %902 = vmatpush1.xpose.msra.mxu0 0.0
    %903 = vmatprep.subr.mxu0 0.0
    %904 = vmatpush1.xpose.msra.mxu0 0.0
    %905 = vmatprep.subr.mxu0 0.0
    %906 = vmatpush1.xpose.msra.mxu0 0.0
    %907 = vmatprep.subr.mxu0 0.0
    %908 = vmatpush1.xpose.msra.mxu0 0.0
    %909 = vmatprep.subr.mxu0 0.0
    %910 = vmatpush1.xpose.msra.mxu0 0.0
    %911 = vmatprep.subr.mxu0 0.0
    %912 = vmatpush1.xpose.msra.mxu0 0.0
    %913 = vmatprep.subr.mxu0 0.0
    %914 = vmatpush1.xpose.msra.mxu0 0.0
    %915 = vmatprep.subr.mxu0 0.0
    %916 = vmatpush1.xpose.msra.mxu0 0.0
    %917 = vmatprep.mubr.f32.mxu0 0.0
    %918 = vmatmul.mubr.f32.gmra.mrb[0].mxu0 %v849
    %v919 = vpop.f32.mrb[0].mxu0
    %v920 = vadd.f32 0.0, %v919
    %v921 = vpop.f32.mrb[0].mxu0
    %922 = vdwg.mxu0
    %923 = vrot.lane.b32.xlu0 %v507, 120
    %v924 = vpop.permute.xlu0 %923
    %925 = vrot.lane.b32.xlu0 %v507, 88
    %v926 = vpop.permute.xlu0 %925
    %v927 = vsel %vm513, %v924, 0
    %v929 = vsel %vm513, %v926, 0
    %931 = vmatprep.subr.mxu0 0.0
    %932 = vmatpush1.xpose.msra.mxu0 %v929
    %933 = vmatprep.subr.mxu0 0.0
    %934 = vmatpush1.xpose.msra.mxu0 0.0
    %935 = vmatprep.subr.mxu0 0.0
    %936 = vmatpush1.xpose.msra.mxu0 0.0
    %937 = vmatprep.subr.mxu0 0.0
    %938 = vmatpush1.xpose.msra.mxu0 0.0
    %939 = vmatprep.subr.mxu0 0.0
    %940 = vmatpush1.xpose.msra.mxu0 0.0
    %941 = vmatprep.subr.mxu0 0.0
    %942 = vmatpush1.xpose.msra.mxu0 0.0
    %943 = vmatprep.subr.mxu0 0.0
    %944 = vmatpush1.xpose.msra.mxu0 0.0
    %945 = vmatprep.subr.mxu0 0.0
    %946 = vmatpush1.xpose.msra.mxu0 0.0
    %947 = vmatprep.subr.mxu0 0.0
    %948 = vmatpush1.xpose.msra.mxu0 0.0
    %949 = vmatprep.subr.mxu0 0.0
    %950 = vmatpush1.xpose.msra.mxu0 0.0
    %951 = vmatprep.subr.mxu0 0.0
    %952 = vmatpush1.xpose.msra.mxu0 0.0
    %953 = vmatprep.subr.mxu0 0.0
    %954 = vmatpush1.xpose.msra.mxu0 0.0
    %955 = vmatprep.subr.mxu0 0.0
    %956 = vmatpush1.xpose.msra.mxu0 0.0
    %957 = vmatprep.subr.mxu0 0.0
    %958 = vmatpush1.xpose.msra.mxu0 0.0
    %959 = vmatprep.subr.mxu0 0.0
    %960 = vmatpush1.xpose.msra.mxu0 0.0
    %961 = vmatprep.subr.mxu0 0.0
    %962 = vmatpush1.xpose.msra.mxu0 0.0
    %963 = vmatprep.subr.mxu0 0.0
    %964 = vmatpush1.xpose.msra.mxu0 0.0
    %965 = vmatprep.subr.mxu0 0.0
    %966 = vmatpush1.xpose.msra.mxu0 0.0
    %967 = vmatprep.subr.mxu0 0.0
    %968 = vmatpush1.xpose.msra.mxu0 0.0
    %969 = vmatprep.subr.mxu0 0.0
    %970 = vmatpush1.xpose.msra.mxu0 0.0
    %971 = vmatprep.subr.mxu0 0.0
    %972 = vmatpush1.xpose.msra.mxu0 0.0
    %973 = vmatprep.subr.mxu0 0.0
    %974 = vmatpush1.xpose.msra.mxu0 0.0
    %975 = vmatprep.subr.mxu0 0.0
    %976 = vmatpush1.xpose.msra.mxu0 0.0
    %977 = vmatprep.subr.mxu0 0.0
    %978 = vmatpush1.xpose.msra.mxu0 0.0
    %979 = vmatprep.subr.mxu0 0.0
    %980 = vmatpush1.xpose.msra.mxu0 0.0
    %981 = vmatprep.subr.mxu0 0.0
    %982 = vmatpush1.xpose.msra.mxu0 0.0
    %983 = vmatprep.subr.mxu0 0.0
    %984 = vmatpush1.xpose.msra.mxu0 0.0
    %985 = vmatprep.subr.mxu0 0.0
    %986 = vmatpush1.xpose.msra.mxu0 0.0
    %987 = vmatprep.subr.mxu0 0.0
    %988 = vmatpush1.xpose.msra.mxu0 0.0
    %989 = vmatprep.subr.mxu0 0.0
    %990 = vmatpush1.xpose.msra.mxu0 0.0
    %991 = vmatprep.subr.mxu0 0.0
    %992 = vmatpush1.xpose.msra.mxu0 0.0
    %993 = vmatprep.subr.mxu0 0.0
    %994 = vmatpush1.xpose.msra.mxu0 0.0
    %995 = vmatprep.mubr.f32.mxu0 0.0
    %996 = vmatmul.mubr.f32.gmra.mrb[0].mxu0 %v927
    %v997 = vpop.f32.mrb[0].mxu0
    %v998 = vadd.f32 0.0, %v997
    %v999 = vpop.f32.mrb[0].mxu0
    %1000 = vdwg.mxu0
    %v1001 = vmul.f32 %v920, 0.35355338
    %v1002 = vmul.f32 %v998, 0.35355338
    %v1003 = vadd.f32 %v1001, %v373
    %v1004 = vadd.f32 %v1002, %v373
    %v1005 = vsel %vm513, %v1003, -inf
    %1006 = vmax.xlane.f32.xlu0 %v1005
    %v1007 = vpop.xlane.xlu0 %1006
    %v1008 = vsel %vm513, %v1004, -inf
    %1009 = vmax.xlane.f32.xlu0 %v1008
    %v1010 = vpop.xlane.xlu0 %1009
    %v1011 = vsub.f32 %v1003, %v1007
    %v1012 = vsub.f32 %v1004, %v1010
    %v1013 = vmul.f32 %v1011, 1.442695
    %v1014 = vpow.pop %v1013
    %v1015 = vmul.f32 %v1012, 1.442695
    %v1016 = vpow.pop %v1015
    %v1017 = vsel %vm513, %v1014, 0.0
    %1018 = vadd.xlane.f32.xlu0 %v1017
    %v1019 = vpop.xlane.xlu0 %1018
    %v1020 = vsel %vm513, %v1016, 0.0
    %1021 = vadd.xlane.f32.xlu0 %v1020
    %v1022 = vpop.xlane.xlu0 %1021
    %v1023 = vrcp.pop %v1019
    %v1024 = vmul.f32 %v1014, %v1023
    %v1025 = vrcp.pop %v1022
    %v1026 = vmul.f32 %v1016, %v1025
    %1027 = vrot.lane.b32.xlu0 %v502, 56
    %v1028 = vpop.permute.xlu0 %1027
    %v1031 = vsel %vm513, %v1024, 0
    %1033 = vmatprep.subr.mxu0 0.0
    %1034 = vmatpush1.msra.mxu0 %v1028
    %1035 = vmatprep.subr.mxu0 0.0
    %1036 = vmatpush1.msra.mxu0 0.0
    %1037 = vmatprep.subr.mxu0 0.0
    %1038 = vmatpush1.msra.mxu0 0.0
    %1039 = vmatprep.subr.mxu0 0.0
    %1040 = vmatpush1.msra.mxu0 0.0
    %1041 = vmatprep.subr.mxu0 0.0
    %1042 = vmatpush1.msra.mxu0 0.0
    %1043 = vmatprep.subr.mxu0 0.0
    %1044 = vmatpush1.msra.mxu0 0.0
    %1045 = vmatprep.subr.mxu0 0.0
    %1046 = vmatpush1.msra.mxu0 0.0
    %1047 = vmatprep.subr.mxu0 0.0
    %1048 = vmatpush1.msra.mxu0 0.0
    %1049 = vmatprep.subr.mxu0 0.0
    %1050 = vmatpush1.msra.mxu0 0.0
    %1051 = vmatprep.subr.mxu0 0.0
    %1052 = vmatpush1.msra.mxu0 0.0
    %1053 = vmatprep.subr.mxu0 0.0
    %1054 = vmatpush1.msra.mxu0 0.0
    %1055 = vmatprep.subr.mxu0 0.0
    %1056 = vmatpush1.msra.mxu0 0.0
    %1057 = vmatprep.subr.mxu0 0.0
    %1058 = vmatpush1.msra.mxu0 0.0
    %1059 = vmatprep.subr.mxu0 0.0
    %1060 = vmatpush1.msra.mxu0 0.0
    %1061 = vmatprep.subr.mxu0 0.0
    %1062 = vmatpush1.msra.mxu0 0.0
    %1063 = vmatprep.subr.mxu0 0.0
    %1064 = vmatpush1.msra.mxu0 0.0
    %1065 = vmatprep.subr.mxu0 0.0
    %1066 = vmatpush1.msra.mxu0 0.0
    %1067 = vmatprep.subr.mxu0 0.0
    %1068 = vmatpush1.msra.mxu0 0.0
    %1069 = vmatprep.subr.mxu0 0.0
    %1070 = vmatpush1.msra.mxu0 0.0
    %1071 = vmatprep.subr.mxu0 0.0
    %1072 = vmatpush1.msra.mxu0 0.0
    %1073 = vmatprep.subr.mxu0 0.0
    %1074 = vmatpush1.msra.mxu0 0.0
    %1075 = vmatprep.subr.mxu0 0.0
    %1076 = vmatpush1.msra.mxu0 0.0
    %1077 = vmatprep.subr.mxu0 0.0
    %1078 = vmatpush1.msra.mxu0 0.0
    %1079 = vmatprep.subr.mxu0 0.0
    %1080 = vmatpush1.msra.mxu0 0.0
    %1081 = vmatprep.subr.mxu0 0.0
    %1082 = vmatpush1.msra.mxu0 0.0
    %1083 = vmatprep.subr.mxu0 0.0
    %1084 = vmatpush1.msra.mxu0 0.0
    %1085 = vmatprep.subr.mxu0 0.0
    %1086 = vmatpush1.msra.mxu0 0.0
    %1087 = vmatprep.subr.mxu0 0.0
    %1088 = vmatpush1.msra.mxu0 0.0
    %1089 = vmatprep.subr.mxu0 0.0
    %1090 = vmatpush1.msra.mxu0 0.0
    %1091 = vmatprep.subr.mxu0 0.0
    %1092 = vmatpush1.msra.mxu0 0.0
    %1093 = vmatprep.subr.mxu0 0.0
    %1094 = vmatpush1.msra.mxu0 0.0
    %1095 = vmatprep.subr.mxu0 0.0
    %1096 = vmatpush1.msra.mxu0 0.0
    %1097 = vmatprep.mubr.f32.mxu0 0.0
    %1098 = vmatmul.mubr.f32.gmra.mrb[0].mxu0 %v1031
    %v1099 = vpop.f32.mrb[0].mxu0
    %v1100 = vadd.f32 0.0, %v1099
    %v1101 = vpop.f32.mrb[0].mxu0
    %1102 = vdwg.mxu0
    %1103 = vrot.lane.b32.xlu0 %v507, 56
    %v1104 = vpop.permute.xlu0 %1103
    %v1107 = vsel %vm513, %v1026, 0
    %1109 = vmatprep.subr.mxu0 0.0
    %1110 = vmatpush1.msra.mxu0 %v1104
    %1111 = vmatprep.subr.mxu0 0.0
    %1112 = vmatpush1.msra.mxu0 0.0
    %1113 = vmatprep.subr.mxu0 0.0
    %1114 = vmatpush1.msra.mxu0 0.0
    %1115 = vmatprep.subr.mxu0 0.0
    %1116 = vmatpush1.msra.mxu0 0.0
    %1117 = vmatprep.subr.mxu0 0.0
    %1118 = vmatpush1.msra.mxu0 0.0
    %1119 = vmatprep.subr.mxu0 0.0
    %1120 = vmatpush1.msra.mxu0 0.0
    %1121 = vmatprep.subr.mxu0 0.0
    %1122 = vmatpush1.msra.mxu0 0.0
    %1123 = vmatprep.subr.mxu0 0.0
    %1124 = vmatpush1.msra.mxu0 0.0
    %1125 = vmatprep.subr.mxu0 0.0
    %1126 = vmatpush1.msra.mxu0 0.0
    %1127 = vmatprep.subr.mxu0 0.0
    %1128 = vmatpush1.msra.mxu0 0.0
    %1129 = vmatprep.subr.mxu0 0.0
    %1130 = vmatpush1.msra.mxu0 0.0
    %1131 = vmatprep.subr.mxu0 0.0
    %1132 = vmatpush1.msra.mxu0 0.0
    %1133 = vmatprep.subr.mxu0 0.0
    %1134 = vmatpush1.msra.mxu0 0.0
    %1135 = vmatprep.subr.mxu0 0.0
    %1136 = vmatpush1.msra.mxu0 0.0
    %1137 = vmatprep.subr.mxu0 0.0
    %1138 = vmatpush1.msra.mxu0 0.0
    %1139 = vmatprep.subr.mxu0 0.0
    %1140 = vmatpush1.msra.mxu0 0.0
    %1141 = vmatprep.subr.mxu0 0.0
    %1142 = vmatpush1.msra.mxu0 0.0
    %1143 = vmatprep.subr.mxu0 0.0
    %1144 = vmatpush1.msra.mxu0 0.0
    %1145 = vmatprep.subr.mxu0 0.0
    %1146 = vmatpush1.msra.mxu0 0.0
    %1147 = vmatprep.subr.mxu0 0.0
    %1148 = vmatpush1.msra.mxu0 0.0
    %1149 = vmatprep.subr.mxu0 0.0
    %1150 = vmatpush1.msra.mxu0 0.0
    %1151 = vmatprep.subr.mxu0 0.0
    %1152 = vmatpush1.msra.mxu0 0.0
    %1153 = vmatprep.subr.mxu0 0.0
    %1154 = vmatpush1.msra.mxu0 0.0
    %1155 = vmatprep.subr.mxu0 0.0
    %1156 = vmatpush1.msra.mxu0 0.0
    %1157 = vmatprep.subr.mxu0 0.0
    %1158 = vmatpush1.msra.mxu0 0.0
    %1159 = vmatprep.subr.mxu0 0.0
    %1160 = vmatpush1.msra.mxu0 0.0
    %1161 = vmatprep.subr.mxu0 0.0
    %1162 = vmatpush1.msra.mxu0 0.0
    %1163 = vmatprep.subr.mxu0 0.0
    %1164 = vmatpush1.msra.mxu0 0.0
    %1165 = vmatprep.subr.mxu0 0.0
    %1166 = vmatpush1.msra.mxu0 0.0
    %1167 = vmatprep.subr.mxu0 0.0
    %1168 = vmatpush1.msra.mxu0 0.0
    %1169 = vmatprep.subr.mxu0 0.0
    %1170 = vmatpush1.msra.mxu0 0.0
    %1171 = vmatprep.subr.mxu0 0.0
    %1172 = vmatpush1.msra.mxu0 0.0
    %1173 = vmatprep.mubr.f32.mxu0 0.0
    %1174 = vmatmul.mubr.f32.gmra.mrb[0].mxu0 %v1107
    %v1175 = vpop.f32.mrb[0].mxu0
    %v1176 = vadd.f32 0.0, %v1175
    %v1177 = vpop.f32.mrb[0].mxu0
    %1178 = vdwg.mxu0
    %1181 = vrot.lane.b32.xlu0 %v1100, 8
    %v1182 = vpop.permute.xlu0 %1181
    %1183 = vrot.lane.b32.xlu0 %v1176, 8
    %v1184 = vpop.permute.xlu0 %1183
    %vm1187 = vcmask 130112
    %1188 = vst.msk [vmem:[#allocation2] sm:$0xff] %vm1187, %v1182
    %1189 = vst.msk [vmem:[#allocation2 + $0x8] sm:$0xff] %vm1187, %v1184
    %1190 = vrot.lane.b32.xlu0 %v502, 112
    %v1191 = vpop.permute.xlu0 %1190
    %1192 = vrot.lane.b32.xlu0 %v502, 80
    %v1193 = vpop.permute.xlu0 %1192
    %v1194 = vsel %vm513, %v1191, 0
    %v1196 = vsel %vm513, %v1193, 0
    %1198 = vmatprep.subr.mxu0 0.0
    %1199 = vmatpush1.xpose.msra.mxu0 %v1196
    %1200 = vmatprep.subr.mxu0 0.0
    %1201 = vmatpush1.xpose.msra.mxu0 0.0
    %1202 = vmatprep.subr.mxu0 0.0
    %1203 = vmatpush1.xpose.msra.mxu0 0.0
    %1204 = vmatprep.subr.mxu0 0.0
    %1205 = vmatpush1.xpose.msra.mxu0 0.0
    %1206 = vmatprep.subr.mxu0 0.0
    %1207 = vmatpush1.xpose.msra.mxu0 0.0
    %1208 = vmatprep.subr.mxu0 0.0
    %1209 = vmatpush1.xpose.msra.mxu0 0.0
    %1210 = vmatprep.subr.mxu0 0.0
    %1211 = vmatpush1.xpose.msra.mxu0 0.0
    %1212 = vmatprep.subr.mxu0 0.0
    %1213 = vmatpush1.xpose.msra.mxu0 0.0
    %1214 = vmatprep.subr.mxu0 0.0
    %1215 = vmatpush1.xpose.msra.mxu0 0.0
    %1216 = vmatprep.subr.mxu0 0.0
    %1217 = vmatpush1.xpose.msra.mxu0 0.0
    %1218 = vmatprep.subr.mxu0 0.0
    %1219 = vmatpush1.xpose.msra.mxu0 0.0
    %1220 = vmatprep.subr.mxu0 0.0
    %1221 = vmatpush1.xpose.msra.mxu0 0.0
    %1222 = vmatprep.subr.mxu0 0.0
    %1223 = vmatpush1.xpose.msra.mxu0 0.0
    %1224 = vmatprep.subr.mxu0 0.0
    %1225 = vmatpush1.xpose.msra.mxu0 0.0
    %1226 = vmatprep.subr.mxu0 0.0
    %1227 = vmatpush1.xpose.msra.mxu0 0.0
    %1228 = vmatprep.subr.mxu0 0.0
    %1229 = vmatpush1.xpose.msra.mxu0 0.0
    %1230 = vmatprep.subr.mxu0 0.0
    %1231 = vmatpush1.xpose.msra.mxu0 0.0
    %1232 = vmatprep.subr.mxu0 0.0
    %1233 = vmatpush1.xpose.msra.mxu0 0.0
    %1234 = vmatprep.subr.mxu0 0.0
    %1235 = vmatpush1.xpose.msra.mxu0 0.0
    %1236 = vmatprep.subr.mxu0 0.0
    %1237 = vmatpush1.xpose.msra.mxu0 0.0
    %1238 = vmatprep.subr.mxu0 0.0
    %1239 = vmatpush1.xpose.msra.mxu0 0.0
    %1240 = vmatprep.subr.mxu0 0.0
    %1241 = vmatpush1.xpose.msra.mxu0 0.0
    %1242 = vmatprep.subr.mxu0 0.0
    %1243 = vmatpush1.xpose.msra.mxu0 0.0
    %1244 = vmatprep.subr.mxu0 0.0
    %1245 = vmatpush1.xpose.msra.mxu0 0.0
    %1246 = vmatprep.subr.mxu0 0.0
    %1247 = vmatpush1.xpose.msra.mxu0 0.0
    %1248 = vmatprep.subr.mxu0 0.0
    %1249 = vmatpush1.xpose.msra.mxu0 0.0
    %1250 = vmatprep.subr.mxu0 0.0
    %1251 = vmatpush1.xpose.msra.mxu0 0.0
    %1252 = vmatprep.subr.mxu0 0.0
    %1253 = vmatpush1.xpose.msra.mxu0 0.0
    %1254 = vmatprep.subr.mxu0 0.0
    %1255 = vmatpush1.xpose.msra.mxu0 0.0
    %1256 = vmatprep.subr.mxu0 0.0
    %1257 = vmatpush1.xpose.msra.mxu0 0.0
    %1258 = vmatprep.subr.mxu0 0.0
    %1259 = vmatpush1.xpose.msra.mxu0 0.0
    %1260 = vmatprep.subr.mxu0 0.0
    %1261 = vmatpush1.xpose.msra.mxu0 0.0
    %1262 = vmatprep.mubr.f32.mxu0 0.0
    %1263 = vmatmul.mubr.f32.gmra.mrb[0].mxu0 %v1194
    %v1264 = vpop.f32.mrb[0].mxu0
    %v1265 = vadd.f32 0.0, %v1264
    %v1266 = vpop.f32.mrb[0].mxu0
    %1267 = vdwg.mxu0
    %1268 = vrot.lane.b32.xlu0 %v507, 112
    %v1269 = vpop.permute.xlu0 %1268
    %1270 = vrot.lane.b32.xlu0 %v507, 80
    %v1271 = vpop.permute.xlu0 %1270
    %v1272 = vsel %vm513, %v1269, 0
    %v1274 = vsel %vm513, %v1271, 0
    %1276 = vmatprep.subr.mxu0 0.0
    %1277 = vmatpush1.xpose.msra.mxu0 %v1274
    %1278 = vmatprep.subr.mxu0 0.0
    %1279 = vmatpush1.xpose.msra.mxu0 0.0
    %1280 = vmatprep.subr.mxu0 0.0
    %1281 = vmatpush1.xpose.msra.mxu0 0.0
    %1282 = vmatprep.subr.mxu0 0.0
    %1283 = vmatpush1.xpose.msra.mxu0 0.0
    %1284 = vmatprep.subr.mxu0 0.0
    %1285 = vmatpush1.xpose.msra.mxu0 0.0
    %1286 = vmatprep.subr.mxu0 0.0
    %1287 = vmatpush1.xpose.msra.mxu0 0.0
    %1288 = vmatprep.subr.mxu0 0.0
    %1289 = vmatpush1.xpose.msra.mxu0 0.0
    %1290 = vmatprep.subr.mxu0 0.0
    %1291 = vmatpush1.xpose.msra.mxu0 0.0
    %1292 = vmatprep.subr.mxu0 0.0
    %1293 = vmatpush1.xpose.msra.mxu0 0.0
    %1294 = vmatprep.subr.mxu0 0.0
    %1295 = vmatpush1.xpose.msra.mxu0 0.0
    %1296 = vmatprep.subr.mxu0 0.0
    %1297 = vmatpush1.xpose.msra.mxu0 0.0
    %1298 = vmatprep.subr.mxu0 0.0
    %1299 = vmatpush1.xpose.msra.mxu0 0.0
    %1300 = vmatprep.subr.mxu0 0.0
    %1301 = vmatpush1.xpose.msra.mxu0 0.0
    %1302 = vmatprep.subr.mxu0 0.0
    %1303 = vmatpush1.xpose.msra.mxu0 0.0
    %1304 = vmatprep.subr.mxu0 0.0
    %1305 = vmatpush1.xpose.msra.mxu0 0.0
    %1306 = vmatprep.subr.mxu0 0.0
    %1307 = vmatpush1.xpose.msra.mxu0 0.0
    %1308 = vmatprep.subr.mxu0 0.0
    %1309 = vmatpush1.xpose.msra.mxu0 0.0
    %1310 = vmatprep.subr.mxu0 0.0
    %1311 = vmatpush1.xpose.msra.mxu0 0.0
    %1312 = vmatprep.subr.mxu0 0.0
    %1313 = vmatpush1.xpose.msra.mxu0 0.0
    %1314 = vmatprep.subr.mxu0 0.0
    %1315 = vmatpush1.xpose.msra.mxu0 0.0
    %1316 = vmatprep.subr.mxu0 0.0
    %1317 = vmatpush1.xpose.msra.mxu0 0.0
    %1318 = vmatprep.subr.mxu0 0.0
    %1319 = vmatpush1.xpose.msra.mxu0 0.0
    %1320 = vmatprep.subr.mxu0 0.0
    %1321 = vmatpush1.xpose.msra.mxu0 0.0
    %1322 = vmatprep.subr.mxu0 0.0
    %1323 = vmatpush1.xpose.msra.mxu0 0.0
    %1324 = vmatprep.subr.mxu0 0.0
    %1325 = vmatpush1.xpose.msra.mxu0 0.0
    %1326 = vmatprep.subr.mxu0 0.0
    %1327 = vmatpush1.xpose.msra.mxu0 0.0
    %1328 = vmatprep.subr.mxu0 0.0
    %1329 = vmatpush1.xpose.msra.mxu0 0.0
    %1330 = vmatprep.subr.mxu0 0.0
    %1331 = vmatpush1.xpose.msra.mxu0 0.0
    %1332 = vmatprep.subr.mxu0 0.0
    %1333 = vmatpush1.xpose.msra.mxu0 0.0
    %1334 = vmatprep.subr.mxu0 0.0
    %1335 = vmatpush1.xpose.msra.mxu0 0.0
    %1336 = vmatprep.subr.mxu0 0.0
    %1337 = vmatpush1.xpose.msra.mxu0 0.0
    %1338 = vmatprep.subr.mxu0 0.0
    %1339 = vmatpush1.xpose.msra.mxu0 0.0
    %1340 = vmatprep.mubr.f32.mxu0 0.0
    %1341 = vmatmul.mubr.f32.gmra.mrb[0].mxu0 %v1272
    %v1342 = vpop.f32.mrb[0].mxu0
    %v1343 = vadd.f32 0.0, %v1342
    %v1344 = vpop.f32.mrb[0].mxu0
    %1345 = vdwg.mxu0
    %v1346 = vmul.f32 %v1265, 0.35355338
    %v1347 = vmul.f32 %v1343, 0.35355338
    %v1348 = vadd.f32 %v1346, %v373
    %v1349 = vadd.f32 %v1347, %v373
    %v1350 = vsel %vm513, %v1348, -inf
    %1351 = vmax.xlane.f32.xlu0 %v1350
    %v1352 = vpop.xlane.xlu0 %1351
    %v1353 = vsel %vm513, %v1349, -inf
    %1354 = vmax.xlane.f32.xlu0 %v1353
    %v1355 = vpop.xlane.xlu0 %1354
    %v1356 = vsub.f32 %v1348, %v1352
    %v1357 = vsub.f32 %v1349, %v1355
    %v1358 = vmul.f32 %v1356, 1.442695
    %v1359 = vpow.pop %v1358
    %v1360 = vmul.f32 %v1357, 1.442695
    %v1361 = vpow.pop %v1360
    %v1362 = vsel %vm513, %v1359, 0.0
    %1363 = vadd.xlane.f32.xlu0 %v1362
    %v1364 = vpop.xlane.xlu0 %1363
    %v1365 = vsel %vm513, %v1361, 0.0
    %1366 = vadd.xlane.f32.xlu0 %v1365
    %v1367 = vpop.xlane.xlu0 %1366
    %v1368 = vrcp.pop %v1364
    %v1369 = vmul.f32 %v1359, %v1368
    %v1370 = vrcp.pop %v1367
    %v1371 = vmul.f32 %v1361, %v1370
    %1372 = vrot.lane.b32.xlu0 %v502, 48
    %v1373 = vpop.permute.xlu0 %1372
    %v1376 = vsel %vm513, %v1369, 0
    %1378 = vmatprep.subr.mxu0 0.0
    %1379 = vmatpush1.msra.mxu0 %v1373
    %1380 = vmatprep.subr.mxu0 0.0
    %1381 = vmatpush1.msra.mxu0 0.0
    %1382 = vmatprep.subr.mxu0 0.0
    %1383 = vmatpush1.msra.mxu0 0.0
    %1384 = vmatprep.subr.mxu0 0.0
    %1385 = vmatpush1.msra.mxu0 0.0
    %1386 = vmatprep.subr.mxu0 0.0
    %1387 = vmatpush1.msra.mxu0 0.0
    %1388 = vmatprep.subr.mxu0 0.0
    %1389 = vmatpush1.msra.mxu0 0.0
    %1390 = vmatprep.subr.mxu0 0.0
    %1391 = vmatpush1.msra.mxu0 0.0
    %1392 = vmatprep.subr.mxu0 0.0
    %1393 = vmatpush1.msra.mxu0 0.0
    %1394 = vmatprep.subr.mxu0 0.0
    %1395 = vmatpush1.msra.mxu0 0.0
    %1396 = vmatprep.subr.mxu0 0.0
    %1397 = vmatpush1.msra.mxu0 0.0
    %1398 = vmatprep.subr.mxu0 0.0
    %1399 = vmatpush1.msra.mxu0 0.0
    %1400 = vmatprep.subr.mxu0 0.0
    %1401 = vmatpush1.msra.mxu0 0.0
    %1402 = vmatprep.subr.mxu0 0.0
    %1403 = vmatpush1.msra.mxu0 0.0
    %1404 = vmatprep.subr.mxu0 0.0
    %1405 = vmatpush1.msra.mxu0 0.0
    %1406 = vmatprep.subr.mxu0 0.0
    %1407 = vmatpush1.msra.mxu0 0.0
    %1408 = vmatprep.subr.mxu0 0.0
    %1409 = vmatpush1.msra.mxu0 0.0
    %1410 = vmatprep.subr.mxu0 0.0
    %1411 = vmatpush1.msra.mxu0 0.0
    %1412 = vmatprep.subr.mxu0 0.0
    %1413 = vmatpush1.msra.mxu0 0.0
    %1414 = vmatprep.subr.mxu0 0.0
    %1415 = vmatpush1.msra.mxu0 0.0
    %1416 = vmatprep.subr.mxu0 0.0
    %1417 = vmatpush1.msra.mxu0 0.0
    %1418 = vmatprep.subr.mxu0 0.0
    %1419 = vmatpush1.msra.mxu0 0.0
    %1420 = vmatprep.subr.mxu0 0.0
    %1421 = vmatpush1.msra.mxu0 0.0
    %1422 = vmatprep.subr.mxu0 0.0
    %1423 = vmatpush1.msra.mxu0 0.0
    %1424 = vmatprep.subr.mxu0 0.0
    %1425 = vmatpush1.msra.mxu0 0.0
    %1426 = vmatprep.subr.mxu0 0.0
    %1427 = vmatpush1.msra.mxu0 0.0
    %1428 = vmatprep.subr.mxu0 0.0
    %1429 = vmatpush1.msra.mxu0 0.0
    %1430 = vmatprep.subr.mxu0 0.0
    %1431 = vmatpush1.msra.mxu0 0.0
    %1432 = vmatprep.subr.mxu0 0.0
    %1433 = vmatpush1.msra.mxu0 0.0
    %1434 = vmatprep.subr.mxu0 0.0
    %1435 = vmatpush1.msra.mxu0 0.0
    %1436 = vmatprep.subr.mxu0 0.0
    %1437 = vmatpush1.msra.mxu0 0.0
    %1438 = vmatprep.subr.mxu0 0.0
    %1439 = vmatpush1.msra.mxu0 0.0
    %1440 = vmatprep.subr.mxu0 0.0
    %1441 = vmatpush1.msra.mxu0 0.0
    %1442 = vmatprep.mubr.f32.mxu0 0.0
    %1443 = vmatmul.mubr.f32.gmra.mrb[0].mxu0 %v1376
    %v1444 = vpop.f32.mrb[0].mxu0
    %v1445 = vadd.f32 0.0, %v1444
    %v1446 = vpop.f32.mrb[0].mxu0
    %1447 = vdwg.mxu0
    %1448 = vrot.lane.b32.xlu0 %v507, 48
    %v1449 = vpop.permute.xlu0 %1448
    %v1452 = vsel %vm513, %v1371, 0
    %1454 = vmatprep.subr.mxu0 0.0
    %1455 = vmatpush1.msra.mxu0 %v1449
    %1456 = vmatprep.subr.mxu0 0.0
    %1457 = vmatpush1.msra.mxu0 0.0
    %1458 = vmatprep.subr.mxu0 0.0
    %1459 = vmatpush1.msra.mxu0 0.0
    %1460 = vmatprep.subr.mxu0 0.0
    %1461 = vmatpush1.msra.mxu0 0.0
    %1462 = vmatprep.subr.mxu0 0.0
    %1463 = vmatpush1.msra.mxu0 0.0
    %1464 = vmatprep.subr.mxu0 0.0
    %1465 = vmatpush1.msra.mxu0 0.0
    %1466 = vmatprep.subr.mxu0 0.0
    %1467 = vmatpush1.msra.mxu0 0.0
    %1468 = vmatprep.subr.mxu0 0.0
    %1469 = vmatpush1.msra.mxu0 0.0
    %1470 = vmatprep.subr.mxu0 0.0
    %1471 = vmatpush1.msra.mxu0 0.0
    %1472 = vmatprep.subr.mxu0 0.0
    %1473 = vmatpush1.msra.mxu0 0.0
    %1474 = vmatprep.subr.mxu0 0.0
    %1475 = vmatpush1.msra.mxu0 0.0
    %1476 = vmatprep.subr.mxu0 0.0
    %1477 = vmatpush1.msra.mxu0 0.0
    %1478 = vmatprep.subr.mxu0 0.0
    %1479 = vmatpush1.msra.mxu0 0.0
    %1480 = vmatprep.subr.mxu0 0.0
    %1481 = vmatpush1.msra.mxu0 0.0
    %1482 = vmatprep.subr.mxu0 0.0
    %1483 = vmatpush1.msra.mxu0 0.0
    %1484 = vmatprep.subr.mxu0 0.0
    %1485 = vmatpush1.msra.mxu0 0.0
    %1486 = vmatprep.subr.mxu0 0.0
    %1487 = vmatpush1.msra.mxu0 0.0
    %1488 = vmatprep.subr.mxu0 0.0
    %1489 = vmatpush1.msra.mxu0 0.0
    %1490 = vmatprep.subr.mxu0 0.0
    %1491 = vmatpush1.msra.mxu0 0.0
    %1492 = vmatprep.subr.mxu0 0.0
    %1493 = vmatpush1.msra.mxu0 0.0
    %1494 = vmatprep.subr.mxu0 0.0
    %1495 = vmatpush1.msra.mxu0 0.0
    %1496 = vmatprep.subr.mxu0 0.0
    %1497 = vmatpush1.msra.mxu0 0.0
    %1498 = vmatprep.subr.mxu0 0.0
    %1499 = vmatpush1.msra.mxu0 0.0
    %1500 = vmatprep.subr.mxu0 0.0
    %1501 = vmatpush1.msra.mxu0 0.0
    %1502 = vmatprep.subr.mxu0 0.0
    %1503 = vmatpush1.msra.mxu0 0.0
    %1504 = vmatprep.subr.mxu0 0.0
    %1505 = vmatpush1.msra.mxu0 0.0
    %1506 = vmatprep.subr.mxu0 0.0
    %1507 = vmatpush1.msra.mxu0 0.0
    %1508 = vmatprep.subr.mxu0 0.0
    %1509 = vmatpush1.msra.mxu0 0.0
    %1510 = vmatprep.subr.mxu0 0.0
    %1511 = vmatpush1.msra.mxu0 0.0
    %1512 = vmatprep.subr.mxu0 0.0
    %1513 = vmatpush1.msra.mxu0 0.0
    %1514 = vmatprep.subr.mxu0 0.0
    %1515 = vmatpush1.msra.mxu0 0.0
    %1516 = vmatprep.subr.mxu0 0.0
    %1517 = vmatpush1.msra.mxu0 0.0
    %1518 = vmatprep.mubr.f32.mxu0 0.0
    %1519 = vmatmul.mubr.f32.gmra.mrb[0].mxu0 %v1452
    %v1520 = vpop.f32.mrb[0].mxu0
    %v1521 = vadd.f32 0.0, %v1520
    %v1522 = vpop.f32.mrb[0].mxu0
    %1523 = vdwg.mxu0
    %1526 = vrot.lane.b32.xlu0 %v1445, 16
    %v1527 = vpop.permute.xlu0 %1526
    %1528 = vrot.lane.b32.xlu0 %v1521, 16
    %v1529 = vpop.permute.xlu0 %1528
    %vm1532 = vcmask 195712
    %1533 = vst.msk [vmem:[#allocation2] sm:$0xff] %vm1532, %v1527
    %1534 = vst.msk [vmem:[#allocation2 + $0x8] sm:$0xff] %vm1532, %v1529
    %1535 = vrot.lane.b32.xlu0 %v502, 104
    %v1536 = vpop.permute.xlu0 %1535
    %1537 = vrot.lane.b32.xlu0 %v502, 72
    %v1538 = vpop.permute.xlu0 %1537
    %v1539 = vsel %vm513, %v1536, 0
    %v1541 = vsel %vm513, %v1538, 0
    %1543 = vmatprep.subr.mxu0 0.0
    %1544 = vmatpush1.xpose.msra.mxu0 %v1541
    %1545 = vmatprep.subr.mxu0 0.0
    %1546 = vmatpush1.xpose.msra.mxu0 0.0
    %1547 = vmatprep.subr.mxu0 0.0
    %1548 = vmatpush1.xpose.msra.mxu0 0.0
    %1549 = vmatprep.subr.mxu0 0.0
    %1550 = vmatpush1.xpose.msra.mxu0 0.0
    %1551 = vmatprep.subr.mxu0 0.0
    %1552 = vmatpush1.xpose.msra.mxu0 0.0
    %1553 = vmatprep.subr.mxu0 0.0
    %1554 = vmatpush1.xpose.msra.mxu0 0.0
    %1555 = vmatprep.subr.mxu0 0.0
    %1556 = vmatpush1.xpose.msra.mxu0 0.0
    %1557 = vmatprep.subr.mxu0 0.0
    %1558 = vmatpush1.xpose.msra.mxu0 0.0
    %1559 = vmatprep.subr.mxu0 0.0
    %1560 = vmatpush1.xpose.msra.mxu0 0.0
    %1561 = vmatprep.subr.mxu0 0.0
    %1562 = vmatpush1.xpose.msra.mxu0 0.0
    %1563 = vmatprep.subr.mxu0 0.0
    %1564 = vmatpush1.xpose.msra.mxu0 0.0
    %1565 = vmatprep.subr.mxu0 0.0
    %1566 = vmatpush1.xpose.msra.mxu0 0.0
    %1567 = vmatprep.subr.mxu0 0.0
    %1568 = vmatpush1.xpose.msra.mxu0 0.0
    %1569 = vmatprep.subr.mxu0 0.0
    %1570 = vmatpush1.xpose.msra.mxu0 0.0
    %1571 = vmatprep.subr.mxu0 0.0
    %1572 = vmatpush1.xpose.msra.mxu0 0.0
    %1573 = vmatprep.subr.mxu0 0.0
    %1574 = vmatpush1.xpose.msra.mxu0 0.0
    %1575 = vmatprep.subr.mxu0 0.0
    %1576 = vmatpush1.xpose.msra.mxu0 0.0
    %1577 = vmatprep.subr.mxu0 0.0
    %1578 = vmatpush1.xpose.msra.mxu0 0.0
    %1579 = vmatprep.subr.mxu0 0.0
    %1580 = vmatpush1.xpose.msra.mxu0 0.0
    %1581 = vmatprep.subr.mxu0 0.0
    %1582 = vmatpush1.xpose.msra.mxu0 0.0
    %1583 = vmatprep.subr.mxu0 0.0
    %1584 = vmatpush1.xpose.msra.mxu0 0.0
    %1585 = vmatprep.subr.mxu0 0.0
    %1586 = vmatpush1.xpose.msra.mxu0 0.0
    %1587 = vmatprep.subr.mxu0 0.0
    %1588 = vmatpush1.xpose.msra.mxu0 0.0
    %1589 = vmatprep.subr.mxu0 0.0
    %1590 = vmatpush1.xpose.msra.mxu0 0.0
    %1591 = vmatprep.subr.mxu0 0.0
    %1592 = vmatpush1.xpose.msra.mxu0 0.0
    %1593 = vmatprep.subr.mxu0 0.0
    %1594 = vmatpush1.xpose.msra.mxu0 0.0
    %1595 = vmatprep.subr.mxu0 0.0
    %1596 = vmatpush1.xpose.msra.mxu0 0.0
    %1597 = vmatprep.subr.mxu0 0.0
    %1598 = vmatpush1.xpose.msra.mxu0 0.0
    %1599 = vmatprep.subr.mxu0 0.0
    %1600 = vmatpush1.xpose.msra.mxu0 0.0
    %1601 = vmatprep.subr.mxu0 0.0
    %1602 = vmatpush1.xpose.msra.mxu0 0.0
    %1603 = vmatprep.subr.mxu0 0.0
    %1604 = vmatpush1.xpose.msra.mxu0 0.0
    %1605 = vmatprep.subr.mxu0 0.0
    %1606 = vmatpush1.xpose.msra.mxu0 0.0
    %1607 = vmatprep.mubr.f32.mxu0 0.0
    %1608 = vmatmul.mubr.f32.gmra.mrb[0].mxu0 %v1539
    %v1609 = vpop.f32.mrb[0].mxu0
    %v1610 = vadd.f32 0.0, %v1609
    %v1611 = vpop.f32.mrb[0].mxu0
    %1612 = vdwg.mxu0
    %1613 = vrot.lane.b32.xlu0 %v507, 104
    %v1614 = vpop.permute.xlu0 %1613
    %1615 = vrot.lane.b32.xlu0 %v507, 72
    %v1616 = vpop.permute.xlu0 %1615
    %v1617 = vsel %vm513, %v1614, 0
    %v1619 = vsel %vm513, %v1616, 0
    %1621 = vmatprep.subr.mxu0 0.0
    %1622 = vmatpush1.xpose.msra.mxu0 %v1619
    %1623 = vmatprep.subr.mxu0 0.0
    %1624 = vmatpush1.xpose.msra.mxu0 0.0
    %1625 = vmatprep.subr.mxu0 0.0
    %1626 = vmatpush1.xpose.msra.mxu0 0.0
    %1627 = vmatprep.subr.mxu0 0.0
    %1628 = vmatpush1.xpose.msra.mxu0 0.0
    %1629 = vmatprep.subr.mxu0 0.0
    %1630 = vmatpush1.xpose.msra.mxu0 0.0
    %1631 = vmatprep.subr.mxu0 0.0
    %1632 = vmatpush1.xpose.msra.mxu0 0.0
    %1633 = vmatprep.subr.mxu0 0.0
    %1634 = vmatpush1.xpose.msra.mxu0 0.0
    %1635 = vmatprep.subr.mxu0 0.0
    %1636 = vmatpush1.xpose.msra.mxu0 0.0
    %1637 = vmatprep.subr.mxu0 0.0
    %1638 = vmatpush1.xpose.msra.mxu0 0.0
    %1639 = vmatprep.subr.mxu0 0.0
    %1640 = vmatpush1.xpose.msra.mxu0 0.0
    %1641 = vmatprep.subr.mxu0 0.0
    %1642 = vmatpush1.xpose.msra.mxu0 0.0
    %1643 = vmatprep.subr.mxu0 0.0
    %1644 = vmatpush1.xpose.msra.mxu0 0.0
    %1645 = vmatprep.subr.mxu0 0.0
    %1646 = vmatpush1.xpose.msra.mxu0 0.0
    %1647 = vmatprep.subr.mxu0 0.0
    %1648 = vmatpush1.xpose.msra.mxu0 0.0
    %1649 = vmatprep.subr.mxu0 0.0
    %1650 = vmatpush1.xpose.msra.mxu0 0.0
    %1651 = vmatprep.subr.mxu0 0.0
    %1652 = vmatpush1.xpose.msra.mxu0 0.0
    %1653 = vmatprep.subr.mxu0 0.0
    %1654 = vmatpush1.xpose.msra.mxu0 0.0
    %1655 = vmatprep.subr.mxu0 0.0
    %1656 = vmatpush1.xpose.msra.mxu0 0.0
    %1657 = vmatprep.subr.mxu0 0.0
    %1658 = vmatpush1.xpose.msra.mxu0 0.0
    %1659 = vmatprep.subr.mxu0 0.0
    %1660 = vmatpush1.xpose.msra.mxu0 0.0
    %1661 = vmatprep.subr.mxu0 0.0
    %1662 = vmatpush1.xpose.msra.mxu0 0.0
    %1663 = vmatprep.subr.mxu0 0.0
    %1664 = vmatpush1.xpose.msra.mxu0 0.0
    %1665 = vmatprep.subr.mxu0 0.0
    %1666 = vmatpush1.xpose.msra.mxu0 0.0
    %1667 = vmatprep.subr.mxu0 0.0
    %1668 = vmatpush1.xpose.msra.mxu0 0.0
    %1669 = vmatprep.subr.mxu0 0.0
    %1670 = vmatpush1.xpose.msra.mxu0 0.0
    %1671 = vmatprep.subr.mxu0 0.0
    %1672 = vmatpush1.xpose.msra.mxu0 0.0
    %1673 = vmatprep.subr.mxu0 0.0
    %1674 = vmatpush1.xpose.msra.mxu0 0.0
    %1675 = vmatprep.subr.mxu0 0.0
    %1676 = vmatpush1.xpose.msra.mxu0 0.0
    %1677 = vmatprep.subr.mxu0 0.0
    %1678 = vmatpush1.xpose.msra.mxu0 0.0
    %1679 = vmatprep.subr.mxu0 0.0
    %1680 = vmatpush1.xpose.msra.mxu0 0.0
    %1681 = vmatprep.subr.mxu0 0.0
    %1682 = vmatpush1.xpose.msra.mxu0 0.0
    %1683 = vmatprep.subr.mxu0 0.0
    %1684 = vmatpush1.xpose.msra.mxu0 0.0
    %1685 = vmatprep.mubr.f32.mxu0 0.0
    %1686 = vmatmul.mubr.f32.gmra.mrb[0].mxu0 %v1617
    %v1687 = vpop.f32.mrb[0].mxu0
    %v1688 = vadd.f32 0.0, %v1687
    %v1689 = vpop.f32.mrb[0].mxu0
    %1690 = vdwg.mxu0
    %v1691 = vmul.f32 %v1610, 0.35355338
    %v1692 = vmul.f32 %v1688, 0.35355338
    %v1693 = vadd.f32 %v1691, %v373
    %v1694 = vadd.f32 %v1692, %v373
    %v1695 = vsel %vm513, %v1693, -inf
    %1696 = vmax.xlane.f32.xlu0 %v1695
    %v1697 = vpop.xlane.xlu0 %1696
    %v1698 = vsel %vm513, %v1694, -inf
    %1699 = vmax.xlane.f32.xlu0 %v1698
    %v1700 = vpop.xlane.xlu0 %1699
    %v1701 = vsub.f32 %v1693, %v1697
    %v1702 = vsub.f32 %v1694, %v1700
    %v1703 = vmul.f32 %v1701, 1.442695
    %v1704 = vpow.pop %v1703
    %v1705 = vmul.f32 %v1702, 1.442695
    %v1706 = vpow.pop %v1705
    %v1707 = vsel %vm513, %v1704, 0.0
    %1708 = vadd.xlane.f32.xlu0 %v1707
    %v1709 = vpop.xlane.xlu0 %1708
    %v1710 = vsel %vm513, %v1706, 0.0
    %1711 = vadd.xlane.f32.xlu0 %v1710
    %v1712 = vpop.xlane.xlu0 %1711
    %v1713 = vrcp.pop %v1709
    %v1714 = vmul.f32 %v1704, %v1713
    %v1715 = vrcp.pop %v1712
    %v1716 = vmul.f32 %v1706, %v1715
    %1717 = vrot.lane.b32.xlu0 %v502, 40
    %v1718 = vpop.permute.xlu0 %1717
    %v1721 = vsel %vm513, %v1714, 0
    %1723 = vmatprep.subr.mxu0 0.0
    %1724 = vmatpush1.msra.mxu0 %v1718
    %1725 = vmatprep.subr.mxu0 0.0
    %1726 = vmatpush1.msra.mxu0 0.0
    %1727 = vmatprep.subr.mxu0 0.0
    %1728 = vmatpush1.msra.mxu0 0.0
    %1729 = vmatprep.subr.mxu0 0.0
    %1730 = vmatpush1.msra.mxu0 0.0
    %1731 = vmatprep.subr.mxu0 0.0
    %1732 = vmatpush1.msra.mxu0 0.0
    %1733 = vmatprep.subr.mxu0 0.0
    %1734 = vmatpush1.msra.mxu0 0.0
    %1735 = vmatprep.subr.mxu0 0.0
    %1736 = vmatpush1.msra.mxu0 0.0
    %1737 = vmatprep.subr.mxu0 0.0
    %1738 = vmatpush1.msra.mxu0 0.0
    %1739 = vmatprep.subr.mxu0 0.0
    %1740 = vmatpush1.msra.mxu0 0.0
    %1741 = vmatprep.subr.mxu0 0.0
    %1742 = vmatpush1.msra.mxu0 0.0
    %1743 = vmatprep.subr.mxu0 0.0
    %1744 = vmatpush1.msra.mxu0 0.0
    %1745 = vmatprep.subr.mxu0 0.0
    %1746 = vmatpush1.msra.mxu0 0.0
    %1747 = vmatprep.subr.mxu0 0.0
    %1748 = vmatpush1.msra.mxu0 0.0
    %1749 = vmatprep.subr.mxu0 0.0
    %1750 = vmatpush1.msra.mxu0 0.0
    %1751 = vmatprep.subr.mxu0 0.0
    %1752 = vmatpush1.msra.mxu0 0.0
    %1753 = vmatprep.subr.mxu0 0.0
    %1754 = vmatpush1.msra.mxu0 0.0
    %1755 = vmatprep.subr.mxu0 0.0
    %1756 = vmatpush1.msra.mxu0 0.0
    %1757 = vmatprep.subr.mxu0 0.0
    %1758 = vmatpush1.msra.mxu0 0.0
    %1759 = vmatprep.subr.mxu0 0.0
    %1760 = vmatpush1.msra.mxu0 0.0
    %1761 = vmatprep.subr.mxu0 0.0
    %1762 = vmatpush1.msra.mxu0 0.0
    %1763 = vmatprep.subr.mxu0 0.0
    %1764 = vmatpush1.msra.mxu0 0.0
    %1765 = vmatprep.subr.mxu0 0.0
    %1766 = vmatpush1.msra.mxu0 0.0
    %1767 = vmatprep.subr.mxu0 0.0
    %1768 = vmatpush1.msra.mxu0 0.0
    %1769 = vmatprep.subr.mxu0 0.0
    %1770 = vmatpush1.msra.mxu0 0.0
    %1771 = vmatprep.subr.mxu0 0.0
    %1772 = vmatpush1.msra.mxu0 0.0
    %1773 = vmatprep.subr.mxu0 0.0
    %1774 = vmatpush1.msra.mxu0 0.0
    %1775 = vmatprep.subr.mxu0 0.0
    %1776 = vmatpush1.msra.mxu0 0.0
    %1777 = vmatprep.subr.mxu0 0.0
    %1778 = vmatpush1.msra.mxu0 0.0
    %1779 = vmatprep.subr.mxu0 0.0
    %1780 = vmatpush1.msra.mxu0 0.0
    %1781 = vmatprep.subr.mxu0 0.0
    %1782 = vmatpush1.msra.mxu0 0.0
    %1783 = vmatprep.subr.mxu0 0.0
    %1784 = vmatpush1.msra.mxu0 0.0
    %1785 = vmatprep.subr.mxu0 0.0
    %1786 = vmatpush1.msra.mxu0 0.0
    %1787 = vmatprep.mubr.f32.mxu0 0.0
    %1788 = vmatmul.mubr.f32.gmra.mrb[0].mxu0 %v1721
    %v1789 = vpop.f32.mrb[0].mxu0
    %v1790 = vadd.f32 0.0, %v1789
    %v1791 = vpop.f32.mrb[0].mxu0
    %1792 = vdwg.mxu0
    %1793 = vrot.lane.b32.xlu0 %v507, 40
    %v1794 = vpop.permute.xlu0 %1793
    %v1797 = vsel %vm513, %v1716, 0
    %1799 = vmatprep.subr.mxu0 0.0
    %1800 = vmatpush1.msra.mxu0 %v1794
    %1801 = vmatprep.subr.mxu0 0.0
    %1802 = vmatpush1.msra.mxu0 0.0
    %1803 = vmatprep.subr.mxu0 0.0
    %1804 = vmatpush1.msra.mxu0 0.0
    %1805 = vmatprep.subr.mxu0 0.0
    %1806 = vmatpush1.msra.mxu0 0.0
    %1807 = vmatprep.subr.mxu0 0.0
    %1808 = vmatpush1.msra.mxu0 0.0
    %1809 = vmatprep.subr.mxu0 0.0
    %1810 = vmatpush1.msra.mxu0 0.0
    %1811 = vmatprep.subr.mxu0 0.0
    %1812 = vmatpush1.msra.mxu0 0.0
    %1813 = vmatprep.subr.mxu0 0.0
    %1814 = vmatpush1.msra.mxu0 0.0
    %1815 = vmatprep.subr.mxu0 0.0
    %1816 = vmatpush1.msra.mxu0 0.0
    %1817 = vmatprep.subr.mxu0 0.0
    %1818 = vmatpush1.msra.mxu0 0.0
    %1819 = vmatprep.subr.mxu0 0.0
    %1820 = vmatpush1.msra.mxu0 0.0
    %1821 = vmatprep.subr.mxu0 0.0
    %1822 = vmatpush1.msra.mxu0 0.0
    %1823 = vmatprep.subr.mxu0 0.0
    %1824 = vmatpush1.msra.mxu0 0.0
    %1825 = vmatprep.subr.mxu0 0.0
    %1826 = vmatpush1.msra.mxu0 0.0
    %1827 = vmatprep.subr.mxu0 0.0
    %1828 = vmatpush1.msra.mxu0 0.0
    %1829 = vmatprep.subr.mxu0 0.0
    %1830 = vmatpush1.msra.mxu0 0.0
    %1831 = vmatprep.subr.mxu0 0.0
    %1832 = vmatpush1.msra.mxu0 0.0
    %1833 = vmatprep.subr.mxu0 0.0
    %1834 = vmatpush1.msra.mxu0 0.0
    %1835 = vmatprep.subr.mxu0 0.0
    %1836 = vmatpush1.msra.mxu0 0.0
    %1837 = vmatprep.subr.mxu0 0.0
    %1838 = vmatpush1.msra.mxu0 0.0
    %1839 = vmatprep.subr.mxu0 0.0
    %1840 = vmatpush1.msra.mxu0 0.0
    %1841 = vmatprep.subr.mxu0 0.0
    %1842 = vmatpush1.msra.mxu0 0.0
    %1843 = vmatprep.subr.mxu0 0.0
    %1844 = vmatpush1.msra.mxu0 0.0
    %1845 = vmatprep.subr.mxu0 0.0
    %1846 = vmatpush1.msra.mxu0 0.0
    %1847 = vmatprep.subr.mxu0 0.0
    %1848 = vmatpush1.msra.mxu0 0.0
    %1849 = vmatprep.subr.mxu0 0.0
    %1850 = vmatpush1.msra.mxu0 0.0
    %1851 = vmatprep.subr.mxu0 0.0
    %1852 = vmatpush1.msra.mxu0 0.0
    %1853 = vmatprep.subr.mxu0 0.0
    %1854 = vmatpush1.msra.mxu0 0.0
    %1855 = vmatprep.subr.mxu0 0.0
    %1856 = vmatpush1.msra.mxu0 0.0
    %1857 = vmatprep.subr.mxu0 0.0
    %1858 = vmatpush1.msra.mxu0 0.0
    %1859 = vmatprep.subr.mxu0 0.0
    %1860 = vmatpush1.msra.mxu0 0.0
    %1861 = vmatprep.subr.mxu0 0.0
    %1862 = vmatpush1.msra.mxu0 0.0
    %1863 = vmatprep.mubr.f32.mxu0 0.0
    %1864 = vmatmul.mubr.f32.gmra.mrb[0].mxu0 %v1797
    %v1865 = vpop.f32.mrb[0].mxu0
    %v1866 = vadd.f32 0.0, %v1865
    %v1867 = vpop.f32.mrb[0].mxu0
    %1868 = vdwg.mxu0
    %1871 = vrot.lane.b32.xlu0 %v1790, 24
    %v1872 = vpop.permute.xlu0 %1871
    %1873 = vrot.lane.b32.xlu0 %v1866, 24
    %v1874 = vpop.permute.xlu0 %1873
    %vm1877 = vcmask 261312
    %1878 = vst.msk [vmem:[#allocation2] sm:$0xff] %vm1877, %v1872
    %1879 = vst.msk [vmem:[#allocation2 + $0x8] sm:$0xff] %vm1877, %v1874
    %v1880 = vld [vmem:[#allocation2] sm:$0xff]
    %v1881 = vld [vmem:[#allocation2 + $0x8] sm:$0xff]
    %v1882 = vld [vmem:[%s7] sm:$0xff]
    %v1883 = vld [vmem:[%s7 + $0x8] sm:$0xff]
    %v1884 = vld [vmem:[%s7 + $0x10] sm:$0xff]
    %v1885 = vld [vmem:[%s7 + $0x18] sm:$0xff]
    %v1887 = vsel %vm355, %v1880, 0
    %v1890 = vsel %vm355, %v1881, 0
    %1892 = vmatprep.subr.mxu0 0.0
    %1893 = vmatpush1.msra.mxu0 %v1882
    %1894 = vmatprep.subr.mxu0 0.0
    %1895 = vmatpush1.msra.mxu0 %v1883
    %1896 = vmatprep.subr.mxu0 0.0
    %1897 = vmatpush1.msra.mxu0 %v1884
    %1898 = vmatprep.subr.mxu0 0.0
    %1899 = vmatpush1.msra.mxu0 %v1885
    %1900 = vmatprep.subr.mxu0 0.0
    %1901 = vmatpush1.msra.mxu0 0.0
    %1902 = vmatprep.subr.mxu0 0.0
    %1903 = vmatpush1.msra.mxu0 0.0
    %1904 = vmatprep.subr.mxu0 0.0
    %1905 = vmatpush1.msra.mxu0 0.0
    %1906 = vmatprep.subr.mxu0 0.0
    %1907 = vmatpush1.msra.mxu0 0.0
    %1908 = vmatprep.subr.mxu0 0.0
    %1909 = vmatpush1.msra.mxu0 0.0
    %1910 = vmatprep.subr.mxu0 0.0
    %1911 = vmatpush1.msra.mxu0 0.0
    %1912 = vmatprep.subr.mxu0 0.0
    %1913 = vmatpush1.msra.mxu0 0.0
    %1914 = vmatprep.subr.mxu0 0.0
    %1915 = vmatpush1.msra.mxu0 0.0
    %1916 = vmatprep.subr.mxu0 0.0
    %1917 = vmatpush1.msra.mxu0 0.0
    %1918 = vmatprep.subr.mxu0 0.0
    %1919 = vmatpush1.msra.mxu0 0.0
    %1920 = vmatprep.subr.mxu0 0.0
    %1921 = vmatpush1.msra.mxu0 0.0
    %1922 = vmatprep.subr.mxu0 0.0
    %1923 = vmatpush1.msra.mxu0 0.0
    %1924 = vmatprep.subr.mxu0 0.0
    %1925 = vmatpush1.msra.mxu0 0.0
    %1926 = vmatprep.subr.mxu0 0.0
    %1927 = vmatpush1.msra.mxu0 0.0
    %1928 = vmatprep.subr.mxu0 0.0
    %1929 = vmatpush1.msra.mxu0 0.0
    %1930 = vmatprep.subr.mxu0 0.0
    %1931 = vmatpush1.msra.mxu0 0.0
    %1932 = vmatprep.subr.mxu0 0.0
    %1933 = vmatpush1.msra.mxu0 0.0
    %1934 = vmatprep.subr.mxu0 0.0
    %1935 = vmatpush1.msra.mxu0 0.0
    %1936 = vmatprep.subr.mxu0 0.0
    %1937 = vmatpush1.msra.mxu0 0.0
    %1938 = vmatprep.subr.mxu0 0.0
    %1939 = vmatpush1.msra.mxu0 0.0
    %1940 = vmatprep.subr.mxu0 0.0
    %1941 = vmatpush1.msra.mxu0 0.0
    %1942 = vmatprep.subr.mxu0 0.0
    %1943 = vmatpush1.msra.mxu0 0.0
    %1944 = vmatprep.subr.mxu0 0.0
    %1945 = vmatpush1.msra.mxu0 0.0
    %1946 = vmatprep.subr.mxu0 0.0
    %1947 = vmatpush1.msra.mxu0 0.0
    %1948 = vmatprep.subr.mxu0 0.0
    %1949 = vmatpush1.msra.mxu0 0.0
    %1950 = vmatprep.subr.mxu0 0.0
    %1951 = vmatpush1.msra.mxu0 0.0
    %1952 = vmatprep.subr.mxu0 0.0
    %1953 = vmatpush1.msra.mxu0 0.0
    %1954 = vmatprep.subr.mxu0 0.0
    %1955 = vmatpush1.msra.mxu0 0.0
    %1956 = vmatprep.mubr.f32.mxu0 0.0
    %1957 = vmatmul.mubr.f32.gmra.mrb[0].mxu0 %v1887
    %v1958 = vpop.f32.mrb[0].mxu0
    %v1959 = vadd.f32 0.0, %v1958
    %v1960 = vpop.f32.mrb[0].mxu0
    %1961 = vmatprep.mubr.f32.mxu0 0.0
    %1962 = vmatmul.mubr.f32.gmra.mrb[0].mxu0 %v1890
    %v1963 = vpop.f32.mrb[0].mxu0
    %v1964 = vadd.f32 0.0, %v1963
    %v1965 = vpop.f32.mrb[0].mxu0
    %1966 = vdwg.mxu0
    %v1967 = vadd.f32 %v368, %v1959
    %v1968 = vadd.f32 %v369, %v1964
    %v1969 = vlaneseq
    %v1970 = vshrl.u32 %v1969, 7
    %v1971 = vsub.s32 0, %v1970
    %v1972 = vrot.slane %v379, %v1971
    %v1973 = vadd.f32 %v1967, %v1972
    %v1974 = vadd.f32 %v1968, %v1972
    %v1975 = vsel %vm355, %v1973, 0.0
    %1976 = vadd.xlane.f32.xlu0 %v1975
    %v1977 = vpop.xlane.xlu0 %1976
    %v1978 = vsel %vm355, %v1974, 0.0
    %1979 = vadd.xlane.f32.xlu0 %v1978
    %v1980 = vpop.xlane.xlu0 %1979
    %v1981 = vmul.f32 %v1977, %v388
    %v1982 = vmul.f32 %v1980, %v388
    %v1983 = vsub.f32 %v1973, %v1981
    %v1984 = vsub.f32 %v1974, %v1982
    %v1985 = vmul.f32 %v1983, %v1983
    %v1986 = vmul.f32 %v1984, %v1984
    %v1987 = vsel %vm355, %v1985, 0.0
    %1988 = vadd.xlane.f32.xlu0 %v1987
    %v1989 = vpop.xlane.xlu0 %1988
    %v1990 = vsel %vm355, %v1986, 0.0
    %1991 = vadd.xlane.f32.xlu0 %v1990
    %v1992 = vpop.xlane.xlu0 %1991
    %v1993 = vmul.f32 %v1989, %v388
    %v1994 = vmul.f32 %v1992, %v388
    %v1995 = vadd.f32 %v1993, 1e-06
    %v1996 = vadd.f32 %v1994, 1e-06
    %v1997 = vrsqrt.pop %v1995
    %v1998 = vrsqrt.pop %v1996
    %v1999 = vmul.f32 %v1983, %v1997
    %v2000 = vmul.f32 %v1984, %v1998
    %v2001 = vlaneseq
    %v2002 = vshrl.u32 %v2001, 7
    %v2003 = vsub.s32 0, %v2002
    %v2004 = vrot.slane %v376, %v2003
    %v2005 = vmul.f32 %v1999, %v2004
    %v2006 = vmul.f32 %v2000, %v2004
    %v2007 = vlaneseq
    %v2008 = vshrl.u32 %v2007, 7
    %v2009 = vsub.s32 0, %v2008
    %v2010 = vrot.slane %v377, %v2009
    %v2011 = vadd.f32 %v2005, %v2010
    %v2012 = vadd.f32 %v2006, %v2010
    %v2013 = vld [vmem:[%s8] sm:$0xff]
    %v2014 = vld [vmem:[%s8 + $0x8] sm:$0xff]
    %v2015 = vld [vmem:[%s8 + $0x10] sm:$0xff]
    %v2016 = vld [vmem:[%s8 + $0x18] sm:$0xff]
    %v2017 = vlaneseq
    %v2018 = vshrl.u32 %v2017, 7
    %v2019 = vsub.s32 0, %v2018
    %v2020 = vrot.slane %v380, %v2019
    %v2022 = vsel %vm355, %v2011, 0
    %v2025 = vsel %vm355, %v2012, 0
    %2027 = vmatprep.subr.mxu0 0.0
    %2028 = vmatpush1.msra.mxu0 %v2013
    %2029 = vmatprep.subr.mxu0 0.0
    %2030 = vmatpush1.msra.mxu0 %v2014
    %2031 = vmatprep.subr.mxu0 0.0
    %2032 = vmatpush1.msra.mxu0 %v2015
    %2033 = vmatprep.subr.mxu0 0.0
    %2034 = vmatpush1.msra.mxu0 %v2016
    %2035 = vmatprep.subr.mxu0 0.0
    %2036 = vmatpush1.msra.mxu0 0.0
    %2037 = vmatprep.subr.mxu0 0.0
    %2038 = vmatpush1.msra.mxu0 0.0
    %2039 = vmatprep.subr.mxu0 0.0
    %2040 = vmatpush1.msra.mxu0 0.0
    %2041 = vmatprep.subr.mxu0 0.0
    %2042 = vmatpush1.msra.mxu0 0.0
    %2043 = vmatprep.subr.mxu0 0.0
    %2044 = vmatpush1.msra.mxu0 0.0
    %2045 = vmatprep.subr.mxu0 0.0
    %2046 = vmatpush1.msra.mxu0 0.0
    %2047 = vmatprep.subr.mxu0 0.0
    %2048 = vmatpush1.msra.mxu0 0.0
    %2049 = vmatprep.subr.mxu0 0.0
    %2050 = vmatpush1.msra.mxu0 0.0
    %2051 = vmatprep.subr.mxu0 0.0
    %2052 = vmatpush1.msra.mxu0 0.0
    %2053 = vmatprep.subr.mxu0 0.0
    %2054 = vmatpush1.msra.mxu0 0.0
    %2055 = vmatprep.subr.mxu0 0.0
    %2056 = vmatpush1.msra.mxu0 0.0
    %2057 = vmatprep.subr.mxu0 0.0
    %2058 = vmatpush1.msra.mxu0 0.0
    %2059 = vmatprep.subr.mxu0 0.0
    %2060 = vmatpush1.msra.mxu0 0.0
    %2061 = vmatprep.subr.mxu0 0.0
    %2062 = vmatpush1.msra.mxu0 0.0
    %2063 = vmatprep.subr.mxu0 0.0
    %2064 = vmatpush1.msra.mxu0 0.0
    %2065 = vmatprep.subr.mxu0 0.0
    %2066 = vmatpush1.msra.mxu0 0.0
    %2067 = vmatprep.subr.mxu0 0.0
    %2068 = vmatpush1.msra.mxu0 0.0
    %2069 = vmatprep.subr.mxu0 0.0
    %2070 = vmatpush1.msra.mxu0 0.0
    %2071 = vmatprep.subr.mxu0 0.0
    %2072 = vmatpush1.msra.mxu0 0.0
    %2073 = vmatprep.subr.mxu0 0.0
    %2074 = vmatpush1.msra.mxu0 0.0
    %2075 = vmatprep.subr.mxu0 0.0
    %2076 = vmatpush1.msra.mxu0 0.0
    %2077 = vmatprep.subr.mxu0 0.0
    %2078 = vmatpush1.msra.mxu0 0.0
    %2079 = vmatprep.subr.mxu0 0.0
    %2080 = vmatpush1.msra.mxu0 0.0
    %2081 = vmatprep.subr.mxu0 0.0
    %2082 = vmatpush1.msra.mxu0 0.0
    %2083 = vmatprep.subr.mxu0 0.0
    %2084 = vmatpush1.msra.mxu0 0.0
    %2085 = vmatprep.subr.mxu0 0.0
    %2086 = vmatpush1.msra.mxu0 0.0
    %2087 = vmatprep.subr.mxu0 0.0
    %2088 = vmatpush1.msra.mxu0 0.0
    %2089 = vmatprep.subr.mxu0 0.0
    %2090 = vmatpush1.msra.mxu0 0.0
    %2091 = vmatprep.mubr.f32.mxu0 0.0
    %2092 = vmatmul.mubr.f32.gmra.mrb[0].mxu0 %v2022
    %v2093 = vpop.f32.mrb[0].mxu0
    %v2094 = vadd.f32 %v2020, %v2093
    %v2095 = vpop.f32.mrb[0].mxu0
    %2096 = vmatprep.mubr.f32.mxu0 0.0
    %2097 = vmatmul.mubr.f32.gmra.mrb[0].mxu0 %v2025
    %v2098 = vpop.f32.mrb[0].mxu0
    %v2099 = vadd.f32 %v2020, %v2098
    %v2100 = vpop.f32.mrb[0].mxu0
    %2101 = vdwg.mxu0
    %v2102 = vmul.f32 %v2094, %v2094
    %v2103 = vmul.f32 %v2099, %v2099
    %v2104 = vmul.f32 %v2094, %v2102
    %v2105 = vmul.f32 %v2099, %v2103
    %v2106 = vmul.f32 %v2104, 0.044715
    %v2107 = vmul.f32 %v2105, 0.044715
    %v2108 = vadd.f32 %v2094, %v2106
    %v2109 = vadd.f32 %v2099, %v2107
    %v2110 = vmul.f32 %v2108, 0.7978846
    %v2111 = vmul.f32 %v2109, 0.7978846
    %v2112 = vtanh.pop %v2110
    %v2113 = vtanh.pop %v2111
    %v2114 = vadd.f32 %v2112, 1.0
    %v2115 = vadd.f32 %v2113, 1.0
    %v2116 = vmul.f32 %v2114, 0.5
    %v2117 = vmul.f32 %v2115, 0.5
    %v2118 = vmul.f32 %v2094, %v2116
    %v2119 = vmul.f32 %v2099, %v2117
    %v2120 = vld [vmem:[%s9] sm:$0xff]
    %v2121 = vld [vmem:[%s9 + $0x8] sm:$0xff]
    %v2122 = vld [vmem:[%s9 + $0x10] sm:$0xff]
    %v2123 = vld [vmem:[%s9 + $0x18] sm:$0xff]
    %v2124 = vld [vmem:[%s9 + $0x20] sm:$0xff]
    %v2125 = vld [vmem:[%s9 + $0x28] sm:$0xff]
    %v2126 = vld [vmem:[%s9 + $0x30] sm:$0xff]
    %v2127 = vld [vmem:[%s9 + $0x38] sm:$0xff]
    %vm2128 = vcmask 523264
    %v2130 = vsel %vm2128, %v2118, 0
    %v2133 = vsel %vm2128, %v2119, 0
    %2135 = vmatprep.subr.mxu0 0.0
    %2136 = vmatpush1.msra.mxu0 %v2120
    %2137 = vmatprep.subr.mxu0 0.0
    %2138 = vmatpush1.msra.mxu0 %v2121
    %2139 = vmatprep.subr.mxu0 0.0
    %2140 = vmatpush1.msra.mxu0 %v2122
    %2141 = vmatprep.subr.mxu0 0.0
    %2142 = vmatpush1.msra.mxu0 %v2123
    %2143 = vmatprep.subr.mxu0 0.0
    %2144 = vmatpush1.msra.mxu0 %v2124
    %2145 = vmatprep.subr.mxu0 0.0
    %2146 = vmatpush1.msra.mxu0 %v2125
    %2147 = vmatprep.subr.mxu0 0.0
    %2148 = vmatpush1.msra.mxu0 %v2126
    %2149 = vmatprep.subr.mxu0 0.0
    %2150 = vmatpush1.msra.mxu0 %v2127
    %2151 = vmatprep.subr.mxu0 0.0
    %2152 = vmatpush1.msra.mxu0 0.0
    %2153 = vmatprep.subr.mxu0 0.0
    %2154 = vmatpush1.msra.mxu0 0.0
    %2155 = vmatprep.subr.mxu0 0.0
    %2156 = vmatpush1.msra.mxu0 0.0
    %2157 = vmatprep.subr.mxu0 0.0
    %2158 = vmatpush1.msra.mxu0 0.0
    %2159 = vmatprep.subr.mxu0 0.0
    %2160 = vmatpush1.msra.mxu0 0.0
    %2161 = vmatprep.subr.mxu0 0.0
    %2162 = vmatpush1.msra.mxu0 0.0
    %2163 = vmatprep.subr.mxu0 0.0
    %2164 = vmatpush1.msra.mxu0 0.0
    %2165 = vmatprep.subr.mxu0 0.0
    %2166 = vmatpush1.msra.mxu0 0.0
    %2167 = vmatprep.subr.mxu0 0.0
    %2168 = vmatpush1.msra.mxu0 0.0
    %2169 = vmatprep.subr.mxu0 0.0
    %2170 = vmatpush1.msra.mxu0 0.0
    %2171 = vmatprep.subr.mxu0 0.0
    %2172 = vmatpush1.msra.mxu0 0.0
    %2173 = vmatprep.subr.mxu0 0.0
    %2174 = vmatpush1.msra.mxu0 0.0
    %2175 = vmatprep.subr.mxu0 0.0
    %2176 = vmatpush1.msra.mxu0 0.0
    %2177 = vmatprep.subr.mxu0 0.0
    %2178 = vmatpush1.msra.mxu0 0.0
    %2179 = vmatprep.subr.mxu0 0.0
    %2180 = vmatpush1.msra.mxu0 0.0
    %2181 = vmatprep.subr.mxu0 0.0
    %2182 = vmatpush1.msra.mxu0 0.0
    %2183 = vmatprep.subr.mxu0 0.0
    %2184 = vmatpush1.msra.mxu0 0.0
    %2185 = vmatprep.subr.mxu0 0.0
    %2186 = vmatpush1.msra.mxu0 0.0
    %2187 = vmatprep.subr.mxu0 0.0
    %2188 = vmatpush1.msra.mxu0 0.0
    %2189 = vmatprep.subr.mxu0 0.0
    %2190 = vmatpush1.msra.mxu0 0.0
    %2191 = vmatprep.subr.mxu0 0.0
    %2192 = vmatpush1.msra.mxu0 0.0
    %2193 = vmatprep.subr.mxu0 0.0
    %2194 = vmatpush1.msra.mxu0 0.0
    %2195 = vmatprep.subr.mxu0 0.0
    %2196 = vmatpush1.msra.mxu0 0.0
    %2197 = vmatprep.subr.mxu0 0.0
    %2198 = vmatpush1.msra.mxu0 0.0
    %2199 = vmatprep.mubr.f32.mxu0 0.0
    %2200 = vmatmul.mubr.f32.gmra.mrb[0].mxu0 %v2130
    %v2201 = vpop.f32.mrb[0].mxu0
    %v2202 = vadd.f32 0.0, %v2201
    %v2203 = vpop.f32.mrb[0].mxu0
    %2204 = vmatprep.mubr.f32.mxu0 0.0
    %2205 = vmatmul.mubr.f32.gmra.mrb[0].mxu0 %v2133
    %v2206 = vpop.f32.mrb[0].mxu0
    %v2207 = vadd.f32 0.0, %v2206
    %v2208 = vpop.f32.mrb[0].mxu0
    %2209 = vdwg.mxu0
    %v2210 = vadd.f32 %v1973, %v2202
    %v2211 = vadd.f32 %v1974, %v2207
    %v2212 = vlaneseq
    %v2213 = vshrl.u32 %v2212, 7
    %v2214 = vsub.s32 0, %v2213
    %v2215 = vrot.slane %v381, %v2214
    %v2216 = vadd.f32 %v2210, %v2215
    %v2217 = vadd.f32 %v2211, %v2215
    %v2218 = vld [vmem:[%s4 + $0x4] sm:$0x1]
    %v2219 = vld [vmem:[%s4 + $0x5] sm:$0x1]
    %v2220 = vld [vmem:[%s4 + $0x6] sm:$0x1]
    %v2221 = vld [vmem:[%s4 + $0x7] sm:$0x1]
    %s2222 = scalar_lea.vmem %s5, 4
    %v2223 = vld [vmem:[%s2222] sm:$0x1]
    %v2224 = vld [vmem:[%s2222 + $0x1] sm:$0x1]
    %v2225 = vld [vmem:[%s2222 + $0x2] sm:$0x1]
    %v2226 = vld [vmem:[%s2222 + $0x3] sm:$0x1]
    %v2227 = vsel %vm355, %v2216, 0.0
    %2228 = vadd.xlane.f32.xlu0 %v2227
    %v2229 = vpop.xlane.xlu0 %2228
    %v2230 = vsel %vm355, %v2217, 0.0
    %2231 = vadd.xlane.f32.xlu0 %v2230
    %v2232 = vpop.xlane.xlu0 %2231
    %v2233 = vmul.f32 %v2229, %v388
    %v2234 = vmul.f32 %v2232, %v388
    %v2235 = vsub.f32 %v2216, %v2233
    %v2236 = vsub.f32 %v2217, %v2234
    %v2237 = vmul.f32 %v2235, %v2235
    %v2238 = vmul.f32 %v2236, %v2236
    %v2239 = vsel %vm355, %v2237, 0.0
    %2240 = vadd.xlane.f32.xlu0 %v2239
    %v2241 = vpop.xlane.xlu0 %2240
    %v2242 = vsel %vm355, %v2238, 0.0
    %2243 = vadd.xlane.f32.xlu0 %v2242
    %v2244 = vpop.xlane.xlu0 %2243
    %v2245 = vmul.f32 %v2241, %v388
    %v2246 = vmul.f32 %v2244, %v388
    %v2247 = vadd.f32 %v2245, 1e-06
    %v2248 = vadd.f32 %v2246, 1e-06
    %v2249 = vrsqrt.pop %v2247
    %v2250 = vrsqrt.pop %v2248
    %v2251 = vmul.f32 %v2235, %v2249
    %v2252 = vmul.f32 %v2236, %v2250
    %v2253 = vlaneseq
    %v2254 = vshrl.u32 %v2253, 7
    %v2255 = vsub.s32 0, %v2254
    %v2256 = vrot.slane %v2218, %v2255
    %v2257 = vmul.f32 %v2251, %v2256
    %v2258 = vmul.f32 %v2252, %v2256
    %v2259 = vlaneseq
    %v2260 = vshrl.u32 %v2259, 7
    %v2261 = vsub.s32 0, %v2260
    %v2262 = vrot.slane %v2219, %v2261
    %v2263 = vadd.f32 %v2257, %v2262
    %v2264 = vadd.f32 %v2258, %v2262
    %s2265 = scalar_lea.vmem %s6, 32
    %v2266 = vld [vmem:[%s2265] sm:$0xff]
    %v2267 = vld [vmem:[%s2265 + $0x8] sm:$0xff]
    %v2268 = vld [vmem:[%s2265 + $0x10] sm:$0xff]
    %v2269 = vld [vmem:[%s2265 + $0x18] sm:$0xff]
    %v2270 = vlaneseq
    %v2271 = vshrl.u32 %v2270, 7
    %v2272 = vsub.s32 0, %v2271
    %v2273 = vrot.slane %v2223, %v2272
    %v2275 = vsel %vm355, %v2263, 0
    %v2278 = vsel %vm355, %v2264, 0
    %2280 = vmatprep.subr.mxu0 0.0
    %2281 = vmatpush1.msra.mxu0 %v2266
    %2282 = vmatprep.subr.mxu0 0.0
    %2283 = vmatpush1.msra.mxu0 %v2267
    %2284 = vmatprep.subr.mxu0 0.0
    %2285 = vmatpush1.msra.mxu0 %v2268
    %2286 = vmatprep.subr.mxu0 0.0
    %2287 = vmatpush1.msra.mxu0 %v2269
    %2288 = vmatprep.subr.mxu0 0.0
    %2289 = vmatpush1.msra.mxu0 0.0
    %2290 = vmatprep.subr.mxu0 0.0
    %2291 = vmatpush1.msra.mxu0 0.0
    %2292 = vmatprep.subr.mxu0 0.0
    %2293 = vmatpush1.msra.mxu0 0.0
    %2294 = vmatprep.subr.mxu0 0.0
    %2295 = vmatpush1.msra.mxu0 0.0
    %2296 = vmatprep.subr.mxu0 0.0
    %2297 = vmatpush1.msra.mxu0 0.0
    %2298 = vmatprep.subr.mxu0 0.0
    %2299 = vmatpush1.msra.mxu0 0.0
    %2300 = vmatprep.subr.mxu0 0.0
    %2301 = vmatpush1.msra.mxu0 0.0
    %2302 = vmatprep.subr.mxu0 0.0
    %2303 = vmatpush1.msra.mxu0 0.0
    %2304 = vmatprep.subr.mxu0 0.0
    %2305 = vmatpush1.msra.mxu0 0.0
    %2306 = vmatprep.subr.mxu0 0.0
    %2307 = vmatpush1.msra.mxu0 0.0
    %2308 = vmatprep.subr.mxu0 0.0
    %2309 = vmatpush1.msra.mxu0 0.0
    %2310 = vmatprep.subr.mxu0 0.0
    %2311 = vmatpush1.msra.mxu0 0.0
    %2312 = vmatprep.subr.mxu0 0.0
    %2313 = vmatpush1.msra.mxu0 0.0
    %2314 = vmatprep.subr.mxu0 0.0
    %2315 = vmatpush1.msra.mxu0 0.0
    %2316 = vmatprep.subr.mxu0 0.0
    %2317 = vmatpush1.msra.mxu0 0.0
    %2318 = vmatprep.subr.mxu0 0.0
    %2319 = vmatpush1.msra.mxu0 0.0
    %2320 = vmatprep.subr.mxu0 0.0
    %2321 = vmatpush1.msra.mxu0 0.0
    %2322 = vmatprep.subr.mxu0 0.0
    %2323 = vmatpush1.msra.mxu0 0.0
    %2324 = vmatprep.subr.mxu0 0.0
    %2325 = vmatpush1.msra.mxu0 0.0
    %2326 = vmatprep.subr.mxu0 0.0
    %2327 = vmatpush1.msra.mxu0 0.0
    %2328 = vmatprep.subr.mxu0 0.0
    %2329 = vmatpush1.msra.mxu0 0.0
    %2330 = vmatprep.subr.mxu0 0.0
    %2331 = vmatpush1.msra.mxu0 0.0
    %2332 = vmatprep.subr.mxu0 0.0
    %2333 = vmatpush1.msra.mxu0 0.0
    %2334 = vmatprep.subr.mxu0 0.0
    %2335 = vmatpush1.msra.mxu0 0.0
    %2336 = vmatprep.subr.mxu0 0.0
    %2337 = vmatpush1.msra.mxu0 0.0
    %2338 = vmatprep.subr.mxu0 0.0
    %2339 = vmatpush1.msra.mxu0 0.0
    %2340 = vmatprep.subr.mxu0 0.0
    %2341 = vmatpush1.msra.mxu0 0.0
    %2342 = vmatprep.subr.mxu0 0.0
    %2343 = vmatpush1.msra.mxu0 0.0
    %2344 = vmatprep.mubr.f32.mxu0 0.0
    %2345 = vmatmul.mubr.f32.gmra.mrb[0].mxu0 %v2275
    %v2346 = vpop.f32.mrb[0].mxu0
    %v2347 = vadd.f32 %v2273, %v2346
    %v2348 = vpop.f32.mrb[0].mxu0
    %2349 = vmatprep.mubr.f32.mxu0 0.0
    %2350 = vmatmul.mubr.f32.gmra.mrb[0].mxu0 %v2278
    %v2351 = vpop.f32.mrb[0].mxu0
    %v2352 = vadd.f32 %v2273, %v2351
    %v2353 = vpop.f32.mrb[0].mxu0
    %2354 = vdwg.mxu0
    %2356 = vrot.lane.b32.xlu0 %v2347, 96
    %v2357 = vpop.permute.xlu0 %2356
    %v2358 = vsel %vm513, %v2347, 0
    %v2360 = vsel %vm513, %v2357, 0
    %2362 = vmatprep.subr.mxu0 0.0
    %2363 = vmatpush1.xpose.msra.mxu0 %v2360
    %2364 = vmatprep.subr.mxu0 0.0
    %2365 = vmatpush1.xpose.msra.mxu0 0.0
    %2366 = vmatprep.subr.mxu0 0.0
    %2367 = vmatpush1.xpose.msra.mxu0 0.0
    %2368 = vmatprep.subr.mxu0 0.0
    %2369 = vmatpush1.xpose.msra.mxu0 0.0
    %2370 = vmatprep.subr.mxu0 0.0
    %2371 = vmatpush1.xpose.msra.mxu0 0.0
    %2372 = vmatprep.subr.mxu0 0.0
    %2373 = vmatpush1.xpose.msra.mxu0 0.0
    %2374 = vmatprep.subr.mxu0 0.0
    %2375 = vmatpush1.xpose.msra.mxu0 0.0
    %2376 = vmatprep.subr.mxu0 0.0
    %2377 = vmatpush1.xpose.msra.mxu0 0.0
    %2378 = vmatprep.subr.mxu0 0.0
    %2379 = vmatpush1.xpose.msra.mxu0 0.0
    %2380 = vmatprep.subr.mxu0 0.0
    %2381 = vmatpush1.xpose.msra.mxu0 0.0
    %2382 = vmatprep.subr.mxu0 0.0
    %2383 = vmatpush1.xpose.msra.mxu0 0.0
    %2384 = vmatprep.subr.mxu0 0.0
    %2385 = vmatpush1.xpose.msra.mxu0 0.0
    %2386 = vmatprep.subr.mxu0 0.0
    %2387 = vmatpush1.xpose.msra.mxu0 0.0
    %2388 = vmatprep.subr.mxu0 0.0
    %2389 = vmatpush1.xpose.msra.mxu0 0.0
    %2390 = vmatprep.subr.mxu0 0.0
    %2391 = vmatpush1.xpose.msra.mxu0 0.0
    %2392 = vmatprep.subr.mxu0 0.0
    %2393 = vmatpush1.xpose.msra.mxu0 0.0
    %2394 = vmatprep.subr.mxu0 0.0
    %2395 = vmatpush1.xpose.msra.mxu0 0.0
    %2396 = vmatprep.subr.mxu0 0.0
    %2397 = vmatpush1.xpose.msra.mxu0 0.0
    %2398 = vmatprep.subr.mxu0 0.0
    %2399 = vmatpush1.xpose.msra.mxu0 0.0
    %2400 = vmatprep.subr.mxu0 0.0
    %2401 = vmatpush1.xpose.msra.mxu0 0.0
    %2402 = vmatprep.subr.mxu0 0.0
    %2403 = vmatpush1.xpose.msra.mxu0 0.0
    %2404 = vmatprep.subr.mxu0 0.0
    %2405 = vmatpush1.xpose.msra.mxu0 0.0
    %2406 = vmatprep.subr.mxu0 0.0
    %2407 = vmatpush1.xpose.msra.mxu0 0.0
    %2408 = vmatprep.subr.mxu0 0.0
    %2409 = vmatpush1.xpose.msra.mxu0 0.0
    %2410 = vmatprep.subr.mxu0 0.0
    %2411 = vmatpush1.xpose.msra.mxu0 0.0
    %2412 = vmatprep.subr.mxu0 0.0
    %2413 = vmatpush1.xpose.msra.mxu0 0.0
    %2414 = vmatprep.subr.mxu0 0.0
    %2415 = vmatpush1.xpose.msra.mxu0 0.0
    %2416 = vmatprep.subr.mxu0 0.0
    %2417 = vmatpush1.xpose.msra.mxu0 0.0
    %2418 = vmatprep.subr.mxu0 0.0
    %2419 = vmatpush1.xpose.msra.mxu0 0.0
    %2420 = vmatprep.subr.mxu0 0.0
    %2421 = vmatpush1.xpose.msra.mxu0 0.0
    %2422 = vmatprep.subr.mxu0 0.0
    %2423 = vmatpush1.xpose.msra.mxu0 0.0
    %2424 = vmatprep.subr.mxu0 0.0
    %2425 = vmatpush1.xpose.msra.mxu0 0.0
    %2426 = vmatprep.mubr.f32.mxu0 0.0
    %2427 = vmatmul.mubr.f32.gmra.mrb[0].mxu0 %v2358
    %v2428 = vpop.f32.mrb[0].mxu0
    %v2429 = vadd.f32 0.0, %v2428
    %v2430 = vpop.f32.mrb[0].mxu0
    %2431 = vdwg.mxu0
    %2433 = vrot.lane.b32.xlu0 %v2352, 96
    %v2434 = vpop.permute.xlu0 %2433
    %v2435 = vsel %vm513, %v2352, 0
    %v2437 = vsel %vm513, %v2434, 0
    %2439 = vmatprep.subr.mxu0 0.0
    %2440 = vmatpush1.xpose.msra.mxu0 %v2437
    %2441 = vmatprep.subr.mxu0 0.0
    %2442 = vmatpush1.xpose.msra.mxu0 0.0
    %2443 = vmatprep.subr.mxu0 0.0
    %2444 = vmatpush1.xpose.msra.mxu0 0.0
    %2445 = vmatprep.subr.mxu0 0.0
    %2446 = vmatpush1.xpose.msra.mxu0 0.0
    %2447 = vmatprep.subr.mxu0 0.0
    %2448 = vmatpush1.xpose.msra.mxu0 0.0
    %2449 = vmatprep.subr.mxu0 0.0
    %2450 = vmatpush1.xpose.msra.mxu0 0.0
    %2451 = vmatprep.subr.mxu0 0.0
    %2452 = vmatpush1.xpose.msra.mxu0 0.0
    %2453 = vmatprep.subr.mxu0 0.0
    %2454 = vmatpush1.xpose.msra.mxu0 0.0
    %2455 = vmatprep.subr.mxu0 0.0
    %2456 = vmatpush1.xpose.msra.mxu0 0.0
    %2457 = vmatprep.subr.mxu0 0.0
    %2458 = vmatpush1.xpose.msra.mxu0 0.0
    %2459 = vmatprep.subr.mxu0 0.0
    %2460 = vmatpush1.xpose.msra.mxu0 0.0
    %2461 = vmatprep.subr.mxu0 0.0
    %2462 = vmatpush1.xpose.msra.mxu0 0.0
    %2463 = vmatprep.subr.mxu0 0.0
    %2464 = vmatpush1.xpose.msra.mxu0 0.0
    %2465 = vmatprep.subr.mxu0 0.0
    %2466 = vmatpush1.xpose.msra.mxu0 0.0
    %2467 = vmatprep.subr.mxu0 0.0
    %2468 = vmatpush1.xpose.msra.mxu0 0.0
    %2469 = vmatprep.subr.mxu0 0.0
    %2470 = vmatpush1.xpose.msra.mxu0 0.0
    %2471 = vmatprep.subr.mxu0 0.0
    %2472 = vmatpush1.xpose.msra.mxu0 0.0
    %2473 = vmatprep.subr.mxu0 0.0
    %2474 = vmatpush1.xpose.msra.mxu0 0.0
    %2475 = vmatprep.subr.mxu0 0.0
    %2476 = vmatpush1.xpose.msra.mxu0 0.0
    %2477 = vmatprep.subr.mxu0 0.0
    %2478 = vmatpush1.xpose.msra.mxu0 0.0
    %2479 = vmatprep.subr.mxu0 0.0
    %2480 = vmatpush1.xpose.msra.mxu0 0.0
    %2481 = vmatprep.subr.mxu0 0.0
    %2482 = vmatpush1.xpose.msra.mxu0 0.0
    %2483 = vmatprep.subr.mxu0 0.0
    %2484 = vmatpush1.xpose.msra.mxu0 0.0
    %2485 = vmatprep.subr.mxu0 0.0
    %2486 = vmatpush1.xpose.msra.mxu0 0.0
    %2487 = vmatprep.subr.mxu0 0.0
    %2488 = vmatpush1.xpose.msra.mxu0 0.0
    %2489 = vmatprep.subr.mxu0 0.0
    %2490 = vmatpush1.xpose.msra.mxu0 0.0
    %2491 = vmatprep.subr.mxu0 0.0
    %2492 = vmatpush1.xpose.msra.mxu0 0.0
    %2493 = vmatprep.subr.mxu0 0.0
    %2494 = vmatpush1.xpose.msra.mxu0 0.0
    %2495 = vmatprep.subr.mxu0 0.0
    %2496 = vmatpush1.xpose.msra.mxu0 0.0
    %2497 = vmatprep.subr.mxu0 0.0
    %2498 = vmatpush1.xpose.msra.mxu0 0.0
    %2499 = vmatprep.subr.mxu0 0.0
    %2500 = vmatpush1.xpose.msra.mxu0 0.0
    %2501 = vmatprep.subr.mxu0 0.0
    %2502 = vmatpush1.xpose.msra.mxu0 0.0
    %2503 = vmatprep.mubr.f32.mxu0 0.0
    %2504 = vmatmul.mubr.f32.gmra.mrb[0].mxu0 %v2435
    %v2505 = vpop.f32.mrb[0].mxu0
    %v2506 = vadd.f32 0.0, %v2505
    %v2507 = vpop.f32.mrb[0].mxu0
    %2508 = vdwg.mxu0
    %v2509 = vmul.f32 %v2429, 0.35355338
    %v2510 = vmul.f32 %v2506, 0.35355338
    %v2511 = vadd.f32 %v2509, %v373
    %v2512 = vadd.f32 %v2510, %v373
    %v2513 = vsel %vm513, %v2511, -inf
    %2514 = vmax.xlane.f32.xlu0 %v2513
    %v2515 = vpop.xlane.xlu0 %2514
    %v2516 = vsel %vm513, %v2512, -inf
    %2517 = vmax.xlane.f32.xlu0 %v2516
    %v2518 = vpop.xlane.xlu0 %2517
    %v2519 = vsub.f32 %v2511, %v2515
    %v2520 = vsub.f32 %v2512, %v2518
    %v2521 = vmul.f32 %v2519, 1.442695
    %v2522 = vpow.pop %v2521
    %v2523 = vmul.f32 %v2520, 1.442695
    %v2524 = vpow.pop %v2523
    %v2525 = vsel %vm513, %v2522, 0.0
    %2526 = vadd.xlane.f32.xlu0 %v2525
    %v2527 = vpop.xlane.xlu0 %2526
    %v2528 = vsel %vm513, %v2524, 0.0
    %2529 = vadd.xlane.f32.xlu0 %v2528
    %v2530 = vpop.xlane.xlu0 %2529
    %v2531 = vrcp.pop %v2527
    %v2532 = vmul.f32 %v2522, %v2531
    %v2533 = vrcp.pop %v2530
    %v2534 = vmul.f32 %v2524, %v2533
    %2535 = vrot.lane.b32.xlu0 %v2347, 64
    %v2536 = vpop.permute.xlu0 %2535
    %v2539 = vsel %vm513, %v2532, 0
    %2541 = vmatprep.subr.mxu0 0.0
    %2542 = vmatpush1.msra.mxu0 %v2536
    %2543 = vmatprep.subr.mxu0 0.0
    %2544 = vmatpush1.msra.mxu0 0.0
    %2545 = vmatprep.subr.mxu0 0.0
    %2546 = vmatpush1.msra.mxu0 0.0
    %2547 = vmatprep.subr.mxu0 0.0
    %2548 = vmatpush1.msra.mxu0 0.0
    %2549 = vmatprep.subr.mxu0 0.0
    %2550 = vmatpush1.msra.mxu0 0.0
    %2551 = vmatprep.subr.mxu0 0.0
    %2552 = vmatpush1.msra.mxu0 0.0
    %2553 = vmatprep.subr.mxu0 0.0
    %2554 = vmatpush1.msra.mxu0 0.0
    %2555 = vmatprep.subr.mxu0 0.0
    %2556 = vmatpush1.msra.mxu0 0.0
    %2557 = vmatprep.subr.mxu0 0.0
    %2558 = vmatpush1.msra.mxu0 0.0
    %2559 = vmatprep.subr.mxu0 0.0
    %2560 = vmatpush1.msra.mxu0 0.0
    %2561 = vmatprep.subr.mxu0 0.0
    %2562 = vmatpush1.msra.mxu0 0.0
    %2563 = vmatprep.subr.mxu0 0.0
    %2564 = vmatpush1.msra.mxu0 0.0
    %2565 = vmatprep.subr.mxu0 0.0
    %2566 = vmatpush1.msra.mxu0 0.0
    %2567 = vmatprep.subr.mxu0 0.0
    %2568 = vmatpush1.msra.mxu0 0.0
    %2569 = vmatprep.subr.mxu0 0.0
    %2570 = vmatpush1.msra.mxu0 0.0
    %2571 = vmatprep.subr.mxu0 0.0
    %2572 = vmatpush1.msra.mxu0 0.0
    %2573 = vmatprep.subr.mxu0 0.0
    %2574 = vmatpush1.msra.mxu0 0.0
    %2575 = vmatprep.subr.mxu0 0.0
    %2576 = vmatpush1.msra.mxu0 0.0
    %2577 = vmatprep.subr.mxu0 0.0
    %2578 = vmatpush1.msra.mxu0 0.0
    %2579 = vmatprep.subr.mxu0 0.0
    %2580 = vmatpush1.msra.mxu0 0.0
    %2581 = vmatprep.subr.mxu0 0.0
    %2582 = vmatpush1.msra.mxu0 0.0
    %2583 = vmatprep.subr.mxu0 0.0
    %2584 = vmatpush1.msra.mxu0 0.0
    %2585 = vmatprep.subr.mxu0 0.0
    %2586 = vmatpush1.msra.mxu0 0.0
    %2587 = vmatprep.subr.mxu0 0.0
    %2588 = vmatpush1.msra.mxu0 0.0
    %2589 = vmatprep.subr.mxu0 0.0
    %2590 = vmatpush1.msra.mxu0 0.0
    %2591 = vmatprep.subr.mxu0 0.0
    %2592 = vmatpush1.msra.mxu0 0.0
    %2593 = vmatprep.subr.mxu0 0.0
    %2594 = vmatpush1.msra.mxu0 0.0
    %2595 = vmatprep.subr.mxu0 0.0
    %2596 = vmatpush1.msra.mxu0 0.0
    %2597 = vmatprep.subr.mxu0 0.0
    %2598 = vmatpush1.msra.mxu0 0.0
    %2599 = vmatprep.subr.mxu0 0.0
    %2600 = vmatpush1.msra.mxu0 0.0
    %2601 = vmatprep.subr.mxu0 0.0
    %2602 = vmatpush1.msra.mxu0 0.0
    %2603 = vmatprep.subr.mxu0 0.0
    %2604 = vmatpush1.msra.mxu0 0.0
    %2605 = vmatprep.mubr.f32.mxu0 0.0
    %2606 = vmatmul.mubr.f32.gmra.mrb[0].mxu0 %v2539
    %v2607 = vpop.f32.mrb[0].mxu0
    %v2608 = vadd.f32 0.0, %v2607
    %v2609 = vpop.f32.mrb[0].mxu0
    %2610 = vdwg.mxu0
    %2611 = vrot.lane.b32.xlu0 %v2352, 64
    %v2612 = vpop.permute.xlu0 %2611
    %v2615 = vsel %vm513, %v2534, 0
    %2617 = vmatprep.subr.mxu0 0.0
    %2618 = vmatpush1.msra.mxu0 %v2612
    %2619 = vmatprep.subr.mxu0 0.0
    %2620 = vmatpush1.msra.mxu0 0.0
    %2621 = vmatprep.subr.mxu0 0.0
    %2622 = vmatpush1.msra.mxu0 0.0
    %2623 = vmatprep.subr.mxu0 0.0
    %2624 = vmatpush1.msra.mxu0 0.0
    %2625 = vmatprep.subr.mxu0 0.0
    %2626 = vmatpush1.msra.mxu0 0.0
    %2627 = vmatprep.subr.mxu0 0.0
    %2628 = vmatpush1.msra.mxu0 0.0
    %2629 = vmatprep.subr.mxu0 0.0
    %2630 = vmatpush1.msra.mxu0 0.0
    %2631 = vmatprep.subr.mxu0 0.0
    %2632 = vmatpush1.msra.mxu0 0.0
    %2633 = vmatprep.subr.mxu0 0.0
    %2634 = vmatpush1.msra.mxu0 0.0
    %2635 = vmatprep.subr.mxu0 0.0
    %2636 = vmatpush1.msra.mxu0 0.0
    %2637 = vmatprep.subr.mxu0 0.0
    %2638 = vmatpush1.msra.mxu0 0.0
    %2639 = vmatprep.subr.mxu0 0.0
    %2640 = vmatpush1.msra.mxu0 0.0
    %2641 = vmatprep.subr.mxu0 0.0
    %2642 = vmatpush1.msra.mxu0 0.0
    %2643 = vmatprep.subr.mxu0 0.0
    %2644 = vmatpush1.msra.mxu0 0.0
    %2645 = vmatprep.subr.mxu0 0.0
    %2646 = vmatpush1.msra.mxu0 0.0
    %2647 = vmatprep.subr.mxu0 0.0
    %2648 = vmatpush1.msra.mxu0 0.0
    %2649 = vmatprep.subr.mxu0 0.0
    %2650 = vmatpush1.msra.mxu0 0.0
    %2651 = vmatprep.subr.mxu0 0.0
    %2652 = vmatpush1.msra.mxu0 0.0
    %2653 = vmatprep.subr.mxu0 0.0
    %2654 = vmatpush1.msra.mxu0 0.0
    %2655 = vmatprep.subr.mxu0 0.0
    %2656 = vmatpush1.msra.mxu0 0.0
    %2657 = vmatprep.subr.mxu0 0.0
    %2658 = vmatpush1.msra.mxu0 0.0
    %2659 = vmatprep.subr.mxu0 0.0
    %2660 = vmatpush1.msra.mxu0 0.0
    %2661 = vmatprep.subr.mxu0 0.0
    %2662 = vmatpush1.msra.mxu0 0.0
    %2663 = vmatprep.subr.mxu0 0.0
    %2664 = vmatpush1.msra.mxu0 0.0
    %2665 = vmatprep.subr.mxu0 0.0
    %2666 = vmatpush1.msra.mxu0 0.0
    %2667 = vmatprep.subr.mxu0 0.0
    %2668 = vmatpush1.msra.mxu0 0.0
    %2669 = vmatprep.subr.mxu0 0.0
    %2670 = vmatpush1.msra.mxu0 0.0
    %2671 = vmatprep.subr.mxu0 0.0
    %2672 = vmatpush1.msra.mxu0 0.0
    %2673 = vmatprep.subr.mxu0 0.0
    %2674 = vmatpush1.msra.mxu0 0.0
    %2675 = vmatprep.subr.mxu0 0.0
    %2676 = vmatpush1.msra.mxu0 0.0
    %2677 = vmatprep.subr.mxu0 0.0
    %2678 = vmatpush1.msra.mxu0 0.0
    %2679 = vmatprep.subr.mxu0 0.0
    %2680 = vmatpush1.msra.mxu0 0.0
    %2681 = vmatprep.mubr.f32.mxu0 0.0
    %2682 = vmatmul.mubr.f32.gmra.mrb[0].mxu0 %v2615
    %v2683 = vpop.f32.mrb[0].mxu0
    %v2684 = vadd.f32 0.0, %v2683
    %v2685 = vpop.f32.mrb[0].mxu0
    %2686 = vdwg.mxu0
    %2687 = vst.msk [vmem:[#allocation2] sm:$0xff] %vm513, %v2608
    %2688 = vst.msk [vmem:[#allocation2 + $0x8] sm:$0xff] %vm513, %v2684
    %2689 = vrot.lane.b32.xlu0 %v2347, 120
    %v2690 = vpop.permute.xlu0 %2689
    %2691 = vrot.lane.b32.xlu0 %v2347, 88
    %v2692 = vpop.permute.xlu0 %2691
    %v2693 = vsel %vm513, %v2690, 0
    %v2695 = vsel %vm513, %v2692, 0
    %2697 = vmatprep.subr.mxu0 0.0
    %2698 = vmatpush1.xpose.msra.mxu0 %v2695
    %2699 = vmatprep.subr.mxu0 0.0
    %2700 = vmatpush1.xpose.msra.mxu0 0.0
    %2701 = vmatprep.subr.mxu0 0.0
    %2702 = vmatpush1.xpose.msra.mxu0 0.0
    %2703 = vmatprep.subr.mxu0 0.0
    %2704 = vmatpush1.xpose.msra.mxu0 0.0
    %2705 = vmatprep.subr.mxu0 0.0
    %2706 = vmatpush1.xpose.msra.mxu0 0.0
    %2707 = vmatprep.subr.mxu0 0.0
    %2708 = vmatpush1.xpose.msra.mxu0 0.0
    %2709 = vmatprep.subr.mxu0 0.0
    %2710 = vmatpush1.xpose.msra.mxu0 0.0
    %2711 = vmatprep.subr.mxu0 0.0
    %2712 = vmatpush1.xpose.msra.mxu0 0.0
    %2713 = vmatprep.subr.mxu0 0.0
    %2714 = vmatpush1.xpose.msra.mxu0 0.0
    %2715 = vmatprep.subr.mxu0 0.0
    %2716 = vmatpush1.xpose.msra.mxu0 0.0
    %2717 = vmatprep.subr.mxu0 0.0
    %2718 = vmatpush1.xpose.msra.mxu0 0.0
    %2719 = vmatprep.subr.mxu0 0.0
    %2720 = vmatpush1.xpose.msra.mxu0 0.0
    %2721 = vmatprep.subr.mxu0 0.0
    %2722 = vmatpush1.xpose.msra.mxu0 0.0
    %2723 = vmatprep.subr.mxu0 0.0
    %2724 = vmatpush1.xpose.msra.mxu0 0.0
    %2725 = vmatprep.subr.mxu0 0.0
    %2726 = vmatpush1.xpose.msra.mxu0 0.0
    %2727 = vmatprep.subr.mxu0 0.0
    %2728 = vmatpush1.xpose.msra.mxu0 0.0
    %2729 = vmatprep.subr.mxu0 0.0
    %2730 = vmatpush1.xpose.msra.mxu0 0.0
    %2731 = vmatprep.subr.mxu0 0.0
    %2732 = vmatpush1.xpose.msra.mxu0 0.0
    %2733 = vmatprep.subr.mxu0 0.0
    %2734 = vmatpush1.xpose.msra.mxu0 0.0
    %2735 = vmatprep.subr.mxu0 0.0
    %2736 = vmatpush1.xpose.msra.mxu0 0.0
    %2737 = vmatprep.subr.mxu0 0.0
    %2738 = vmatpush1.xpose.msra.mxu0 0.0
    %2739 = vmatprep.subr.mxu0 0.0
    %2740 = vmatpush1.xpose.msra.mxu0 0.0
    %2741 = vmatprep.subr.mxu0 0.0
    %2742 = vmatpush1.xpose.msra.mxu0 0.0
    %2743 = vmatprep.subr.mxu0 0.0
    %2744 = vmatpush1.xpose.msra.mxu0 0.0
    %2745 = vmatprep.subr.mxu0 0.0
    %2746 = vmatpush1.xpose.msra.mxu0 0.0
    %2747 = vmatprep.subr.mxu0 0.0
    %2748 = vmatpush1.xpose.msra.mxu0 0.0
    %2749 = vmatprep.subr.mxu0 0.0
    %2750 = vmatpush1.xpose.msra.mxu0 0.0
    %2751 = vmatprep.subr.mxu0 0.0
    %2752 = vmatpush1.xpose.msra.mxu0 0.0
    %2753 = vmatprep.subr.mxu0 0.0
    %2754 = vmatpush1.xpose.msra.mxu0 0.0
    %2755 = vmatprep.subr.mxu0 0.0
    %2756 = vmatpush1.xpose.msra.mxu0 0.0
    %2757 = vmatprep.subr.mxu0 0.0
    %2758 = vmatpush1.xpose.msra.mxu0 0.0
    %2759 = vmatprep.subr.mxu0 0.0
    %2760 = vmatpush1.xpose.msra.mxu0 0.0
    %2761 = vmatprep.mubr.f32.mxu0 0.0
    %2762 = vmatmul.mubr.f32.gmra.mrb[0].mxu0 %v2693
    %v2763 = vpop.f32.mrb[0].mxu0
    %v2764 = vadd.f32 0.0, %v2763
    %v2765 = vpop.f32.mrb[0].mxu0
    %2766 = vdwg.mxu0
    %2767 = vrot.lane.b32.xlu0 %v2352, 120
    %v2768 = vpop.permute.xlu0 %2767
    %2769 = vrot.lane.b32.xlu0 %v2352, 88
    %v2770 = vpop.permute.xlu0 %2769
    %v2771 = vsel %vm513, %v2768, 0
    %v2773 = vsel %vm513, %v2770, 0
    %2775 = vmatprep.subr.mxu0 0.0
    %2776 = vmatpush1.xpose.msra.mxu0 %v2773
    %2777 = vmatprep.subr.mxu0 0.0
    %2778 = vmatpush1.xpose.msra.mxu0 0.0
    %2779 = vmatprep.subr.mxu0 0.0
    %2780 = vmatpush1.xpose.msra.mxu0 0.0
    %2781 = vmatprep.subr.mxu0 0.0
    %2782 = vmatpush1.xpose.msra.mxu0 0.0
    %2783 = vmatprep.subr.mxu0 0.0
    %2784 = vmatpush1.xpose.msra.mxu0 0.0
    %2785 = vmatprep.subr.mxu0 0.0
    %2786 = vmatpush1.xpose.msra.mxu0 0.0
    %2787 = vmatprep.subr.mxu0 0.0
    %2788 = vmatpush1.xpose.msra.mxu0 0.0
    %2789 = vmatprep.subr.mxu0 0.0
    %2790 = vmatpush1.xpose.msra.mxu0 0.0
    %2791 = vmatprep.subr.mxu0 0.0
    %2792 = vmatpush1.xpose.msra.mxu0 0.0
    %2793 = vmatprep.subr.mxu0 0.0
    %2794 = vmatpush1.xpose.msra.mxu0 0.0
    %2795 = vmatprep.subr.mxu0 0.0
    %2796 = vmatpush1.xpose.msra.mxu0 0.0
    %2797 = vmatprep.subr.mxu0 0.0
    %2798 = vmatpush1.xpose.msra.mxu0 0.0
    %2799 = vmatprep.subr.mxu0 0.0
    %2800 = vmatpush1.xpose.msra.mxu0 0.0
    %2801 = vmatprep.subr.mxu0 0.0
    %2802 = vmatpush1.xpose.msra.mxu0 0.0
    %2803 = vmatprep.subr.mxu0 0.0
    %2804 = vmatpush1.xpose.msra.mxu0 0.0
    %2805 = vmatprep.subr.mxu0 0.0
    %2806 = vmatpush1.xpose.msra.mxu0 0.0
    %2807 = vmatprep.subr.mxu0 0.0
    %2808 = vmatpush1.xpose.msra.mxu0 0.0
    %2809 = vmatprep.subr.mxu0 0.0
    %2810 = vmatpush1.xpose.msra.mxu0 0.0
    %2811 = vmatprep.subr.mxu0 0.0
    %2812 = vmatpush1.xpose.msra.mxu0 0.0
    %2813 = vmatprep.subr.mxu0 0.0
    %2814 = vmatpush1.xpose.msra.mxu0 0.0
    %2815 = vmatprep.subr.mxu0 0.0
    %2816 = vmatpush1.xpose.msra.mxu0 0.0
    %2817 = vmatprep.subr.mxu0 0.0
    %2818 = vmatpush1.xpose.msra.mxu0 0.0
    %2819 = vmatprep.subr.mxu0 0.0
    %2820 = vmatpush1.xpose.msra.mxu0 0.0
    %2821 = vmatprep.subr.mxu0 0.0
    %2822 = vmatpush1.xpose.msra.mxu0 0.0
    %2823 = vmatprep.subr.mxu0 0.0
    %2824 = vmatpush1.xpose.msra.mxu0 0.0
    %2825 = vmatprep.subr.mxu0 0.0
    %2826 = vmatpush1.xpose.msra.mxu0 0.0
    %2827 = vmatprep.subr.mxu0 0.0
    %2828 = vmatpush1.xpose.msra.mxu0 0.0
    %2829 = vmatprep.subr.mxu0 0.0
    %2830 = vmatpush1.xpose.msra.mxu0 0.0
    %2831 = vmatprep.subr.mxu0 0.0
    %2832 = vmatpush1.xpose.msra.mxu0 0.0
    %2833 = vmatprep.subr.mxu0 0.0
    %2834 = vmatpush1.xpose.msra.mxu0 0.0
    %2835 = vmatprep.subr.mxu0 0.0
    %2836 = vmatpush1.xpose.msra.mxu0 0.0
    %2837 = vmatprep.subr.mxu0 0.0
    %2838 = vmatpush1.xpose.msra.mxu0 0.0
    %2839 = vmatprep.mubr.f32.mxu0 0.0
    %2840 = vmatmul.mubr.f32.gmra.mrb[0].mxu0 %v2771
    %v2841 = vpop.f32.mrb[0].mxu0
    %v2842 = vadd.f32 0.0, %v2841
    %v2843 = vpop.f32.mrb[0].mxu0
    %2844 = vdwg.mxu0
    %v2845 = vmul.f32 %v2764, 0.35355338
    %v2846 = vmul.f32 %v2842, 0.35355338
    %v2847 = vadd.f32 %v2845, %v373
    %v2848 = vadd.f32 %v2846, %v373
    %v2849 = vsel %vm513, %v2847, -inf
    %2850 = vmax.xlane.f32.xlu0 %v2849
    %v2851 = vpop.xlane.xlu0 %2850
    %v2852 = vsel %vm513, %v2848, -inf
    %2853 = vmax.xlane.f32.xlu0 %v2852
    %v2854 = vpop.xlane.xlu0 %2853
    %v2855 = vsub.f32 %v2847, %v2851
    %v2856 = vsub.f32 %v2848, %v2854
    %v2857 = vmul.f32 %v2855, 1.442695
    %v2858 = vpow.pop %v2857
    %v2859 = vmul.f32 %v2856, 1.442695
    %v2860 = vpow.pop %v2859
    %v2861 = vsel %vm513, %v2858, 0.0
    %2862 = vadd.xlane.f32.xlu0 %v2861
    %v2863 = vpop.xlane.xlu0 %2862
    %v2864 = vsel %vm513, %v2860, 0.0
    %2865 = vadd.xlane.f32.xlu0 %v2864
    %v2866 = vpop.xlane.xlu0 %2865
    %v2867 = vrcp.pop %v2863
    %v2868 = vmul.f32 %v2858, %v2867
    %v2869 = vrcp.pop %v2866
    %v2870 = vmul.f32 %v2860, %v2869
    %2871 = vrot.lane.b32.xlu0 %v2347, 56
    %v2872 = vpop.permute.xlu0 %2871
    %v2875 = vsel %vm513, %v2868, 0
    %2877 = vmatprep.subr.mxu0 0.0
    %2878 = vmatpush1.msra.mxu0 %v2872
    %2879 = vmatprep.subr.mxu0 0.0
    %2880 = vmatpush1.msra.mxu0 0.0
    %2881 = vmatprep.subr.mxu0 0.0
    %2882 = vmatpush1.msra.mxu0 0.0
    %2883 = vmatprep.subr.mxu0 0.0
    %2884 = vmatpush1.msra.mxu0 0.0
    %2885 = vmatprep.subr.mxu0 0.0
    %2886 = vmatpush1.msra.mxu0 0.0
    %2887 = vmatprep.subr.mxu0 0.0
    %2888 = vmatpush1.msra.mxu0 0.0
    %2889 = vmatprep.subr.mxu0 0.0
    %2890 = vmatpush1.msra.mxu0 0.0
    %2891 = vmatprep.subr.mxu0 0.0
    %2892 = vmatpush1.msra.mxu0 0.0
    %2893 = vmatprep.subr.mxu0 0.0
    %2894 = vmatpush1.msra.mxu0 0.0
    %2895 = vmatprep.subr.mxu0 0.0
    %2896 = vmatpush1.msra.mxu0 0.0
    %2897 = vmatprep.subr.mxu0 0.0
    %2898 = vmatpush1.msra.mxu0 0.0
    %2899 = vmatprep.subr.mxu0 0.0
    %2900 = vmatpush1.msra.mxu0 0.0
    %2901 = vmatprep.subr.mxu0 0.0
    %2902 = vmatpush1.msra.mxu0 0.0
    %2903 = vmatprep.subr.mxu0 0.0
    %2904 = vmatpush1.msra.mxu0 0.0
    %2905 = vmatprep.subr.mxu0 0.0
    %2906 = vmatpush1.msra.mxu0 0.0
    %2907 = vmatprep.subr.mxu0 0.0
    %2908 = vmatpush1.msra.mxu0 0.0
    %2909 = vmatprep.subr.mxu0 0.0
    %2910 = vmatpush1.msra.mxu0 0.0
    %2911 = vmatprep.subr.mxu0 0.0
    %2912 = vmatpush1.msra.mxu0 0.0
    %2913 = vmatprep.subr.mxu0 0.0
    %2914 = vmatpush1.msra.mxu0 0.0
    %2915 = vmatprep.subr.mxu0 0.0
    %2916 = vmatpush1.msra.mxu0 0.0
    %2917 = vmatprep.subr.mxu0 0.0
    %2918 = vmatpush1.msra.mxu0 0.0
    %2919 = vmatprep.subr.mxu0 0.0
    %2920 = vmatpush1.msra.mxu0 0.0
    %2921 = vmatprep.subr.mxu0 0.0
    %2922 = vmatpush1.msra.mxu0 0.0
    %2923 = vmatprep.subr.mxu0 0.0
    %2924 = vmatpush1.msra.mxu0 0.0
    %2925 = vmatprep.subr.mxu0 0.0
    %2926 = vmatpush1.msra.mxu0 0.0
    %2927 = vmatprep.subr.mxu0 0.0
    %2928 = vmatpush1.msra.mxu0 0.0
    %2929 = vmatprep.subr.mxu0 0.0
    %2930 = vmatpush1.msra.mxu0 0.0
    %2931 = vmatprep.subr.mxu0 0.0
    %2932 = vmatpush1.msra.mxu0 0.0
    %2933 = vmatprep.subr.mxu0 0.0
    %2934 = vmatpush1.msra.mxu0 0.0
    %2935 = vmatprep.subr.mxu0 0.0
    %2936 = vmatpush1.msra.mxu0 0.0
    %2937 = vmatprep.subr.mxu0 0.0
    %2938 = vmatpush1.msra.mxu0 0.0
    %2939 = vmatprep.subr.mxu0 0.0
    %2940 = vmatpush1.msra.mxu0 0.0
    %2941 = vmatprep.mubr.f32.mxu0 0.0
    %2942 = vmatmul.mubr.f32.gmra.mrb[0].mxu0 %v2875
    %v2943 = vpop.f32.mrb[0].mxu0
    %v2944 = vadd.f32 0.0, %v2943
    %v2945 = vpop.f32.mrb[0].mxu0
    %2946 = vdwg.mxu0
    %2947 = vrot.lane.b32.xlu0 %v2352, 56
    %v2948 = vpop.permute.xlu0 %2947
    %v2951 = vsel %vm513, %v2870, 0
    %2953 = vmatprep.subr.mxu0 0.0
    %2954 = vmatpush1.msra.mxu0 %v2948
    %2955 = vmatprep.subr.mxu0 0.0
    %2956 = vmatpush1.msra.mxu0 0.0
    %2957 = vmatprep.subr.mxu0 0.0
    %2958 = vmatpush1.msra.mxu0 0.0
    %2959 = vmatprep.subr.mxu0 0.0
    %2960 = vmatpush1.msra.mxu0 0.0
    %2961 = vmatprep.subr.mxu0 0.0
    %2962 = vmatpush1.msra.mxu0 0.0
    %2963 = vmatprep.subr.mxu0 0.0
    %2964 = vmatpush1.msra.mxu0 0.0
    %2965 = vmatprep.subr.mxu0 0.0
    %2966 = vmatpush1.msra.mxu0 0.0
    %2967 = vmatprep.subr.mxu0 0.0
    %2968 = vmatpush1.msra.mxu0 0.0
    %2969 = vmatprep.subr.mxu0 0.0
    %2970 = vmatpush1.msra.mxu0 0.0
    %2971 = vmatprep.subr.mxu0 0.0
    %2972 = vmatpush1.msra.mxu0 0.0
    %2973 = vmatprep.subr.mxu0 0.0
    %2974 = vmatpush1.msra.mxu0 0.0
    %2975 = vmatprep.subr.mxu0 0.0
    %2976 = vmatpush1.msra.mxu0 0.0
    %2977 = vmatprep.subr.mxu0 0.0
    %2978 = vmatpush1.msra.mxu0 0.0
    %2979 = vmatprep.subr.mxu0 0.0
    %2980 = vmatpush1.msra.mxu0 0.0
    %2981 = vmatprep.subr.mxu0 0.0
    %2982 = vmatpush1.msra.mxu0 0.0
    %2983 = vmatprep.subr.mxu0 0.0
    %2984 = vmatpush1.msra.mxu0 0.0
    %2985 = vmatprep.subr.mxu0 0.0
    %2986 = vmatpush1.msra.mxu0 0.0
    %2987 = vmatprep.subr.mxu0 0.0
    %2988 = vmatpush1.msra.mxu0 0.0
    %2989 = vmatprep.subr.mxu0 0.0
    %2990 = vmatpush1.msra.mxu0 0.0
    %2991 = vmatprep.subr.mxu0 0.0
    %2992 = vmatpush1.msra.mxu0 0.0
    %2993 = vmatprep.subr.mxu0 0.0
    %2994 = vmatpush1.msra.mxu0 0.0
    %2995 = vmatprep.subr.mxu0 0.0
    %2996 = vmatpush1.msra.mxu0 0.0
    %2997 = vmatprep.subr.mxu0 0.0
    %2998 = vmatpush1.msra.mxu0 0.0
    %2999 = vmatprep.subr.mxu0 0.0
    %3000 = vmatpush1.msra.mxu0 0.0
    %3001 = vmatprep.subr.mxu0 0.0
    %3002 = vmatpush1.msra.mxu0 0.0
    %3003 = vmatprep.subr.mxu0 0.0
    %3004 = vmatpush1.msra.mxu0 0.0
    %3005 = vmatprep.subr.mxu0 0.0
    %3006 = vmatpush1.msra.mxu0 0.0
    %3007 = vmatprep.subr.mxu0 0.0
    %3008 = vmatpush1.msra.mxu0 0.0
    %3009 = vmatprep.subr.mxu0 0.0
    %3010 = vmatpush1.msra.mxu0 0.0
    %3011 = vmatprep.subr.mxu0 0.0
    %3012 = vmatpush1.msra.mxu0 0.0
    %3013 = vmatprep.subr.mxu0 0.0
    %3014 = vmatpush1.msra.mxu0 0.0
    %3015 = vmatprep.subr.mxu0 0.0
    %3016 = vmatpush1.msra.mxu0 0.0
    %3017 = vmatprep.mubr.f32.mxu0 0.0
    %3018 = vmatmul.mubr.f32.gmra.mrb[0].mxu0 %v2951
    %v3019 = vpop.f32.mrb[0].mxu0
    %v3020 = vadd.f32 0.0, %v3019
    %v3021 = vpop.f32.mrb[0].mxu0
    %3022 = vdwg.mxu0
    %3025 = vrot.lane.b32.xlu0 %v2944, 8
    %v3026 = vpop.permute.xlu0 %3025
    %3027 = vrot.lane.b32.xlu0 %v3020, 8
    %v3028 = vpop.permute.xlu0 %3027
    %3031 = vst.msk [vmem:[#allocation2] sm:$0xff] %vm1187, %v3026
    %3032 = vst.msk [vmem:[#allocation2 + $0x8] sm:$0xff] %vm1187, %v3028
    %3033 = vrot.lane.b32.xlu0 %v2347, 112
    %v3034 = vpop.permute.xlu0 %3033
    %3035 = vrot.lane.b32.xlu0 %v2347, 80
    %v3036 = vpop.permute.xlu0 %3035
    %v3037 = vsel %vm513, %v3034, 0
    %v3039 = vsel %vm513, %v3036, 0
    %3041 = vmatprep.subr.mxu0 0.0
    %3042 = vmatpush1.xpose.msra.mxu0 %v3039
    %3043 = vmatprep.subr.mxu0 0.0
    %3044 = vmatpush1.xpose.msra.mxu0 0.0
    %3045 = vmatprep.subr.mxu0 0.0
    %3046 = vmatpush1.xpose.msra.mxu0 0.0
    %3047 = vmatprep.subr.mxu0 0.0
    %3048 = vmatpush1.xpose.msra.mxu0 0.0
    %3049 = vmatprep.subr.mxu0 0.0
    %3050 = vmatpush1.xpose.msra.mxu0 0.0
    %3051 = vmatprep.subr.mxu0 0.0
    %3052 = vmatpush1.xpose.msra.mxu0 0.0
    %3053 = vmatprep.subr.mxu0 0.0
    %3054 = vmatpush1.xpose.msra.mxu0 0.0
    %3055 = vmatprep.subr.mxu0 0.0
    %3056 = vmatpush1.xpose.msra.mxu0 0.0
    %3057 = vmatprep.subr.mxu0 0.0
    %3058 = vmatpush1.xpose.msra.mxu0 0.0
    %3059 = vmatprep.subr.mxu0 0.0
    %3060 = vmatpush1.xpose.msra.mxu0 0.0
    %3061 = vmatprep.subr.mxu0 0.0
    %3062 = vmatpush1.xpose.msra.mxu0 0.0
    %3063 = vmatprep.subr.mxu0 0.0
    %3064 = vmatpush1.xpose.msra.mxu0 0.0
    %3065 = vmatprep.subr.mxu0 0.0
    %3066 = vmatpush1.xpose.msra.mxu0 0.0
    %3067 = vmatprep.subr.mxu0 0.0
    %3068 = vmatpush1.xpose.msra.mxu0 0.0
    %3069 = vmatprep.subr.mxu0 0.0
    %3070 = vmatpush1.xpose.msra.mxu0 0.0
    %3071 = vmatprep.subr.mxu0 0.0
    %3072 = vmatpush1.xpose.msra.mxu0 0.0
    %3073 = vmatprep.subr.mxu0 0.0
    %3074 = vmatpush1.xpose.msra.mxu0 0.0
    %3075 = vmatprep.subr.mxu0 0.0
    %3076 = vmatpush1.xpose.msra.mxu0 0.0
    %3077 = vmatprep.subr.mxu0 0.0
    %3078 = vmatpush1.xpose.msra.mxu0 0.0
    %3079 = vmatprep.subr.mxu0 0.0
    %3080 = vmatpush1.xpose.msra.mxu0 0.0
    %3081 = vmatprep.subr.mxu0 0.0
    %3082 = vmatpush1.xpose.msra.mxu0 0.0
    %3083 = vmatprep.subr.mxu0 0.0
    %3084 = vmatpush1.xpose.msra.mxu0 0.0
    %3085 = vmatprep.subr.mxu0 0.0
    %3086 = vmatpush1.xpose.msra.mxu0 0.0
    %3087 = vmatprep.subr.mxu0 0.0
    %3088 = vmatpush1.xpose.msra.mxu0 0.0
    %3089 = vmatprep.subr.mxu0 0.0
    %3090 = vmatpush1.xpose.msra.mxu0 0.0
    %3091 = vmatprep.subr.mxu0 0.0
    %3092 = vmatpush1.xpose.msra.mxu0 0.0
    %3093 = vmatprep.subr.mxu0 0.0
    %3094 = vmatpush1.xpose.msra.mxu0 0.0
    %3095 = vmatprep.subr.mxu0 0.0
    %3096 = vmatpush1.xpose.msra.mxu0 0.0
    %3097 = vmatprep.subr.mxu0 0.0
    %3098 = vmatpush1.xpose.msra.mxu0 0.0
    %3099 = vmatprep.subr.mxu0 0.0
    %3100 = vmatpush1.xpose.msra.mxu0 0.0
    %3101 = vmatprep.subr.mxu0 0.0
    %3102 = vmatpush1.xpose.msra.mxu0 0.0
    %3103 = vmatprep.subr.mxu0 0.0
    %3104 = vmatpush1.xpose.msra.mxu0 0.0
    %3105 = vmatprep.mubr.f32.mxu0 0.0
    %3106 = vmatmul.mubr.f32.gmra.mrb[0].mxu0 %v3037
    %v3107 = vpop.f32.mrb[0].mxu0
    %v3108 = vadd.f32 0.0, %v3107
    %v3109 = vpop.f32.mrb[0].mxu0
    %3110 = vdwg.mxu0
    %3111 = vrot.lane.b32.xlu0 %v2352, 112
    %v3112 = vpop.permute.xlu0 %3111
    %3113 = vrot.lane.b32.xlu0 %v2352, 80
    %v3114 = vpop.permute.xlu0 %3113
    %v3115 = vsel %vm513, %v3112, 0
    %v3117 = vsel %vm513, %v3114, 0
    %3119 = vmatprep.subr.mxu0 0.0
    %3120 = vmatpush1.xpose.msra.mxu0 %v3117
    %3121 = vmatprep.subr.mxu0 0.0
    %3122 = vmatpush1.xpose.msra.mxu0 0.0
    %3123 = vmatprep.subr.mxu0 0.0
    %3124 = vmatpush1.xpose.msra.mxu0 0.0
    %3125 = vmatprep.subr.mxu0 0.0
    %3126 = vmatpush1.xpose.msra.mxu0 0.0
    %3127 = vmatprep.subr.mxu0 0.0
    %3128 = vmatpush1.xpose.msra.mxu0 0.0
    %3129 = vmatprep.subr.mxu0 0.0
    %3130 = vmatpush1.xpose.msra.mxu0 0.0
    %3131 = vmatprep.subr.mxu0 0.0
    %3132 = vmatpush1.xpose.msra.mxu0 0.0
    %3133 = vmatprep.subr.mxu0 0.0
    %3134 = vmatpush1.xpose.msra.mxu0 0.0
    %3135 = vmatprep.subr.mxu0 0.0
    %3136 = vmatpush1.xpose.msra.mxu0 0.0
    %3137 = vmatprep.subr.mxu0 0.0
    %3138 = vmatpush1.xpose.msra.mxu0 0.0
    %3139 = vmatprep.subr.mxu0 0.0
    %3140 = vmatpush1.xpose.msra.mxu0 0.0
    %3141 = vmatprep.subr.mxu0 0.0
    %3142 = vmatpush1.xpose.msra.mxu0 0.0
    %3143 = vmatprep.subr.mxu0 0.0
    %3144 = vmatpush1.xpose.msra.mxu0 0.0
    %3145 = vmatprep.subr.mxu0 0.0
    %3146 = vmatpush1.xpose.msra.mxu0 0.0
    %3147 = vmatprep.subr.mxu0 0.0
    %3148 = vmatpush1.xpose.msra.mxu0 0.0
    %3149 = vmatprep.subr.mxu0 0.0
    %3150 = vmatpush1.xpose.msra.mxu0 0.0
    %3151 = vmatprep.subr.mxu0 0.0
    %3152 = vmatpush1.xpose.msra.mxu0 0.0
    %3153 = vmatprep.subr.mxu0 0.0
    %3154 = vmatpush1.xpose.msra.mxu0 0.0
    %3155 = vmatprep.subr.mxu0 0.0
    %3156 = vmatpush1.xpose.msra.mxu0 0.0
    %3157 = vmatprep.subr.mxu0 0.0
    %3158 = vmatpush1.xpose.msra.mxu0 0.0
    %3159 = vmatprep.subr.mxu0 0.0
    %3160 = vmatpush1.xpose.msra.mxu0 0.0
    %3161 = vmatprep.subr.mxu0 0.0
    %3162 = vmatpush1.xpose.msra.mxu0 0.0
    %3163 = vmatprep.subr.mxu0 0.0
    %3164 = vmatpush1.xpose.msra.mxu0 0.0
    %3165 = vmatprep.subr.mxu0 0.0
    %3166 = vmatpush1.xpose.msra.mxu0 0.0
    %3167 = vmatprep.subr.mxu0 0.0
    %3168 = vmatpush1.xpose.msra.mxu0 0.0
    %3169 = vmatprep.subr.mxu0 0.0
    %3170 = vmatpush1.xpose.msra.mxu0 0.0
    %3171 = vmatprep.subr.mxu0 0.0
    %3172 = vmatpush1.xpose.msra.mxu0 0.0
    %3173 = vmatprep.subr.mxu0 0.0
    %3174 = vmatpush1.xpose.msra.mxu0 0.0
    %3175 = vmatprep.subr.mxu0 0.0
    %3176 = vmatpush1.xpose.msra.mxu0 0.0
    %3177 = vmatprep.subr.mxu0 0.0
    %3178 = vmatpush1.xpose.msra.mxu0 0.0
    %3179 = vmatprep.subr.mxu0 0.0
    %3180 = vmatpush1.xpose.msra.mxu0 0.0
    %3181 = vmatprep.subr.mxu0 0.0
    %3182 = vmatpush1.xpose.msra.mxu0 0.0
    %3183 = vmatprep.mubr.f32.mxu0 0.0
    %3184 = vmatmul.mubr.f32.gmra.mrb[0].mxu0 %v3115
    %v3185 = vpop.f32.mrb[0].mxu0
    %v3186 = vadd.f32 0.0, %v3185
    %v3187 = vpop.f32.mrb[0].mxu0
    %3188 = vdwg.mxu0
    %v3189 = vmul.f32 %v3108, 0.35355338
    %v3190 = vmul.f32 %v3186, 0.35355338
    %v3191 = vadd.f32 %v3189, %v373
    %v3192 = vadd.f32 %v3190, %v373
    %v3193 = vsel %vm513, %v3191, -inf
    %3194 = vmax.xlane.f32.xlu0 %v3193
    %v3195 = vpop.xlane.xlu0 %3194
    %v3196 = vsel %vm513, %v3192, -inf
    %3197 = vmax.xlane.f32.xlu0 %v3196
    %v3198 = vpop.xlane.xlu0 %3197
    %v3199 = vsub.f32 %v3191, %v3195
    %v3200 = vsub.f32 %v3192, %v3198
    %v3201 = vmul.f32 %v3199, 1.442695
    %v3202 = vpow.pop %v3201
    %v3203 = vmul.f32 %v3200, 1.442695
    %v3204 = vpow.pop %v3203
    %v3205 = vsel %vm513, %v3202, 0.0
    %3206 = vadd.xlane.f32.xlu0 %v3205
    %v3207 = vpop.xlane.xlu0 %3206
    %v3208 = vsel %vm513, %v3204, 0.0
    %3209 = vadd.xlane.f32.xlu0 %v3208
    %v3210 = vpop.xlane.xlu0 %3209
    %v3211 = vrcp.pop %v3207
    %v3212 = vmul.f32 %v3202, %v3211
    %v3213 = vrcp.pop %v3210
    %v3214 = vmul.f32 %v3204, %v3213
    %3215 = vrot.lane.b32.xlu0 %v2347, 48
    %v3216 = vpop.permute.xlu0 %3215
    %v3219 = vsel %vm513, %v3212, 0
    %3221 = vmatprep.subr.mxu0 0.0
    %3222 = vmatpush1.msra.mxu0 %v3216
    %3223 = vmatprep.subr.mxu0 0.0
    %3224 = vmatpush1.msra.mxu0 0.0
    %3225 = vmatprep.subr.mxu0 0.0
    %3226 = vmatpush1.msra.mxu0 0.0
    %3227 = vmatprep.subr.mxu0 0.0
    %3228 = vmatpush1.msra.mxu0 0.0
    %3229 = vmatprep.subr.mxu0 0.0
    %3230 = vmatpush1.msra.mxu0 0.0
    %3231 = vmatprep.subr.mxu0 0.0
    %3232 = vmatpush1.msra.mxu0 0.0
    %3233 = vmatprep.subr.mxu0 0.0
    %3234 = vmatpush1.msra.mxu0 0.0
    %3235 = vmatprep.subr.mxu0 0.0
    %3236 = vmatpush1.msra.mxu0 0.0
    %3237 = vmatprep.subr.mxu0 0.0
    %3238 = vmatpush1.msra.mxu0 0.0
    %3239 = vmatprep.subr.mxu0 0.0
    %3240 = vmatpush1.msra.mxu0 0.0
    %3241 = vmatprep.subr.mxu0 0.0
    %3242 = vmatpush1.msra.mxu0 0.0
    %3243 = vmatprep.subr.mxu0 0.0
    %3244 = vmatpush1.msra.mxu0 0.0
    %3245 = vmatprep.subr.mxu0 0.0
    %3246 = vmatpush1.msra.mxu0 0.0
    %3247 = vmatprep.subr.mxu0 0.0
    %3248 = vmatpush1.msra.mxu0 0.0
    %3249 = vmatprep.subr.mxu0 0.0
    %3250 = vmatpush1.msra.mxu0 0.0
    %3251 = vmatprep.subr.mxu0 0.0
    %3252 = vmatpush1.msra.mxu0 0.0
    %3253 = vmatprep.subr.mxu0 0.0
    %3254 = vmatpush1.msra.mxu0 0.0
    %3255 = vmatprep.subr.mxu0 0.0
    %3256 = vmatpush1.msra.mxu0 0.0
    %3257 = vmatprep.subr.mxu0 0.0
    %3258 = vmatpush1.msra.mxu0 0.0
    %3259 = vmatprep.subr.mxu0 0.0
    %3260 = vmatpush1.msra.mxu0 0.0
    %3261 = vmatprep.subr.mxu0 0.0
    %3262 = vmatpush1.msra.mxu0 0.0
    %3263 = vmatprep.subr.mxu0 0.0
    %3264 = vmatpush1.msra.mxu0 0.0
    %3265 = vmatprep.subr.mxu0 0.0
    %3266 = vmatpush1.msra.mxu0 0.0
    %3267 = vmatprep.subr.mxu0 0.0
    %3268 = vmatpush1.msra.mxu0 0.0
    %3269 = vmatprep.subr.mxu0 0.0
    %3270 = vmatpush1.msra.mxu0 0.0
    %3271 = vmatprep.subr.mxu0 0.0
    %3272 = vmatpush1.msra.mxu0 0.0
    %3273 = vmatprep.subr.mxu0 0.0
    %3274 = vmatpush1.msra.mxu0 0.0
    %3275 = vmatprep.subr.mxu0 0.0
    %3276 = vmatpush1.msra.mxu0 0.0
    %3277 = vmatprep.subr.mxu0 0.0
    %3278 = vmatpush1.msra.mxu0 0.0
    %3279 = vmatprep.subr.mxu0 0.0
    %3280 = vmatpush1.msra.mxu0 0.0
    %3281 = vmatprep.subr.mxu0 0.0
    %3282 = vmatpush1.msra.mxu0 0.0
    %3283 = vmatprep.subr.mxu0 0.0
    %3284 = vmatpush1.msra.mxu0 0.0
    %3285 = vmatprep.mubr.f32.mxu0 0.0
    %3286 = vmatmul.mubr.f32.gmra.mrb[0].mxu0 %v3219
    %v3287 = vpop.f32.mrb[0].mxu0
    %v3288 = vadd.f32 0.0, %v3287
    %v3289 = vpop.f32.mrb[0].mxu0
    %3290 = vdwg.mxu0
    %3291 = vrot.lane.b32.xlu0 %v2352, 48
    %v3292 = vpop.permute.xlu0 %3291
    %v3295 = vsel %vm513, %v3214, 0
    %3297 = vmatprep.subr.mxu0 0.0
    %3298 = vmatpush1.msra.mxu0 %v3292
    %3299 = vmatprep.subr.mxu0 0.0
    %3300 = vmatpush1.msra.mxu0 0.0
    %3301 = vmatprep.subr.mxu0 0.0
    %3302 = vmatpush1.msra.mxu0 0.0
    %3303 = vmatprep.subr.mxu0 0.0
    %3304 = vmatpush1.msra.mxu0 0.0
    %3305 = vmatprep.subr.mxu0 0.0
    %3306 = vmatpush1.msra.mxu0 0.0
    %3307 = vmatprep.subr.mxu0 0.0
    %3308 = vmatpush1.msra.mxu0 0.0
    %3309 = vmatprep.subr.mxu0 0.0
    %3310 = vmatpush1.msra.mxu0 0.0
    %3311 = vmatprep.subr.mxu0 0.0
    %3312 = vmatpush1.msra.mxu0 0.0
    %3313 = vmatprep.subr.mxu0 0.0
    %3314 = vmatpush1.msra.mxu0 0.0
    %3315 = vmatprep.subr.mxu0 0.0
    %3316 = vmatpush1.msra.mxu0 0.0
    %3317 = vmatprep.subr.mxu0 0.0
    %3318 = vmatpush1.msra.mxu0 0.0
    %3319 = vmatprep.subr.mxu0 0.0
    %3320 = vmatpush1.msra.mxu0 0.0
    %3321 = vmatprep.subr.mxu0 0.0
    %3322 = vmatpush1.msra.mxu0 0.0
    %3323 = vmatprep.subr.mxu0 0.0
    %3324 = vmatpush1.msra.mxu0 0.0
    %3325 = vmatprep.subr.mxu0 0.0
    %3326 = vmatpush1.msra.mxu0 0.0
    %3327 = vmatprep.subr.mxu0 0.0
    %3328 = vmatpush1.msra.mxu0 0.0
    %3329 = vmatprep.subr.mxu0 0.0
    %3330 = vmatpush1.msra.mxu0 0.0
    %3331 = vmatprep.subr.mxu0 0.0
    %3332 = vmatpush1.msra.mxu0 0.0
    %3333 = vmatprep.subr.mxu0 0.0
    %3334 = vmatpush1.msra.mxu0 0.0
    %3335 = vmatprep.subr.mxu0 0.0
    %3336 = vmatpush1.msra.mxu0 0.0
    %3337 = vmatprep.subr.mxu0 0.0
    %3338 = vmatpush1.msra.mxu0 0.0
    %3339 = vmatprep.subr.mxu0 0.0
    %3340 = vmatpush1.msra.mxu0 0.0
    %3341 = vmatprep.subr.mxu0 0.0
    %3342 = vmatpush1.msra.mxu0 0.0
    %3343 = vmatprep.subr.mxu0 0.0
    %3344 = vmatpush1.msra.mxu0 0.0
    %3345 = vmatprep.subr.mxu0 0.0
    %3346 = vmatpush1.msra.mxu0 0.0
    %3347 = vmatprep.subr.mxu0 0.0
    %3348 = vmatpush1.msra.mxu0 0.0
    %3349 = vmatprep.subr.mxu0 0.0
    %3350 = vmatpush1.msra.mxu0 0.0
    %3351 = vmatprep.subr.mxu0 0.0
    %3352 = vmatpush1.msra.mxu0 0.0
    %3353 = vmatprep.subr.mxu0 0.0
    %3354 = vmatpush1.msra.mxu0 0.0
    %3355 = vmatprep.subr.mxu0 0.0
    %3356 = vmatpush1.msra.mxu0 0.0
    %3357 = vmatprep.subr.mxu0 0.0
    %3358 = vmatpush1.msra.mxu0 0.0
    %3359 = vmatprep.subr.mxu0 0.0
    %3360 = vmatpush1.msra.mxu0 0.0
    %3361 = vmatprep.mubr.f32.mxu0 0.0
    %3362 = vmatmul.mubr.f32.gmra.mrb[0].mxu0 %v3295
    %v3363 = vpop.f32.mrb[0].mxu0
    %v3364 = vadd.f32 0.0, %v3363
    %v3365 = vpop.f32.mrb[0].mxu0
    %3366 = vdwg.mxu0
    %3369 = vrot.lane.b32.xlu0 %v3288, 16
    %v3370 = vpop.permute.xlu0 %3369
    %3371 = vrot.lane.b32.xlu0 %v3364, 16
    %v3372 = vpop.permute.xlu0 %3371
    %3375 = vst.msk [vmem:[#allocation2] sm:$0xff] %vm1532, %v3370
    %3376 = vst.msk [vmem:[#allocation2 + $0x8] sm:$0xff] %vm1532, %v3372
    %3377 = vrot.lane.b32.xlu0 %v2347, 104
    %v3378 = vpop.permute.xlu0 %3377
    %3379 = vrot.lane.b32.xlu0 %v2347, 72
    %v3380 = vpop.permute.xlu0 %3379
    %v3381 = vsel %vm513, %v3378, 0
    %v3383 = vsel %vm513, %v3380, 0
    %3385 = vmatprep.subr.mxu0 0.0
    %3386 = vmatpush1.xpose.msra.mxu0 %v3383
    %3387 = vmatprep.subr.mxu0 0.0
    %3388 = vmatpush1.xpose.msra.mxu0 0.0
    %3389 = vmatprep.subr.mxu0 0.0
    %3390 = vmatpush1.xpose.msra.mxu0 0.0
    %3391 = vmatprep.subr.mxu0 0.0
    %3392 = vmatpush1.xpose.msra.mxu0 0.0
    %3393 = vmatprep.subr.mxu0 0.0
    %3394 = vmatpush1.xpose.msra.mxu0 0.0
    %3395 = vmatprep.subr.mxu0 0.0
    %3396 = vmatpush1.xpose.msra.mxu0 0.0
    %3397 = vmatprep.subr.mxu0 0.0
    %3398 = vmatpush1.xpose.msra.mxu0 0.0
    %3399 = vmatprep.subr.mxu0 0.0
    %3400 = vmatpush1.xpose.msra.mxu0 0.0
    %3401 = vmatprep.subr.mxu0 0.0
    %3402 = vmatpush1.xpose.msra.mxu0 0.0
    %3403 = vmatprep.subr.mxu0 0.0
    %3404 = vmatpush1.xpose.msra.mxu0 0.0
    %3405 = vmatprep.subr.mxu0 0.0
    %3406 = vmatpush1.xpose.msra.mxu0 0.0
    %3407 = vmatprep.subr.mxu0 0.0
    %3408 = vmatpush1.xpose.msra.mxu0 0.0
    %3409 = vmatprep.subr.mxu0 0.0
    %3410 = vmatpush1.xpose.msra.mxu0 0.0
    %3411 = vmatprep.subr.mxu0 0.0
    %3412 = vmatpush1.xpose.msra.mxu0 0.0
    %3413 = vmatprep.subr.mxu0 0.0
    %3414 = vmatpush1.xpose.msra.mxu0 0.0
    %3415 = vmatprep.subr.mxu0 0.0
    %3416 = vmatpush1.xpose.msra.mxu0 0.0
    %3417 = vmatprep.subr.mxu0 0.0
    %3418 = vmatpush1.xpose.msra.mxu0 0.0
    %3419 = vmatprep.subr.mxu0 0.0
    %3420 = vmatpush1.xpose.msra.mxu0 0.0
    %3421 = vmatprep.subr.mxu0 0.0
    %3422 = vmatpush1.xpose.msra.mxu0 0.0
    %3423 = vmatprep.subr.mxu0 0.0
    %3424 = vmatpush1.xpose.msra.mxu0 0.0
    %3425 = vmatprep.subr.mxu0 0.0
    %3426 = vmatpush1.xpose.msra.mxu0 0.0
    %3427 = vmatprep.subr.mxu0 0.0
    %3428 = vmatpush1.xpose.msra.mxu0 0.0
    %3429 = vmatprep.subr.mxu0 0.0
    %3430 = vmatpush1.xpose.msra.mxu0 0.0
    %3431 = vmatprep.subr.mxu0 0.0
    %3432 = vmatpush1.xpose.msra.mxu0 0.0
    %3433 = vmatprep.subr.mxu0 0.0
    %3434 = vmatpush1.xpose.msra.mxu0 0.0
    %3435 = vmatprep.subr.mxu0 0.0
    %3436 = vmatpush1.xpose.msra.mxu0 0.0
    %3437 = vmatprep.subr.mxu0 0.0
    %3438 = vmatpush1.xpose.msra.mxu0 0.0
    %3439 = vmatprep.subr.mxu0 0.0
    %3440 = vmatpush1.xpose.msra.mxu0 0.0
    %3441 = vmatprep.subr.mxu0 0.0
    %3442 = vmatpush1.xpose.msra.mxu0 0.0
    %3443 = vmatprep.subr.mxu0 0.0
    %3444 = vmatpush1.xpose.msra.mxu0 0.0
    %3445 = vmatprep.subr.mxu0 0.0
    %3446 = vmatpush1.xpose.msra.mxu0 0.0
    %3447 = vmatprep.subr.mxu0 0.0
    %3448 = vmatpush1.xpose.msra.mxu0 0.0
    %3449 = vmatprep.mubr.f32.mxu0 0.0
    %3450 = vmatmul.mubr.f32.gmra.mrb[0].mxu0 %v3381
    %v3451 = vpop.f32.mrb[0].mxu0
    %v3452 = vadd.f32 0.0, %v3451
    %v3453 = vpop.f32.mrb[0].mxu0
    %3454 = vdwg.mxu0
    %3455 = vrot.lane.b32.xlu0 %v2352, 104
    %v3456 = vpop.permute.xlu0 %3455
    %3457 = vrot.lane.b32.xlu0 %v2352, 72
    %v3458 = vpop.permute.xlu0 %3457
    %v3459 = vsel %vm513, %v3456, 0
    %v3461 = vsel %vm513, %v3458, 0
    %3463 = vmatprep.subr.mxu0 0.0
    %3464 = vmatpush1.xpose.msra.mxu0 %v3461
    %3465 = vmatprep.subr.mxu0 0.0
    %3466 = vmatpush1.xpose.msra.mxu0 0.0
    %3467 = vmatprep.subr.mxu0 0.0
    %3468 = vmatpush1.xpose.msra.mxu0 0.0
    %3469 = vmatprep.subr.mxu0 0.0
    %3470 = vmatpush1.xpose.msra.mxu0 0.0
    %3471 = vmatprep.subr.mxu0 0.0
    %3472 = vmatpush1.xpose.msra.mxu0 0.0
    %3473 = vmatprep.subr.mxu0 0.0
    %3474 = vmatpush1.xpose.msra.mxu0 0.0
    %3475 = vmatprep.subr.mxu0 0.0
    %3476 = vmatpush1.xpose.msra.mxu0 0.0
    %3477 = vmatprep.subr.mxu0 0.0
    %3478 = vmatpush1.xpose.msra.mxu0 0.0
    %3479 = vmatprep.subr.mxu0 0.0
    %3480 = vmatpush1.xpose.msra.mxu0 0.0
    %3481 = vmatprep.subr.mxu0 0.0
    %3482 = vmatpush1.xpose.msra.mxu0 0.0
    %3483 = vmatprep.subr.mxu0 0.0
    %3484 = vmatpush1.xpose.msra.mxu0 0.0
    %3485 = vmatprep.subr.mxu0 0.0
    %3486 = vmatpush1.xpose.msra.mxu0 0.0
    %3487 = vmatprep.subr.mxu0 0.0
    %3488 = vmatpush1.xpose.msra.mxu0 0.0
    %3489 = vmatprep.subr.mxu0 0.0
    %3490 = vmatpush1.xpose.msra.mxu0 0.0
    %3491 = vmatprep.subr.mxu0 0.0
    %3492 = vmatpush1.xpose.msra.mxu0 0.0
    %3493 = vmatprep.subr.mxu0 0.0
    %3494 = vmatpush1.xpose.msra.mxu0 0.0
    %3495 = vmatprep.subr.mxu0 0.0
    %3496 = vmatpush1.xpose.msra.mxu0 0.0
    %3497 = vmatprep.subr.mxu0 0.0
    %3498 = vmatpush1.xpose.msra.mxu0 0.0
    %3499 = vmatprep.subr.mxu0 0.0
    %3500 = vmatpush1.xpose.msra.mxu0 0.0
    %3501 = vmatprep.subr.mxu0 0.0
    %3502 = vmatpush1.xpose.msra.mxu0 0.0
    %3503 = vmatprep.subr.mxu0 0.0
    %3504 = vmatpush1.xpose.msra.mxu0 0.0
    %3505 = vmatprep.subr.mxu0 0.0
    %3506 = vmatpush1.xpose.msra.mxu0 0.0
    %3507 = vmatprep.subr.mxu0 0.0
    %3508 = vmatpush1.xpose.msra.mxu0 0.0
    %3509 = vmatprep.subr.mxu0 0.0
    %3510 = vmatpush1.xpose.msra.mxu0 0.0
    %3511 = vmatprep.subr.mxu0 0.0
    %3512 = vmatpush1.xpose.msra.mxu0 0.0
    %3513 = vmatprep.subr.mxu0 0.0
    %3514 = vmatpush1.xpose.msra.mxu0 0.0
    %3515 = vmatprep.subr.mxu0 0.0
    %3516 = vmatpush1.xpose.msra.mxu0 0.0
    %3517 = vmatprep.subr.mxu0 0.0
    %3518 = vmatpush1.xpose.msra.mxu0 0.0
    %3519 = vmatprep.subr.mxu0 0.0
    %3520 = vmatpush1.xpose.msra.mxu0 0.0
    %3521 = vmatprep.subr.mxu0 0.0
    %3522 = vmatpush1.xpose.msra.mxu0 0.0
    %3523 = vmatprep.subr.mxu0 0.0
    %3524 = vmatpush1.xpose.msra.mxu0 0.0
    %3525 = vmatprep.subr.mxu0 0.0
    %3526 = vmatpush1.xpose.msra.mxu0 0.0
    %3527 = vmatprep.mubr.f32.mxu0 0.0
    %3528 = vmatmul.mubr.f32.gmra.mrb[0].mxu0 %v3459
    %v3529 = vpop.f32.mrb[0].mxu0
    %v3530 = vadd.f32 0.0, %v3529
    %v3531 = vpop.f32.mrb[0].mxu0
    %3532 = vdwg.mxu0
    %v3533 = vmul.f32 %v3452, 0.35355338
    %v3534 = vmul.f32 %v3530, 0.35355338
    %v3535 = vadd.f32 %v3533, %v373
    %v3536 = vadd.f32 %v3534, %v373
    %v3537 = vsel %vm513, %v3535, -inf
    %3538 = vmax.xlane.f32.xlu0 %v3537
    %v3539 = vpop.xlane.xlu0 %3538
    %v3540 = vsel %vm513, %v3536, -inf
    %3541 = vmax.xlane.f32.xlu0 %v3540
    %v3542 = vpop.xlane.xlu0 %3541
    %v3543 = vsub.f32 %v3535, %v3539
    %v3544 = vsub.f32 %v3536, %v3542
    %v3545 = vmul.f32 %v3543, 1.442695
    %v3546 = vpow.pop %v3545
    %v3547 = vmul.f32 %v3544, 1.442695
    %v3548 = vpow.pop %v3547
    %v3549 = vsel %vm513, %v3546, 0.0
    %3550 = vadd.xlane.f32.xlu0 %v3549
    %v3551 = vpop.xlane.xlu0 %3550
    %v3552 = vsel %vm513, %v3548, 0.0
    %3553 = vadd.xlane.f32.xlu0 %v3552
    %v3554 = vpop.xlane.xlu0 %3553
    %v3555 = vrcp.pop %v3551
    %v3556 = vmul.f32 %v3546, %v3555
    %v3557 = vrcp.pop %v3554
    %v3558 = vmul.f32 %v3548, %v3557
    %3559 = vrot.lane.b32.xlu0 %v2347, 40
    %v3560 = vpop.permute.xlu0 %3559
    %v3563 = vsel %vm513, %v3556, 0
    %3565 = vmatprep.subr.mxu0 0.0
    %3566 = vmatpush1.msra.mxu0 %v3560
    %3567 = vmatprep.subr.mxu0 0.0
    %3568 = vmatpush1.msra.mxu0 0.0
    %3569 = vmatprep.subr.mxu0 0.0
    %3570 = vmatpush1.msra.mxu0 0.0
    %3571 = vmatprep.subr.mxu0 0.0
    %3572 = vmatpush1.msra.mxu0 0.0
    %3573 = vmatprep.subr.mxu0 0.0
    %3574 = vmatpush1.msra.mxu0 0.0
    %3575 = vmatprep.subr.mxu0 0.0
    %3576 = vmatpush1.msra.mxu0 0.0
    %3577 = vmatprep.subr.mxu0 0.0
    %3578 = vmatpush1.msra.mxu0 0.0
    %3579 = vmatprep.subr.mxu0 0.0
    %3580 = vmatpush1.msra.mxu0 0.0
    %3581 = vmatprep.subr.mxu0 0.0
    %3582 = vmatpush1.msra.mxu0 0.0
    %3583 = vmatprep.subr.mxu0 0.0
    %3584 = vmatpush1.msra.mxu0 0.0
    %3585 = vmatprep.subr.mxu0 0.0
    %3586 = vmatpush1.msra.mxu0 0.0
    %3587 = vmatprep.subr.mxu0 0.0
    %3588 = vmatpush1.msra.mxu0 0.0
    %3589 = vmatprep.subr.mxu0 0.0
    %3590 = vmatpush1.msra.mxu0 0.0
    %3591 = vmatprep.subr.mxu0 0.0
    %3592 = vmatpush1.msra.mxu0 0.0
    %3593 = vmatprep.subr.mxu0 0.0
    %3594 = vmatpush1.msra.mxu0 0.0
    %3595 = vmatprep.subr.mxu0 0.0
    %3596 = vmatpush1.msra.mxu0 0.0
    %3597 = vmatprep.subr.mxu0 0.0
    %3598 = vmatpush1.msra.mxu0 0.0
    %3599 = vmatprep.subr.mxu0 0.0
    %3600 = vmatpush1.msra.mxu0 0.0
    %3601 = vmatprep.subr.mxu0 0.0
    %3602 = vmatpush1.msra.mxu0 0.0
    %3603 = vmatprep.subr.mxu0 0.0
    %3604 = vmatpush1.msra.mxu0 0.0
    %3605 = vmatprep.subr.mxu0 0.0
    %3606 = vmatpush1.msra.mxu0 0.0
    %3607 = vmatprep.subr.mxu0 0.0
    %3608 = vmatpush1.msra.mxu0 0.0
    %3609 = vmatprep.subr.mxu0 0.0
    %3610 = vmatpush1.msra.mxu0 0.0
    %3611 = vmatprep.subr.mxu0 0.0
    %3612 = vmatpush1.msra.mxu0 0.0
    %3613 = vmatprep.subr.mxu0 0.0
    %3614 = vmatpush1.msra.mxu0 0.0
    %3615 = vmatprep.subr.mxu0 0.0
    %3616 = vmatpush1.msra.mxu0 0.0
    %3617 = vmatprep.subr.mxu0 0.0
    %3618 = vmatpush1.msra.mxu0 0.0
    %3619 = vmatprep.subr.mxu0 0.0
    %3620 = vmatpush1.msra.mxu0 0.0
    %3621 = vmatprep.subr.mxu0 0.0
    %3622 = vmatpush1.msra.mxu0 0.0
    %3623 = vmatprep.subr.mxu0 0.0
    %3624 = vmatpush1.msra.mxu0 0.0
    %3625 = vmatprep.subr.mxu0 0.0
    %3626 = vmatpush1.msra.mxu0 0.0
    %3627 = vmatprep.subr.mxu0 0.0
    %3628 = vmatpush1.msra.mxu0 0.0
    %3629 = vmatprep.mubr.f32.mxu0 0.0
    %3630 = vmatmul.mubr.f32.gmra.mrb[0].mxu0 %v3563
    %v3631 = vpop.f32.mrb[0].mxu0
    %v3632 = vadd.f32 0.0, %v3631
    %v3633 = vpop.f32.mrb[0].mxu0
    %3634 = vdwg.mxu0
    %3635 = vrot.lane.b32.xlu0 %v2352, 40
    %v3636 = vpop.permute.xlu0 %3635
    %v3639 = vsel %vm513, %v3558, 0
    %3641 = vmatprep.subr.mxu0 0.0
    %3642 = vmatpush1.msra.mxu0 %v3636
    %3643 = vmatprep.subr.mxu0 0.0
    %3644 = vmatpush1.msra.mxu0 0.0
    %3645 = vmatprep.subr.mxu0 0.0
    %3646 = vmatpush1.msra.mxu0 0.0
    %3647 = vmatprep.subr.mxu0 0.0
    %3648 = vmatpush1.msra.mxu0 0.0
    %3649 = vmatprep.subr.mxu0 0.0
    %3650 = vmatpush1.msra.mxu0 0.0
    %3651 = vmatprep.subr.mxu0 0.0
    %3652 = vmatpush1.msra.mxu0 0.0
    %3653 = vmatprep.subr.mxu0 0.0
    %3654 = vmatpush1.msra.mxu0 0.0
    %3655 = vmatprep.subr.mxu0 0.0
    %3656 = vmatpush1.msra.mxu0 0.0
    %3657 = vmatprep.subr.mxu0 0.0
    %3658 = vmatpush1.msra.mxu0 0.0
    %3659 = vmatprep.subr.mxu0 0.0
    %3660 = vmatpush1.msra.mxu0 0.0
    %3661 = vmatprep.subr.mxu0 0.0
    %3662 = vmatpush1.msra.mxu0 0.0
    %3663 = vmatprep.subr.mxu0 0.0
    %3664 = vmatpush1.msra.mxu0 0.0
    %3665 = vmatprep.subr.mxu0 0.0
    %3666 = vmatpush1.msra.mxu0 0.0
    %3667 = vmatprep.subr.mxu0 0.0
    %3668 = vmatpush1.msra.mxu0 0.0
    %3669 = vmatprep.subr.mxu0 0.0
    %3670 = vmatpush1.msra.mxu0 0.0
    %3671 = vmatprep.subr.mxu0 0.0
    %3672 = vmatpush1.msra.mxu0 0.0
    %3673 = vmatprep.subr.mxu0 0.0
    %3674 = vmatpush1.msra.mxu0 0.0
    %3675 = vmatprep.subr.mxu0 0.0
    %3676 = vmatpush1.msra.mxu0 0.0
    %3677 = vmatprep.subr.mxu0 0.0
    %3678 = vmatpush1.msra.mxu0 0.0
    %3679 = vmatprep.subr.mxu0 0.0
    %3680 = vmatpush1.msra.mxu0 0.0
    %3681 = vmatprep.subr.mxu0 0.0
    %3682 = vmatpush1.msra.mxu0 0.0
    %3683 = vmatprep.subr.mxu0 0.0
    %3684 = vmatpush1.msra.mxu0 0.0
    %3685 = vmatprep.subr.mxu0 0.0
    %3686 = vmatpush1.msra.mxu0 0.0
    %3687 = vmatprep.subr.mxu0 0.0
    %3688 = vmatpush1.msra.mxu0 0.0
    %3689 = vmatprep.subr.mxu0 0.0
    %3690 = vmatpush1.msra.mxu0 0.0
    %3691 = vmatprep.subr.mxu0 0.0
    %3692 = vmatpush1.msra.mxu0 0.0
    %3693 = vmatprep.subr.mxu0 0.0
    %3694 = vmatpush1.msra.mxu0 0.0
    %3695 = vmatprep.subr.mxu0 0.0
    %3696 = vmatpush1.msra.mxu0 0.0
    %3697 = vmatprep.subr.mxu0 0.0
    %3698 = vmatpush1.msra.mxu0 0.0
    %3699 = vmatprep.subr.mxu0 0.0
    %3700 = vmatpush1.msra.mxu0 0.0
    %3701 = vmatprep.subr.mxu0 0.0
    %3702 = vmatpush1.msra.mxu0 0.0
    %3703 = vmatprep.subr.mxu0 0.0
    %3704 = vmatpush1.msra.mxu0 0.0
    %3705 = vmatprep.mubr.f32.mxu0 0.0
    %3706 = vmatmul.mubr.f32.gmra.mrb[0].mxu0 %v3639
    %v3707 = vpop.f32.mrb[0].mxu0
    %v3708 = vadd.f32 0.0, %v3707
    %v3709 = vpop.f32.mrb[0].mxu0
    %3710 = vdwg.mxu0
    %3713 = vrot.lane.b32.xlu0 %v3632, 24
    %v3714 = vpop.permute.xlu0 %3713
    %3715 = vrot.lane.b32.xlu0 %v3708, 24
    %v3716 = vpop.permute.xlu0 %3715
    %3719 = vst.msk [vmem:[#allocation2] sm:$0xff] %vm1877, %v3714
    %3720 = vst.msk [vmem:[#allocation2 + $0x8] sm:$0xff] %vm1877, %v3716
    %v3721 = vld [vmem:[#allocation2] sm:$0xff]
    %v3722 = vld [vmem:[#allocation2 + $0x8] sm:$0xff]
    %s3723 = scalar_lea.vmem %s7, 32
    %v3724 = vld [vmem:[%s3723] sm:$0xff]
    %v3725 = vld [vmem:[%s3723 + $0x8] sm:$0xff]
    %v3726 = vld [vmem:[%s3723 + $0x10] sm:$0xff]
    %v3727 = vld [vmem:[%s3723 + $0x18] sm:$0xff]
    %v3729 = vsel %vm355, %v3721, 0
    %v3732 = vsel %vm355, %v3722, 0
    %3734 = vmatprep.subr.mxu0 0.0
    %3735 = vmatpush1.msra.mxu0 %v3724
    %3736 = vmatprep.subr.mxu0 0.0
    %3737 = vmatpush1.msra.mxu0 %v3725
    %3738 = vmatprep.subr.mxu0 0.0
    %3739 = vmatpush1.msra.mxu0 %v3726
    %3740 = vmatprep.subr.mxu0 0.0
    %3741 = vmatpush1.msra.mxu0 %v3727
    %3742 = vmatprep.subr.mxu0 0.0
    %3743 = vmatpush1.msra.mxu0 0.0
    %3744 = vmatprep.subr.mxu0 0.0
    %3745 = vmatpush1.msra.mxu0 0.0
    %3746 = vmatprep.subr.mxu0 0.0
    %3747 = vmatpush1.msra.mxu0 0.0
    %3748 = vmatprep.subr.mxu0 0.0
    %3749 = vmatpush1.msra.mxu0 0.0
    %3750 = vmatprep.subr.mxu0 0.0
    %3751 = vmatpush1.msra.mxu0 0.0
    %3752 = vmatprep.subr.mxu0 0.0
    %3753 = vmatpush1.msra.mxu0 0.0
    %3754 = vmatprep.subr.mxu0 0.0
    %3755 = vmatpush1.msra.mxu0 0.0
    %3756 = vmatprep.subr.mxu0 0.0
    %3757 = vmatpush1.msra.mxu0 0.0
    %3758 = vmatprep.subr.mxu0 0.0
    %3759 = vmatpush1.msra.mxu0 0.0
    %3760 = vmatprep.subr.mxu0 0.0
    %3761 = vmatpush1.msra.mxu0 0.0
    %3762 = vmatprep.subr.mxu0 0.0
    %3763 = vmatpush1.msra.mxu0 0.0
    %3764 = vmatprep.subr.mxu0 0.0
    %3765 = vmatpush1.msra.mxu0 0.0
    %3766 = vmatprep.subr.mxu0 0.0
    %3767 = vmatpush1.msra.mxu0 0.0
    %3768 = vmatprep.subr.mxu0 0.0
    %3769 = vmatpush1.msra.mxu0 0.0
    %3770 = vmatprep.subr.mxu0 0.0
    %3771 = vmatpush1.msra.mxu0 0.0
    %3772 = vmatprep.subr.mxu0 0.0
    %3773 = vmatpush1.msra.mxu0 0.0
    %3774 = vmatprep.subr.mxu0 0.0
    %3775 = vmatpush1.msra.mxu0 0.0
    %3776 = vmatprep.subr.mxu0 0.0
    %3777 = vmatpush1.msra.mxu0 0.0
    %3778 = vmatprep.subr.mxu0 0.0
    %3779 = vmatpush1.msra.mxu0 0.0
    %3780 = vmatprep.subr.mxu0 0.0
    %3781 = vmatpush1.msra.mxu0 0.0
    %3782 = vmatprep.subr.mxu0 0.0
    %3783 = vmatpush1.msra.mxu0 0.0
    %3784 = vmatprep.subr.mxu0 0.0
    %3785 = vmatpush1.msra.mxu0 0.0
    %3786 = vmatprep.subr.mxu0 0.0
    %3787 = vmatpush1.msra.mxu0 0.0
    %3788 = vmatprep.subr.mxu0 0.0
    %3789 = vmatpush1.msra.mxu0 0.0
    %3790 = vmatprep.subr.mxu0 0.0
    %3791 = vmatpush1.msra.mxu0 0.0
    %3792 = vmatprep.subr.mxu0 0.0
    %3793 = vmatpush1.msra.mxu0 0.0
    %3794 = vmatprep.subr.mxu0 0.0
    %3795 = vmatpush1.msra.mxu0 0.0
    %3796 = vmatprep.subr.mxu0 0.0
    %3797 = vmatpush1.msra.mxu0 0.0
    %3798 = vmatprep.mubr.f32.mxu0 0.0
    %3799 = vmatmul.mubr.f32.gmra.mrb[0].mxu0 %v3729
    %v3800 = vpop.f32.mrb[0].mxu0
    %v3801 = vadd.f32 0.0, %v3800
    %v3802 = vpop.f32.mrb[0].mxu0
    %3803 = vmatprep.mubr.f32.mxu0 0.0
    %3804 = vmatmul.mubr.f32.gmra.mrb[0].mxu0 %v3732
    %v3805 = vpop.f32.mrb[0].mxu0
    %v3806 = vadd.f32 0.0, %v3805
    %v3807 = vpop.f32.mrb[0].mxu0
    %3808 = vdwg.mxu0
    %v3809 = vadd.f32 %v2216, %v3801
    %v3810 = vadd.f32 %v2217, %v3806
    %v3811 = vlaneseq
    %v3812 = vshrl.u32 %v3811, 7
    %v3813 = vsub.s32 0, %v3812
    %v3814 = vrot.slane %v2224, %v3813
    %v3815 = vadd.f32 %v3809, %v3814
    %v3816 = vadd.f32 %v3810, %v3814
    %v3817 = vsel %vm355, %v3815, 0.0
    %3818 = vadd.xlane.f32.xlu0 %v3817
    %v3819 = vpop.xlane.xlu0 %3818
    %v3820 = vsel %vm355, %v3816, 0.0
    %3821 = vadd.xlane.f32.xlu0 %v3820
    %v3822 = vpop.xlane.xlu0 %3821
    %v3823 = vmul.f32 %v3819, %v388
    %v3824 = vmul.f32 %v3822, %v388
    %v3825 = vsub.f32 %v3815, %v3823
    %v3826 = vsub.f32 %v3816, %v3824
    %v3827 = vmul.f32 %v3825, %v3825
    %v3828 = vmul.f32 %v3826, %v3826
    %v3829 = vsel %vm355, %v3827, 0.0
    %3830 = vadd.xlane.f32.xlu0 %v3829
    %v3831 = vpop.xlane.xlu0 %3830
    %v3832 = vsel %vm355, %v3828, 0.0
    %3833 = vadd.xlane.f32.xlu0 %v3832
    %v3834 = vpop.xlane.xlu0 %3833
    %v3835 = vmul.f32 %v3831, %v388
    %v3836 = vmul.f32 %v3834, %v388
    %v3837 = vadd.f32 %v3835, 1e-06
    %v3838 = vadd.f32 %v3836, 1e-06
    %v3839 = vrsqrt.pop %v3837
    %v3840 = vrsqrt.pop %v3838
    %v3841 = vmul.f32 %v3825, %v3839
    %v3842 = vmul.f32 %v3826, %v3840
    %v3843 = vlaneseq
    %v3844 = vshrl.u32 %v3843, 7
    %v3845 = vsub.s32 0, %v3844
    %v3846 = vrot.slane %v2220, %v3845
    %v3847 = vmul.f32 %v3841, %v3846
    %v3848 = vmul.f32 %v3842, %v3846
    %v3849 = vlaneseq
    %v3850 = vshrl.u32 %v3849, 7
    %v3851 = vsub.s32 0, %v3850
    %v3852 = vrot.slane %v2221, %v3851
    %v3853 = vadd.f32 %v3847, %v3852
    %v3854 = vadd.f32 %v3848, %v3852
    %s3855 = scalar_lea.vmem %s8, 32
    %v3856 = vld [vmem:[%s3855] sm:$0xff]
    %v3857 = vld [vmem:[%s3855 + $0x8] sm:$0xff]
    %v3858 = vld [vmem:[%s3855 + $0x10] sm:$0xff]
    %v3859 = vld [vmem:[%s3855 + $0x18] sm:$0xff]
    %v3860 = vlaneseq
    %v3861 = vshrl.u32 %v3860, 7
    %v3862 = vsub.s32 0, %v3861
    %v3863 = vrot.slane %v2225, %v3862
    %v3865 = vsel %vm355, %v3853, 0
    %v3868 = vsel %vm355, %v3854, 0
    %3870 = vmatprep.subr.mxu0 0.0
    %3871 = vmatpush1.msra.mxu0 %v3856
    %3872 = vmatprep.subr.mxu0 0.0
    %3873 = vmatpush1.msra.mxu0 %v3857
    %3874 = vmatprep.subr.mxu0 0.0
    %3875 = vmatpush1.msra.mxu0 %v3858
    %3876 = vmatprep.subr.mxu0 0.0
    %3877 = vmatpush1.msra.mxu0 %v3859
    %3878 = vmatprep.subr.mxu0 0.0
    %3879 = vmatpush1.msra.mxu0 0.0
    %3880 = vmatprep.subr.mxu0 0.0
    %3881 = vmatpush1.msra.mxu0 0.0
    %3882 = vmatprep.subr.mxu0 0.0
    %3883 = vmatpush1.msra.mxu0 0.0
    %3884 = vmatprep.subr.mxu0 0.0
    %3885 = vmatpush1.msra.mxu0 0.0
    %3886 = vmatprep.subr.mxu0 0.0
    %3887 = vmatpush1.msra.mxu0 0.0
    %3888 = vmatprep.subr.mxu0 0.0
    %3889 = vmatpush1.msra.mxu0 0.0
    %3890 = vmatprep.subr.mxu0 0.0
    %3891 = vmatpush1.msra.mxu0 0.0
    %3892 = vmatprep.subr.mxu0 0.0
    %3893 = vmatpush1.msra.mxu0 0.0
    %3894 = vmatprep.subr.mxu0 0.0
    %3895 = vmatpush1.msra.mxu0 0.0
    %3896 = vmatprep.subr.mxu0 0.0
    %3897 = vmatpush1.msra.mxu0 0.0
    %3898 = vmatprep.subr.mxu0 0.0
    %3899 = vmatpush1.msra.mxu0 0.0
    %3900 = vmatprep.subr.mxu0 0.0
    %3901 = vmatpush1.msra.mxu0 0.0
    %3902 = vmatprep.subr.mxu0 0.0
    %3903 = vmatpush1.msra.mxu0 0.0
    %3904 = vmatprep.subr.mxu0 0.0
    %3905 = vmatpush1.msra.mxu0 0.0
    %3906 = vmatprep.subr.mxu0 0.0
    %3907 = vmatpush1.msra.mxu0 0.0
    %3908 = vmatprep.subr.mxu0 0.0
    %3909 = vmatpush1.msra.mxu0 0.0
    %3910 = vmatprep.subr.mxu0 0.0
    %3911 = vmatpush1.msra.mxu0 0.0
    %3912 = vmatprep.subr.mxu0 0.0
    %3913 = vmatpush1.msra.mxu0 0.0
    %3914 = vmatprep.subr.mxu0 0.0
    %3915 = vmatpush1.msra.mxu0 0.0
    %3916 = vmatprep.subr.mxu0 0.0
    %3917 = vmatpush1.msra.mxu0 0.0
    %3918 = vmatprep.subr.mxu0 0.0
    %3919 = vmatpush1.msra.mxu0 0.0
    %3920 = vmatprep.subr.mxu0 0.0
    %3921 = vmatpush1.msra.mxu0 0.0
    %3922 = vmatprep.subr.mxu0 0.0
    %3923 = vmatpush1.msra.mxu0 0.0
    %3924 = vmatprep.subr.mxu0 0.0
    %3925 = vmatpush1.msra.mxu0 0.0
    %3926 = vmatprep.subr.mxu0 0.0
    %3927 = vmatpush1.msra.mxu0 0.0
    %3928 = vmatprep.subr.mxu0 0.0
    %3929 = vmatpush1.msra.mxu0 0.0
    %3930 = vmatprep.subr.mxu0 0.0
    %3931 = vmatpush1.msra.mxu0 0.0
    %3932 = vmatprep.subr.mxu0 0.0
    %3933 = vmatpush1.msra.mxu0 0.0
    %3934 = vmatprep.mubr.f32.mxu0 0.0
    %3935 = vmatmul.mubr.f32.gmra.mrb[0].mxu0 %v3865
    %v3936 = vpop.f32.mrb[0].mxu0
    %v3937 = vadd.f32 %v3863, %v3936
    %v3938 = vpop.f32.mrb[0].mxu0
    %3939 = vmatprep.mubr.f32.mxu0 0.0
    %3940 = vmatmul.mubr.f32.gmra.mrb[0].mxu0 %v3868
    %v3941 = vpop.f32.mrb[0].mxu0
    %v3942 = vadd.f32 %v3863, %v3941
    %v3943 = vpop.f32.mrb[0].mxu0
    %3944 = vdwg.mxu0
    %v3945 = vmul.f32 %v3937, %v3937
    %v3946 = vmul.f32 %v3942, %v3942
    %v3947 = vmul.f32 %v3937, %v3945
    %v3948 = vmul.f32 %v3942, %v3946
    %v3949 = vmul.f32 %v3947, 0.044715
    %v3950 = vmul.f32 %v3948, 0.044715
    %v3951 = vadd.f32 %v3937, %v3949
    %v3952 = vadd.f32 %v3942, %v3950
    %v3953 = vmul.f32 %v3951, 0.7978846
    %v3954 = vmul.f32 %v3952, 0.7978846
    %v3955 = vtanh.pop %v3953
    %v3956 = vtanh.pop %v3954
    %v3957 = vadd.f32 %v3955, 1.0
    %v3958 = vadd.f32 %v3956, 1.0
    %v3959 = vmul.f32 %v3957, 0.5
    %v3960 = vmul.f32 %v3958, 0.5
    %v3961 = vmul.f32 %v3937, %v3959
    %v3962 = vmul.f32 %v3942, %v3960
    %s3963 = scalar_lea.vmem %s9, 64
    %v3964 = vld [vmem:[%s3963] sm:$0xff]
    %v3965 = vld [vmem:[%s3963 + $0x8] sm:$0xff]
    %v3966 = vld [vmem:[%s3963 + $0x10] sm:$0xff]
    %v3967 = vld [vmem:[%s3963 + $0x18] sm:$0xff]
    %v3968 = vld [vmem:[%s3963 + $0x20] sm:$0xff]
    %v3969 = vld [vmem:[%s3963 + $0x28] sm:$0xff]
    %v3970 = vld [vmem:[%s3963 + $0x30] sm:$0xff]
    %v3971 = vld [vmem:[%s3963 + $0x38] sm:$0xff]
    %v3973 = vsel %vm2128, %v3961, 0
    %v3976 = vsel %vm2128, %v3962, 0
    %3978 = vmatprep.subr.mxu0 0.0
    %3979 = vmatpush1.msra.mxu0 %v3964
    %3980 = vmatprep.subr.mxu0 0.0
    %3981 = vmatpush1.msra.mxu0 %v3965
    %3982 = vmatprep.subr.mxu0 0.0
    %3983 = vmatpush1.msra.mxu0 %v3966
    %3984 = vmatprep.subr.mxu0 0.0
    %3985 = vmatpush1.msra.mxu0 %v3967
    %3986 = vmatprep.subr.mxu0 0.0
    %3987 = vmatpush1.msra.mxu0 %v3968
    %3988 = vmatprep.subr.mxu0 0.0
    %3989 = vmatpush1.msra.mxu0 %v3969
    %3990 = vmatprep.subr.mxu0 0.0
    %3991 = vmatpush1.msra.mxu0 %v3970
    %3992 = vmatprep.subr.mxu0 0.0
    %3993 = vmatpush1.msra.mxu0 %v3971
    %3994 = vmatprep.subr.mxu0 0.0
    %3995 = vmatpush1.msra.mxu0 0.0
    %3996 = vmatprep.subr.mxu0 0.0
    %3997 = vmatpush1.msra.mxu0 0.0
    %3998 = vmatprep.subr.mxu0 0.0
    %3999 = vmatpush1.msra.mxu0 0.0
    %4000 = vmatprep.subr.mxu0 0.0
    %4001 = vmatpush1.msra.mxu0 0.0
    %4002 = vmatprep.subr.mxu0 0.0
    %4003 = vmatpush1.msra.mxu0 0.0
    %4004 = vmatprep.subr.mxu0 0.0
    %4005 = vmatpush1.msra.mxu0 0.0
    %4006 = vmatprep.subr.mxu0 0.0
    %4007 = vmatpush1.msra.mxu0 0.0
    %4008 = vmatprep.subr.mxu0 0.0
    %4009 = vmatpush1.msra.mxu0 0.0
    %4010 = vmatprep.subr.mxu0 0.0
    %4011 = vmatpush1.msra.mxu0 0.0
    %4012 = vmatprep.subr.mxu0 0.0
    %4013 = vmatpush1.msra.mxu0 0.0
    %4014 = vmatprep.subr.mxu0 0.0
    %4015 = vmatpush1.msra.mxu0 0.0
    %4016 = vmatprep.subr.mxu0 0.0
    %4017 = vmatpush1.msra.mxu0 0.0
    %4018 = vmatprep.subr.mxu0 0.0
    %4019 = vmatpush1.msra.mxu0 0.0
    %4020 = vmatprep.subr.mxu0 0.0
    %4021 = vmatpush1.msra.mxu0 0.0
    %4022 = vmatprep.subr.mxu0 0.0
    %4023 = vmatpush1.msra.mxu0 0.0
    %4024 = vmatprep.subr.mxu0 0.0
    %4025 = vmatpush1.msra.mxu0 0.0
    %4026 = vmatprep.subr.mxu0 0.0
    %4027 = vmatpush1.msra.mxu0 0.0
    %4028 = vmatprep.subr.mxu0 0.0
    %4029 = vmatpush1.msra.mxu0 0.0
    %4030 = vmatprep.subr.mxu0 0.0
    %4031 = vmatpush1.msra.mxu0 0.0
    %4032 = vmatprep.subr.mxu0 0.0
    %4033 = vmatpush1.msra.mxu0 0.0
    %4034 = vmatprep.subr.mxu0 0.0
    %4035 = vmatpush1.msra.mxu0 0.0
    %4036 = vmatprep.subr.mxu0 0.0
    %4037 = vmatpush1.msra.mxu0 0.0
    %4038 = vmatprep.subr.mxu0 0.0
    %4039 = vmatpush1.msra.mxu0 0.0
    %4040 = vmatprep.subr.mxu0 0.0
    %4041 = vmatpush1.msra.mxu0 0.0
    %4042 = vmatprep.mubr.f32.mxu0 0.0
    %4043 = vmatmul.mubr.f32.gmra.mrb[0].mxu0 %v3973
    %v4044 = vpop.f32.mrb[0].mxu0
    %v4045 = vadd.f32 0.0, %v4044
    %v4046 = vpop.f32.mrb[0].mxu0
    %4047 = vmatprep.mubr.f32.mxu0 0.0
    %4048 = vmatmul.mubr.f32.gmra.mrb[0].mxu0 %v3976
    %v4049 = vpop.f32.mrb[0].mxu0
    %v4050 = vadd.f32 0.0, %v4049
    %v4051 = vpop.f32.mrb[0].mxu0
    %4052 = vdwg.mxu0
    %v4053 = vadd.f32 %v3815, %v4045
    %v4054 = vadd.f32 %v3816, %v4050
    %v4055 = vlaneseq
    %v4056 = vshrl.u32 %v4055, 7
    %v4057 = vsub.s32 0, %v4056
    %v4058 = vrot.slane %v2226, %v4057
    %v4059 = vadd.f32 %v4053, %v4058
    %v4060 = vadd.f32 %v4054, %v4058
    %v4061 = vld [vmem:[%s4 + $0x8] sm:$0x1]
    %v4062 = vld [vmem:[%s4 + $0x9] sm:$0x1]
    %v4063 = vsel %vm355, %v4059, 0.0
    %4064 = vadd.xlane.f32.xlu0 %v4063
    %v4065 = vpop.xlane.xlu0 %4064
    %v4066 = vsel %vm355, %v4060, 0.0
    %4067 = vadd.xlane.f32.xlu0 %v4066
    %v4068 = vpop.xlane.xlu0 %4067
    %v4069 = vmul.f32 %v4065, %v388
    %v4070 = vmul.f32 %v4068, %v388
    %v4071 = vsub.f32 %v4059, %v4069
    %v4072 = vsub.f32 %v4060, %v4070
    %v4073 = vmul.f32 %v4071, %v4071
    %v4074 = vmul.f32 %v4072, %v4072
    %v4075 = vsel %vm355, %v4073, 0.0
    %4076 = vadd.xlane.f32.xlu0 %v4075
    %v4077 = vpop.xlane.xlu0 %4076
    %v4078 = vsel %vm355, %v4074, 0.0
    %4079 = vadd.xlane.f32.xlu0 %v4078
    %v4080 = vpop.xlane.xlu0 %4079
    %v4081 = vmul.f32 %v4077, %v388
    %v4082 = vmul.f32 %v4080, %v388
    %v4083 = vadd.f32 %v4081, 1e-06
    %v4084 = vadd.f32 %v4082, 1e-06
    %v4085 = vrsqrt.pop %v4083
    %v4086 = vrsqrt.pop %v4084
    %v4087 = vmul.f32 %v4071, %v4085
    %v4088 = vmul.f32 %v4072, %v4086
    %v4089 = vlaneseq
    %v4090 = vshrl.u32 %v4089, 7
    %v4091 = vsub.s32 0, %v4090
    %v4092 = vrot.slane %v4061, %v4091
    %v4093 = vmul.f32 %v4087, %v4092
    %v4094 = vmul.f32 %v4088, %v4092
    %v4095 = vlaneseq
    %v4096 = vshrl.u32 %v4095, 7
    %v4097 = vsub.s32 0, %v4096
    %v4098 = vrot.slane %v4062, %v4097
    %v4099 = vadd.f32 %v4093, %v4098
    %v4100 = vadd.f32 %v4094, %v4098
    %4101 = vst.msk [vmem:[#allocation2] sm:$0xff] %vm355, %v4099
    %4102 = vst.msk [vmem:[#allocation2 + $0x8] sm:$0xff] %vm355, %v4100
    %v4103 = vld [vmem:[#allocation2] sm:$0x1]
    %v4104 = vld [vmem:[#allocation2 + $0x8] sm:$0x1]
    %v4106 = vrot.slane %v4104, 7
    %vm4108 = vcmask 1040384
    %v4109 = vsel %vm4108, %v4103, %v4106
    %v4110 = vld [vmem:[%s1] sm:$0x1]
    %v4111 = vld [vmem:[%s1 + $0x1] sm:$0x1]
    %v4112 = vld [vmem:[%s10] sm:$0x3]
    %v4113 = vld [vmem:[%s10 + $0x2] sm:$0x1]
    %v4114 = vlaneseq
    %v4115 = vshrl.u32 %v4114, 7
    %v4116 = vsub.s32 0, %v4115
    %v4117 = vrot.slane %v4113, %v4116
    %v4120 = vcombine.low %v4110, %v4111
    %v4122 = vunpack.c.l.s4 1966171168
    %v4123 = vunpack.c.0.s8 %v4122
    %v4124 = vlaneseq
    %v4125 = vshrl.u32 %v4124, 7
    %v4126 = vsub.s32 %v4123, %v4125
    %v4127 = vrot.slane %v4120, %v4126
    %v4129 = vunpack.c.l.s4 1966171168
    %v4130 = vunpack.c.0.s8 %v4129
    %v4131 = vlaneseq
    %v4132 = vshrl.u32 %v4131, 7
    %v4133 = vsub.s32 %v4130, %v4132
    %v4134 = vrot.slane %v4127, %v4133
    %vm4135 = vcmask 15360
    %v4136 = vsel %vm4135, %v4134, 0
    %vm4138 = vcmask 1041408
    %v4140 = vsel %vm4138, %v4112, 0
    %4142 = vmatprep.subr.mxu0 0.0
    %4143 = vmatpush1.msra.mxu0 %v4140
    %4144 = vmatprep.subr.mxu0 0.0
    %4145 = vmatpush1.msra.mxu0 0.0
    %4146 = vmatprep.subr.mxu0 0.0
    %4147 = vmatpush1.msra.mxu0 0.0
    %4148 = vmatprep.subr.mxu0 0.0
    %4149 = vmatpush1.msra.mxu0 0.0
    %4150 = vmatprep.subr.mxu0 0.0
    %4151 = vmatpush1.msra.mxu0 0.0
    %4152 = vmatprep.subr.mxu0 0.0
    %4153 = vmatpush1.msra.mxu0 0.0
    %4154 = vmatprep.subr.mxu0 0.0
    %4155 = vmatpush1.msra.mxu0 0.0
    %4156 = vmatprep.subr.mxu0 0.0
    %4157 = vmatpush1.msra.mxu0 0.0
    %4158 = vmatprep.subr.mxu0 0.0
    %4159 = vmatpush1.msra.mxu0 0.0
    %4160 = vmatprep.subr.mxu0 0.0
    %4161 = vmatpush1.msra.mxu0 0.0
    %4162 = vmatprep.subr.mxu0 0.0
    %4163 = vmatpush1.msra.mxu0 0.0
    %4164 = vmatprep.subr.mxu0 0.0
    %4165 = vmatpush1.msra.mxu0 0.0
    %4166 = vmatprep.subr.mxu0 0.0
    %4167 = vmatpush1.msra.mxu0 0.0
    %4168 = vmatprep.subr.mxu0 0.0
    %4169 = vmatpush1.msra.mxu0 0.0
    %4170 = vmatprep.subr.mxu0 0.0
    %4171 = vmatpush1.msra.mxu0 0.0
    %4172 = vmatprep.subr.mxu0 0.0
    %4173 = vmatpush1.msra.mxu0 0.0
    %4174 = vmatprep.subr.mxu0 0.0
    %4175 = vmatpush1.msra.mxu0 0.0
    %4176 = vmatprep.subr.mxu0 0.0
    %4177 = vmatpush1.msra.mxu0 0.0
    %4178 = vmatprep.subr.mxu0 0.0
    %4179 = vmatpush1.msra.mxu0 0.0
    %4180 = vmatprep.subr.mxu0 0.0
    %4181 = vmatpush1.msra.mxu0 0.0
    %4182 = vmatprep.subr.mxu0 0.0
    %4183 = vmatpush1.msra.mxu0 0.0
    %4184 = vmatprep.subr.mxu0 0.0
    %4185 = vmatpush1.msra.mxu0 0.0
    %4186 = vmatprep.subr.mxu0 0.0
    %4187 = vmatpush1.msra.mxu0 0.0
    %4188 = vmatprep.subr.mxu0 0.0
    %4189 = vmatpush1.msra.mxu0 0.0
    %4190 = vmatprep.subr.mxu0 0.0
    %4191 = vmatpush1.msra.mxu0 0.0
    %4192 = vmatprep.subr.mxu0 0.0
    %4193 = vmatpush1.msra.mxu0 0.0
    %4194 = vmatprep.subr.mxu0 0.0
    %4195 = vmatpush1.msra.mxu0 0.0
    %4196 = vmatprep.subr.mxu0 0.0
    %4197 = vmatpush1.msra.mxu0 0.0
    %4198 = vmatprep.subr.mxu0 0.0
    %4199 = vmatpush1.msra.mxu0 0.0
    %4200 = vmatprep.subr.mxu0 0.0
    %4201 = vmatpush1.msra.mxu0 0.0
    %4202 = vmatprep.subr.mxu0 0.0
    %4203 = vmatpush1.msra.mxu0 0.0
    %4204 = vmatprep.subr.mxu0 0.0
    %4205 = vmatpush1.msra.mxu0 0.0
    %4206 = vmatprep.mubr.f32.mxu0 0.0
    %4207 = vmatmul.mubr.f32.gmra.mrb[0].mxu0 %v4136
    %v4208 = vpop.f32.mrb[0].mxu0
    %v4209 = vadd.f32 %v4117, %v4208
    %v4210 = vpop.f32.mrb[0].mxu0
    %4211 = vdwg.mxu0
    %v4212 = vmax.f32 %v4209, 0.0
    %v4213 = vld [vmem:[%s10 + $0x3] sm:$0xff]
    %v4214 = vld [vmem:[%s10 + $0xb] sm:$0x1]
    %v4215 = vlaneseq
    %v4216 = vshrl.u32 %v4215, 7
    %v4217 = vsub.s32 0, %v4216
    %v4218 = vrot.slane %v4214, %v4217
    %v4220 = vsel %vm513, %v4212, 0
    %4222 = vmatprep.subr.mxu0 0.0
    %4223 = vmatpush1.msra.mxu0 %v4213
    %4224 = vmatprep.subr.mxu0 0.0
    %4225 = vmatpush1.msra.mxu0 0.0
    %4226 = vmatprep.subr.mxu0 0.0
    %4227 = vmatpush1.msra.mxu0 0.0
    %4228 = vmatprep.subr.mxu0 0.0
    %4229 = vmatpush1.msra.mxu0 0.0
    %4230 = vmatprep.subr.mxu0 0.0
    %4231 = vmatpush1.msra.mxu0 0.0
    %4232 = vmatprep.subr.mxu0 0.0
    %4233 = vmatpush1.msra.mxu0 0.0
    %4234 = vmatprep.subr.mxu0 0.0
    %4235 = vmatpush1.msra.mxu0 0.0
    %4236 = vmatprep.subr.mxu0 0.0
    %4237 = vmatpush1.msra.mxu0 0.0
    %4238 = vmatprep.subr.mxu0 0.0
    %4239 = vmatpush1.msra.mxu0 0.0
    %4240 = vmatprep.subr.mxu0 0.0
    %4241 = vmatpush1.msra.mxu0 0.0
    %4242 = vmatprep.subr.mxu0 0.0
    %4243 = vmatpush1.msra.mxu0 0.0
    %4244 = vmatprep.subr.mxu0 0.0
    %4245 = vmatpush1.msra.mxu0 0.0
    %4246 = vmatprep.subr.mxu0 0.0
    %4247 = vmatpush1.msra.mxu0 0.0
    %4248 = vmatprep.subr.mxu0 0.0
    %4249 = vmatpush1.msra.mxu0 0.0
    %4250 = vmatprep.subr.mxu0 0.0
    %4251 = vmatpush1.msra.mxu0 0.0
    %4252 = vmatprep.subr.mxu0 0.0
    %4253 = vmatpush1.msra.mxu0 0.0
    %4254 = vmatprep.subr.mxu0 0.0
    %4255 = vmatpush1.msra.mxu0 0.0
    %4256 = vmatprep.subr.mxu0 0.0
    %4257 = vmatpush1.msra.mxu0 0.0
    %4258 = vmatprep.subr.mxu0 0.0
    %4259 = vmatpush1.msra.mxu0 0.0
    %4260 = vmatprep.subr.mxu0 0.0
    %4261 = vmatpush1.msra.mxu0 0.0
    %4262 = vmatprep.subr.mxu0 0.0
    %4263 = vmatpush1.msra.mxu0 0.0
    %4264 = vmatprep.subr.mxu0 0.0
    %4265 = vmatpush1.msra.mxu0 0.0
    %4266 = vmatprep.subr.mxu0 0.0
    %4267 = vmatpush1.msra.mxu0 0.0
    %4268 = vmatprep.subr.mxu0 0.0
    %4269 = vmatpush1.msra.mxu0 0.0
    %4270 = vmatprep.subr.mxu0 0.0
    %4271 = vmatpush1.msra.mxu0 0.0
    %4272 = vmatprep.subr.mxu0 0.0
    %4273 = vmatpush1.msra.mxu0 0.0
    %4274 = vmatprep.subr.mxu0 0.0
    %4275 = vmatpush1.msra.mxu0 0.0
    %4276 = vmatprep.subr.mxu0 0.0
    %4277 = vmatpush1.msra.mxu0 0.0
    %4278 = vmatprep.subr.mxu0 0.0
    %4279 = vmatpush1.msra.mxu0 0.0
    %4280 = vmatprep.subr.mxu0 0.0
    %4281 = vmatpush1.msra.mxu0 0.0
    %4282 = vmatprep.subr.mxu0 0.0
    %4283 = vmatpush1.msra.mxu0 0.0
    %4284 = vmatprep.subr.mxu0 0.0
    %4285 = vmatpush1.msra.mxu0 0.0
    %4286 = vmatprep.mubr.f32.mxu0 0.0
    %4287 = vmatmul.mubr.f32.gmra.mrb[0].mxu0 %v4220
    %v4288 = vpop.f32.mrb[0].mxu0
    %v4289 = vadd.f32 %v4218, %v4288
    %v4290 = vpop.f32.mrb[0].mxu0
    %4291 = vdwg.mxu0
    %v4292 = vmax.f32 %v4289, 0.0
    %v4293 = vld [vmem:[%s11] sm:$0xff]
    %v4294 = vld [vmem:[%s11 + $0x8] sm:$0xff]
    %v4295 = vld [vmem:[%s11 + $0x10] sm:$0xff]
    %v4296 = vld [vmem:[%s11 + $0x18] sm:$0xff]
    %v4297 = vld [vmem:[%s11 + $0x20] sm:$0xff]
    %v4298 = vld [vmem:[%s11 + $0x28] sm:$0xff]
    %vm4299 = vcmask 130048
    %v4301 = vsel %vm4299, %v4292, 0
    %4303 = vmatprep.subr.mxu0 0.0
    %4304 = vmatpush1.msra.mxu0 %v4297
    %4305 = vmatprep.subr.mxu0 0.0
    %4306 = vmatpush1.msra.mxu0 %v4298
    %4307 = vmatprep.subr.mxu0 0.0
    %4308 = vmatpush1.msra.mxu0 0.0
    %4309 = vmatprep.subr.mxu0 0.0
    %4310 = vmatpush1.msra.mxu0 0.0
    %4311 = vmatprep.subr.mxu0 0.0
    %4312 = vmatpush1.msra.mxu0 0.0
    %4313 = vmatprep.subr.mxu0 0.0
    %4314 = vmatpush1.msra.mxu0 0.0
    %4315 = vmatprep.subr.mxu0 0.0
    %4316 = vmatpush1.msra.mxu0 0.0
    %4317 = vmatprep.subr.mxu0 0.0
    %4318 = vmatpush1.msra.mxu0 0.0
    %4319 = vmatprep.subr.mxu0 0.0
    %4320 = vmatpush1.msra.mxu0 0.0
    %4321 = vmatprep.subr.mxu0 0.0
    %4322 = vmatpush1.msra.mxu0 0.0
    %4323 = vmatprep.subr.mxu0 0.0
    %4324 = vmatpush1.msra.mxu0 0.0
    %4325 = vmatprep.subr.mxu0 0.0
    %4326 = vmatpush1.msra.mxu0 0.0
    %4327 = vmatprep.subr.mxu0 0.0
    %4328 = vmatpush1.msra.mxu0 0.0
    %4329 = vmatprep.subr.mxu0 0.0
    %4330 = vmatpush1.msra.mxu0 0.0
    %4331 = vmatprep.subr.mxu0 0.0
    %4332 = vmatpush1.msra.mxu0 0.0
    %4333 = vmatprep.subr.mxu0 0.0
    %4334 = vmatpush1.msra.mxu0 0.0
    %4335 = vmatprep.subr.mxu0 0.0
    %4336 = vmatpush1.msra.mxu0 0.0
    %4337 = vmatprep.subr.mxu0 0.0
    %4338 = vmatpush1.msra.mxu0 0.0
    %4339 = vmatprep.subr.mxu0 0.0
    %4340 = vmatpush1.msra.mxu0 0.0
    %4341 = vmatprep.subr.mxu0 0.0
    %4342 = vmatpush1.msra.mxu0 0.0
    %4343 = vmatprep.subr.mxu0 0.0
    %4344 = vmatpush1.msra.mxu0 0.0
    %4345 = vmatprep.subr.mxu0 0.0
    %4346 = vmatpush1.msra.mxu0 0.0
    %4347 = vmatprep.subr.mxu0 0.0
    %4348 = vmatpush1.msra.mxu0 0.0
    %4349 = vmatprep.subr.mxu0 0.0
    %4350 = vmatpush1.msra.mxu0 0.0
    %4351 = vmatprep.subr.mxu0 0.0
    %4352 = vmatpush1.msra.mxu0 0.0
    %4353 = vmatprep.subr.mxu0 0.0
    %4354 = vmatpush1.msra.mxu0 0.0
    %4355 = vmatprep.subr.mxu0 0.0
    %4356 = vmatpush1.msra.mxu0 0.0
    %4357 = vmatprep.subr.mxu0 0.0
    %4358 = vmatpush1.msra.mxu0 0.0
    %4359 = vmatprep.subr.mxu0 0.0
    %4360 = vmatpush1.msra.mxu0 0.0
    %4361 = vmatprep.subr.mxu0 0.0
    %4362 = vmatpush1.msra.mxu0 0.0
    %4363 = vmatprep.subr.mxu0 0.0
    %4364 = vmatpush1.msra.mxu0 0.0
    %4365 = vmatprep.subr.mxu0 0.0
    %4366 = vmatpush1.msra.mxu0 0.0
    %4367 = vmatprep.mubr.f32.mxu0 0.0
    %4368 = vmatmul.mubr.f32.gmra.mrb[0].mxu0 %v4301
    %v4369 = vpop.f32.mrb[0].mxu0
    %v4370 = vadd.f32 0.0, %v4369
    %v4371 = vpop.f32.mrb[0].mxu0
    %4372 = vdwg.mxu0
    %v4374 = vsel %vm355, %v4109, 0
    %4376 = vmatprep.subr.mxu0 0.0
    %4377 = vmatpush1.msra.mxu0 %v4293
    %4378 = vmatprep.subr.mxu0 0.0
    %4379 = vmatpush1.msra.mxu0 %v4294
    %4380 = vmatprep.subr.mxu0 0.0
    %4381 = vmatpush1.msra.mxu0 %v4295
    %4382 = vmatprep.subr.mxu0 0.0
    %4383 = vmatpush1.msra.mxu0 %v4296
    %4384 = vmatprep.subr.mxu0 0.0
    %4385 = vmatpush1.msra.mxu0 0.0
    %4386 = vmatprep.subr.mxu0 0.0
    %4387 = vmatpush1.msra.mxu0 0.0
    %4388 = vmatprep.subr.mxu0 0.0
    %4389 = vmatpush1.msra.mxu0 0.0
    %4390 = vmatprep.subr.mxu0 0.0
    %4391 = vmatpush1.msra.mxu0 0.0
    %4392 = vmatprep.subr.mxu0 0.0
    %4393 = vmatpush1.msra.mxu0 0.0
    %4394 = vmatprep.subr.mxu0 0.0
    %4395 = vmatpush1.msra.mxu0 0.0
    %4396 = vmatprep.subr.mxu0 0.0
    %4397 = vmatpush1.msra.mxu0 0.0
    %4398 = vmatprep.subr.mxu0 0.0
    %4399 = vmatpush1.msra.mxu0 0.0
    %4400 = vmatprep.subr.mxu0 0.0
    %4401 = vmatpush1.msra.mxu0 0.0
    %4402 = vmatprep.subr.mxu0 0.0
    %4403 = vmatpush1.msra.mxu0 0.0
    %4404 = vmatprep.subr.mxu0 0.0
    %4405 = vmatpush1.msra.mxu0 0.0
    %4406 = vmatprep.subr.mxu0 0.0
    %4407 = vmatpush1.msra.mxu0 0.0
    %4408 = vmatprep.subr.mxu0 0.0
    %4409 = vmatpush1.msra.mxu0 0.0
    %4410 = vmatprep.subr.mxu0 0.0
    %4411 = vmatpush1.msra.mxu0 0.0
    %4412 = vmatprep.subr.mxu0 0.0
    %4413 = vmatpush1.msra.mxu0 0.0
    %4414 = vmatprep.subr.mxu0 0.0
    %4415 = vmatpush1.msra.mxu0 0.0
    %4416 = vmatprep.subr.mxu0 0.0
    %4417 = vmatpush1.msra.mxu0 0.0
    %4418 = vmatprep.subr.mxu0 0.0
    %4419 = vmatpush1.msra.mxu0 0.0
    %4420 = vmatprep.subr.mxu0 0.0
    %4421 = vmatpush1.msra.mxu0 0.0
    %4422 = vmatprep.subr.mxu0 0.0
    %4423 = vmatpush1.msra.mxu0 0.0
    %4424 = vmatprep.subr.mxu0 0.0
    %4425 = vmatpush1.msra.mxu0 0.0
    %4426 = vmatprep.subr.mxu0 0.0
    %4427 = vmatpush1.msra.mxu0 0.0
    %4428 = vmatprep.subr.mxu0 0.0
    %4429 = vmatpush1.msra.mxu0 0.0
    %4430 = vmatprep.subr.mxu0 0.0
    %4431 = vmatpush1.msra.mxu0 0.0
    %4432 = vmatprep.subr.mxu0 0.0
    %4433 = vmatpush1.msra.mxu0 0.0
    %4434 = vmatprep.subr.mxu0 0.0
    %4435 = vmatpush1.msra.mxu0 0.0
    %4436 = vmatprep.subr.mxu0 0.0
    %4437 = vmatpush1.msra.mxu0 0.0
    %4438 = vmatprep.subr.mxu0 0.0
    %4439 = vmatpush1.msra.mxu0 0.0
    %4440 = vmatprep.mubr.f32.mxu0 0.0
    %4441 = vmatmul.mubr.f32.gmra.mrb[0].mxu0 %v4374
    %v4442 = vpop.f32.mrb[0].mxu0
    %v4443 = vadd.f32 %v4370, %v4442
    %v4444 = vpop.f32.mrb[0].mxu0
    %4445 = vdwg.mxu0
    %v4446 = vld [vmem:[%s11 + $0x30] sm:$0x1]
    %v4447 = vlaneseq
    %v4448 = vshrl.u32 %v4447, 7
    %v4449 = vsub.s32 0, %v4448
    %v4450 = vrot.slane %v4446, %v4449
    %v4451 = vadd.f32 %v4443, %v4450
    %v4454 = vunpack.c.l.s4 1966171168
    %v4455 = vunpack.c.0.s8 %v4454
    %v4456 = vlaneseq
    %v4457 = vshrl.u32 %v4456, 7
    %v4458 = vsub.s32 %v4455, %v4457
    %v4459 = vrot.slane %v4451, %v4458
    %v4460 = vcombine.high %v4459, %v4459
    %v4462 = vunpack.c.l.s4 1966171168
    %v4463 = vunpack.c.0.s8 %v4462
    %v4464 = vlaneseq
    %v4465 = vshrl.u32 %v4464, 7
    %v4466 = vsub.s32 %v4463, %v4465
    %v4467 = vrot.slane %v4459, %v4466
    %v4469 = vunpack.c.l.s4 1966171168
    %v4470 = vunpack.c.0.s8 %v4469
    %v4471 = vlaneseq
    %v4472 = vshrl.u32 %v4471, 7
    %v4473 = vsub.s32 %v4470, %v4472
    %v4474 = vrot.slane %v4460, %v4473
    %4477 = vst [vmem:[#allocation3] sm:$0x1] %v4467
    %4478 = vst [vmem:[#allocation3 + $0x1] sm:$0x1] %v4474
    // Predicated region
    $region50: #{forward.1} parent=1 // pred_check
      _
    $region51: #{forward.1} parent=1 // pred_check_branch
      %4480 = sbr.rel (0) target = $region53
    $region52: #{forward.1} parent=1 // pred_region
      %s4482 = ssub.s32 32, 32
      %4483 = vsyncadd [#allocation4], %s4482
      %s4484 = sshll.u32 [#allocation3], 4
      %s4485 = int_to_ptr.vmem [resolvable:$true] %s4484
      %4490 = dma.vmem_to_hbm [thread:$0]  %s4485, 32, %s12, [#allocation4], 16, 16, 1
    $region53: #{forward.1} parent=1 // pred_fallthru
      _
    // Predicated region
    $region54: #{forward.1} parent=1 // pred_check
      _
    $region55: #{forward.1} parent=1 // pred_check_branch
      %4492 = sbr.rel (0) target = $region57
    $region56: #{forward.1} parent=1 // pred_region
      %4493 = dma.done [#allocation4], 32
    $region57: #{forward.1} parent=1 // pred_fallthru
      _
    %4494 = vsyncpa [#allocation4], 1

</llo_original>
